<compile_context>
chip_gen: v7x
topology: tpu7x:2x2x1
jax: 0.10.0
libtpu: 0.0.40
codegen_flags: <defaults>
</compile_context>

<pallas_src>
import functools

import jax
import jax.numpy as jnp
from jax.experimental import pallas as pl
from jax.experimental.pallas import tpu as pltpu  # noqa: F401  (TPU backend)

EPS = 1e-5  # PyTorch LayerNorm default


def _layernorm(x, g, b):
    mu = jnp.mean(x, axis=-1, keepdims=True)
    xc = x - mu
    var = jnp.mean(xc * xc, axis=-1, keepdims=True)
    return xc * jax.lax.rsqrt(var + EPS) * g + b


def encoder_kernel(x_ref, bias_ref,
                   wq_ref, wk_ref, wv_ref, wu_ref, bu_ref,
                   ln1g_ref, ln1b_ref, ln2g_ref, ln2b_ref,
                   w1_ref, b1_ref, w2_ref, b2_ref,
                   wp_ref, bp_ref,
                   out_ref, *, heads, depth):
    x = x_ref[...]            # (b*t, emb)  -- batch folded into rows
    bias = bias_ref[...]      # (b*t, b*t)  -- block-diagonal additive mask

    for l in range(depth):    # depth is small & static: unrolled
        att = None
        for hh in range(heads):
            wq = wq_ref[l, hh]            # (emb, emb), scale pre-folded
            wk = wk_ref[l, hh]
            wv = wv_ref[l, hh]
            wu = wu_ref[l, hh]

            qh = jnp.dot(x, wq, preferred_element_type=jnp.float32)
            kh = jnp.dot(x, wk, preferred_element_type=jnp.float32)
            vh = jnp.dot(x, wv, preferred_element_type=jnp.float32)

            s = jax.lax.dot_general(qh, kh, (((1,), (1,)), ((), ())),
                                    preferred_element_type=jnp.float32)
            s = s + bias                  # masked / cross-batch -> -1e9

            m = jnp.max(s, axis=-1, keepdims=True)
            e = jnp.exp(s - m)
            den = jnp.sum(e, axis=-1, keepdims=True)
            p = e * pl.reciprocal(den, approx=True)   # EUP slot, not VPU divide

            oh = jnp.dot(p, vh, preferred_element_type=jnp.float32)
            c = jnp.dot(oh, wu, preferred_element_type=jnp.float32)
            att = c if att is None else att + c

        x = _layernorm(att + bu_ref[l] + x, ln1g_ref[l], ln1b_ref[l])

        h1 = jnp.dot(x, w1_ref[l], preferred_element_type=jnp.float32) + b1_ref[l]
        h1 = jnp.maximum(h1, 0.0)
        ff = jnp.dot(h1, w2_ref[l], preferred_element_type=jnp.float32) + b2_ref[l]

        x = _layernorm(ff + x, ln2g_ref[l], ln2b_ref[l])

    # lane-dense (padded to 128) output slab
    out_ref[...] = (jnp.dot(x, wp_ref[...], preferred_element_type=jnp.float32)
                    + bp_ref[...])


def transformer_encoder(tokens, mask, params, *, heads, depth):
    b, t, e = tokens.shape
    bt = b * t
    out_dim = params["wp"].shape[-1]
    out_pad = max(128, ((out_dim + 127) // 128) * 128)

    # ---- parameter prep (plain JAX, outside the kernel; fused by XLA) ----
    scale = jnp.float32(e ** 0.25)
    # (depth, emb, heads*emb) -> (depth, heads, emb, emb), scale folded in.
    wq = (params["wq"] / scale).reshape(depth, e, heads, e).transpose(0, 2, 1, 3)
    wk = (params["wk"] / scale).reshape(depth, e, heads, e).transpose(0, 2, 1, 3)
    wv = params["wv"].reshape(depth, e, heads, e).transpose(0, 2, 1, 3)
    # (depth, heads*emb, emb) -> (depth, heads, emb, emb)
    wu = params["wu"].reshape(depth, heads, e, e)
    # Pad toprobs to a lane-dense 128-wide output.
    wp = jnp.zeros((e, out_pad), jnp.float32).at[:, :out_dim].set(params["wp"])
    bp = jnp.zeros((1, out_pad), jnp.float32).at[:, :out_dim].set(params["bp"])

    # Additive attention bias over the folded (b*t) key axis:
    # block-diagonal (same batch) uses the user mask bias, cross-batch = -1e9.
    mask_bias = jnp.where(mask == 0.0, jnp.float32(-1e9), jnp.float32(0.0))   # (t, t)
    blockdiag = jnp.kron(jnp.eye(b, dtype=jnp.float32),
                         jnp.ones((t, t), jnp.float32))                       # (bt, bt)
    attn_bias = jnp.where(blockdiag > 0.0,
                          jnp.tile(mask_bias, (b, b)),
                          jnp.float32(-1e9)).astype(jnp.float32)

    x2d = tokens.reshape(bt, e).astype(jnp.float32)

    kernel = functools.partial(encoder_kernel, heads=heads, depth=depth)

    # Single kernel invocation (no grid): every operand is a whole-array VMEM
    # block; everything fits comfortably at these sizes.
    out = pl.pallas_call(
        kernel,
        out_shape=jax.ShapeDtypeStruct((bt, out_pad), jnp.float32),
    )(x2d, attn_bias,
      wq, wk, wv, wu, params["bu"],
      params["ln1g"], params["ln1b"], params["ln2g"], params["ln2b"],
      params["w1"], params["b1"], params["w2"], params["b2"],
      wp, bp)

    return out[:, :out_dim].reshape(b, t, out_dim)


def init_params(key, emb, heads, depth, output_dim):
    ks = jax.random.split(key, 8)
    n = lambda k, shape, scale=0.1: (scale * jax.random.normal(k, shape)).astype(jnp.float32)
    return {
        "wq": n(ks[0], (depth, emb, heads * emb)),
        "wk": n(ks[1], (depth, emb, heads * emb)),
        "wv": n(ks[2], (depth, emb, heads * emb)),
        "wu": n(ks[3], (depth, heads * emb, emb)),
        "bu": n(ks[4], (depth, 1, emb)),
        "ln1g": jnp.ones((depth, 1, emb), jnp.float32),
        "ln1b": jnp.zeros((depth, 1, emb), jnp.float32),
        "ln2g": jnp.ones((depth, 1, emb), jnp.float32),
        "ln2b": jnp.zeros((depth, 1, emb), jnp.float32),
        "w1": n(ks[5], (depth, emb, 4 * emb)),
        "b1": jnp.zeros((depth, 1, 4 * emb), jnp.float32),
        "w2": n(ks[6], (depth, 4 * emb, emb)),
        "b2": jnp.zeros((depth, 1, emb), jnp.float32),
        "wp": n(ks[7], (emb, output_dim)),
        "bp": jnp.zeros((1, output_dim), jnp.float32),
    }


def reference_encoder(tokens, mask, params, *, heads, depth):
    """Pure-JAX reference mirroring the PyTorch forward exactly."""
    x = tokens
    b, t, e = x.shape
    scale = e ** 0.25
    for l in range(depth):
        q = (x @ params["wq"][l]) / scale          # (b, t, h*e)
        k = (x @ params["wk"][l]) / scale
        v = x @ params["wv"][l]
        q = q.reshape(b, t, heads, e).transpose(0, 2, 1, 3)
        k = k.reshape(b, t, heads, e).transpose(0, 2, 1, 3)
        v = v.reshape(b, t, heads, e).transpose(0, 2, 1, 3)
        dot = jnp.einsum("bhqe,bhke->bhqk", q, k)
        dot = jnp.where(mask[None, None] == 0.0, -1e9, dot)
        p = jax.nn.softmax(dot, axis=-1)
        o = jnp.einsum("bhqk,bhke->bhqe", p, v)
        o = o.transpose(0, 2, 1, 3).reshape(b, t, heads * e)
        attended = o @ params["wu"][l] + params["bu"][l][0]

        def ln(y, g, b_):
            mu = jnp.mean(y, axis=-1, keepdims=True)
            var = jnp.mean((y - mu) ** 2, axis=-1, keepdims=True)
            return (y - mu) / jnp.sqrt(var + EPS) * g + b_

        x = ln(attended + x, params["ln1g"][l][0], params["ln1b"][l][0])
        h1 = jax.nn.relu(x @ params["w1"][l] + params["b1"][l][0])
        ff = h1 @ params["w2"][l] + params["b2"][l][0]
        x = ln(ff + x, params["ln2g"][l][0], params["ln2b"][l][0])
    return x @ params["wp"] + params["bp"][0]


if __name__ == "__main__":
    emb, heads, depth, output_dim = 32, 2, 2, 16
    b, t_x, t_h = 2, 6, 2
    t = t_x + t_h

    key = jax.random.PRNGKey(0)
    kx, kh, kp = jax.random.split(key, 3)
    x_in = jax.random.normal(kx, (b, t_x, emb), jnp.float32)
    h_in = jax.random.normal(kh, (b, t_h, emb), jnp.float32)
    params = init_params(kp, emb, heads, depth, output_dim)

    # TransformerEncoder.forward: tokens = cat((x, h), dim=1)
    tokens = jnp.concatenate([x_in, h_in], axis=1)      # (b, t, emb)
    mask = jnp.ones((t, t), jnp.float32)                # all-valid mask

    out = transformer_encoder(tokens, mask, params, heads=heads, depth=depth)
    out = jax.block_until_ready(out)

    ref = reference_encoder(tokens, mask, params, heads=heads, depth=depth)
    assert out.shape == (b, t, output_dim)
    # Slightly loose tolerance: softmax uses the EUP approx reciprocal.
    assert jnp.allclose(out, ref, rtol=2e-3, atol=2e-3), (
        float(jnp.max(jnp.abs(out - ref))))

    print("KERNEL_OK")
</pallas_src>

<mosaic_0001>
module attributes {stable_mosaic.version = 11 : i64} {
  func.func @encoder_kernel(%arg0: memref<16x32xf32, #tpu.memory_space<vmem>>, %arg1: memref<16x16xf32, #tpu.memory_space<vmem>>, %arg2: memref<2x2x32x32xf32, #tpu.memory_space<vmem>>, %arg3: memref<2x2x32x32xf32, #tpu.memory_space<vmem>>, %arg4: memref<2x2x32x32xf32, #tpu.memory_space<vmem>>, %arg5: memref<2x2x32x32xf32, #tpu.memory_space<vmem>>, %arg6: memref<2x1x32xf32, #tpu.memory_space<vmem>>, %arg7: memref<2x1x32xf32, #tpu.memory_space<vmem>>, %arg8: memref<2x1x32xf32, #tpu.memory_space<vmem>>, %arg9: memref<2x1x32xf32, #tpu.memory_space<vmem>>, %arg10: memref<2x1x32xf32, #tpu.memory_space<vmem>>, %arg11: memref<2x32x128xf32, #tpu.memory_space<vmem>>, %arg12: memref<2x1x128xf32, #tpu.memory_space<vmem>>, %arg13: memref<2x128x32xf32, #tpu.memory_space<vmem>>, %arg14: memref<2x1x32xf32, #tpu.memory_space<vmem>>, %arg15: memref<32x128xf32, #tpu.memory_space<vmem>>, %arg16: memref<1x128xf32, #tpu.memory_space<vmem>>, %arg17: memref<16x128xf32, #tpu.memory_space<vmem>>) attributes {dimension_semantics = [], scalar_prefetch = 0 : i64, scratch_operands = 0 : i64, tpu.core_type = #tpu.core_type<tc>} {
    %c0 = arith.constant 0 : index
    %c0_0 = arith.constant 0 : index
    %0 = vector.load %arg0[%c0, %c0_0] : memref<16x32xf32, #tpu.memory_space<vmem>>, vector<16x32xf32>
    %c0_1 = arith.constant 0 : index
    %c0_2 = arith.constant 0 : index
    %1 = vector.load %arg1[%c0_1, %c0_2] : memref<16x16xf32, #tpu.memory_space<vmem>>, vector<16x16xf32>
    %c0_3 = arith.constant 0 : index
    %c0_4 = arith.constant 0 : index
    %c0_5 = arith.constant 0 : index
    %c0_6 = arith.constant 0 : index
    %2 = vector.load %arg2[%c0_3, %c0_4, %c0_5, %c0_6] : memref<2x2x32x32xf32, #tpu.memory_space<vmem>>, vector<1x1x32x32xf32>
    %3 = vector.shape_cast %2 : vector<1x1x32x32xf32> to vector<32x32xf32>
    %c0_7 = arith.constant 0 : index
    %c0_8 = arith.constant 0 : index
    %c0_9 = arith.constant 0 : index
    %c0_10 = arith.constant 0 : index
    %4 = vector.load %arg3[%c0_7, %c0_8, %c0_9, %c0_10] : memref<2x2x32x32xf32, #tpu.memory_space<vmem>>, vector<1x1x32x32xf32>
    %5 = vector.shape_cast %4 : vector<1x1x32x32xf32> to vector<32x32xf32>
    %c0_11 = arith.constant 0 : index
    %c0_12 = arith.constant 0 : index
    %c0_13 = arith.constant 0 : index
    %c0_14 = arith.constant 0 : index
    %6 = vector.load %arg4[%c0_11, %c0_12, %c0_13, %c0_14] : memref<2x2x32x32xf32, #tpu.memory_space<vmem>>, vector<1x1x32x32xf32>
    %7 = vector.shape_cast %6 : vector<1x1x32x32xf32> to vector<32x32xf32>
    %c0_15 = arith.constant 0 : index
    %c0_16 = arith.constant 0 : index
    %c0_17 = arith.constant 0 : index
    %c0_18 = arith.constant 0 : index
    %8 = vector.load %arg5[%c0_15, %c0_16, %c0_17, %c0_18] : memref<2x2x32x32xf32, #tpu.memory_space<vmem>>, vector<1x1x32x32xf32>
    %9 = vector.shape_cast %8 : vector<1x1x32x32xf32> to vector<32x32xf32>
    %cst = arith.constant dense<0.000000e+00> : vector<16x32xf32>
    %10 = tpu.matmul %0, %3, %cst {dimension_numbers = #tpu.dot_dimension_numbers<[1], [0], [0], [1], [0, 0, 1, 1], [], []>} : vector<16x32xf32>, vector<32x32xf32>, vector<16x32xf32> -> vector<16x32xf32>
    %cst_19 = arith.constant dense<0.000000e+00> : vector<16x32xf32>
    %11 = tpu.matmul %0, %5, %cst_19 {dimension_numbers = #tpu.dot_dimension_numbers<[1], [0], [0], [1], [0, 0, 1, 1], [], []>} : vector<16x32xf32>, vector<32x32xf32>, vector<16x32xf32> -> vector<16x32xf32>
    %cst_20 = arith.constant dense<0.000000e+00> : vector<16x32xf32>
    %12 = tpu.matmul %0, %7, %cst_20 {dimension_numbers = #tpu.dot_dimension_numbers<[1], [0], [0], [1], [0, 0, 1, 1], [], []>} : vector<16x32xf32>, vector<32x32xf32>, vector<16x32xf32> -> vector<16x32xf32>
    %cst_21 = arith.constant dense<0.000000e+00> : vector<16x16xf32>
    %13 = tpu.matmul %10, %11, %cst_21 {dimension_numbers = #tpu.dot_dimension_numbers<[1], [1], [0], [0], [0, 0, 1, 0], [], []>} : vector<16x32xf32>, vector<16x32xf32>, vector<16x16xf32> -> vector<16x16xf32>
    %14 = arith.addf %13, %1 : vector<16x16xf32>
    %cst_22 = arith.constant dense<0xFF800000> : vector<16xf32>
    %15 = vector.multi_reduction <maximumf>, %14, %cst_22 [1] : vector<16x16xf32> to vector<16xf32>
    %16 = vector.shape_cast %15 : vector<16xf32> to vector<16x1xf32>
    %17 = vector.broadcast %16 : vector<16x1xf32> to vector<16x16xf32>
    %18 = arith.subf %14, %17 : vector<16x16xf32>
    %19 = math.exp %18 : vector<16x16xf32>
    %cst_23 = arith.constant dense<0.000000e+00> : vector<16xf32>
    %20 = vector.multi_reduction <add>, %19, %cst_23 [1] : vector<16x16xf32> to vector<16xf32>
    %21 = vector.shape_cast %20 : vector<16xf32> to vector<16x1xf32>
    %22 = tpu.reciprocal %21 {approx = true} : vector<16x1xf32> -> vector<16x1xf32>
    %23 = vector.broadcast %22 : vector<16x1xf32> to vector<16x16xf32>
    %24 = arith.mulf %19, %23 : vector<16x16xf32>
    %cst_24 = arith.constant dense<0.000000e+00> : vector<16x32xf32>
    %25 = tpu.matmul %24, %12, %cst_24 {dimension_numbers = #tpu.dot_dimension_numbers<[1], [0], [0], [1], [0, 0, 1, 1], [], []>} : vector<16x16xf32>, vector<16x32xf32>, vector<16x32xf32> -> vector<16x32xf32>
    %cst_25 = arith.constant dense<0.000000e+00> : vector<16x32xf32>
    %26 = tpu.matmul %25, %9, %cst_25 {dimension_numbers = #tpu.dot_dimension_numbers<[1], [0], [0], [1], [0, 0, 1, 1], [], []>} : vector<16x32xf32>, vector<32x32xf32>, vector<16x32xf32> -> vector<16x32xf32>
    %c0_26 = arith.constant 0 : index
    %c1 = arith.constant 1 : index
    %c0_27 = arith.constant 0 : index
    %c0_28 = arith.constant 0 : index
    %27 = vector.load %arg2[%c0_26, %c1, %c0_27, %c0_28] : memref<2x2x32x32xf32, #tpu.memory_space<vmem>>, vector<1x1x32x32xf32>
    %28 = vector.shape_cast %27 : vector<1x1x32x32xf32> to vector<32x32xf32>
    %c0_29 = arith.constant 0 : index
    %c1_30 = arith.constant 1 : index
    %c0_31 = arith.constant 0 : index
    %c0_32 = arith.constant 0 : index
    %29 = vector.load %arg3[%c0_29, %c1_30, %c0_31, %c0_32] : memref<2x2x32x32xf32, #tpu.memory_space<vmem>>, vector<1x1x32x32xf32>
    %30 = vector.shape_cast %29 : vector<1x1x32x32xf32> to vector<32x32xf32>
    %c0_33 = arith.constant 0 : index
    %c1_34 = arith.constant 1 : index
    %c0_35 = arith.constant 0 : index
    %c0_36 = arith.constant 0 : index
    %31 = vector.load %arg4[%c0_33, %c1_34, %c0_35, %c0_36] : memref<2x2x32x32xf32, #tpu.memory_space<vmem>>, vector<1x1x32x32xf32>
    %32 = vector.shape_cast %31 : vector<1x1x32x32xf32> to vector<32x32xf32>
    %c0_37 = arith.constant 0 : index
    %c1_38 = arith.constant 1 : index
    %c0_39 = arith.constant 0 : index
    %c0_40 = arith.constant 0 : index
    %33 = vector.load %arg5[%c0_37, %c1_38, %c0_39, %c0_40] : memref<2x2x32x32xf32, #tpu.memory_space<vmem>>, vector<1x1x32x32xf32>
    %34 = vector.shape_cast %33 : vector<1x1x32x32xf32> to vector<32x32xf32>
    %cst_41 = arith.constant dense<0.000000e+00> : vector<16x32xf32>
    %35 = tpu.matmul %0, %28, %cst_41 {dimension_numbers = #tpu.dot_dimension_numbers<[1], [0], [0], [1], [0, 0, 1, 1], [], []>} : vector<16x32xf32>, vector<32x32xf32>, vector<16x32xf32> -> vector<16x32xf32>
    %cst_42 = arith.constant dense<0.000000e+00> : vector<16x32xf32>
    %36 = tpu.matmul %0, %30, %cst_42 {dimension_numbers = #tpu.dot_dimension_numbers<[1], [0], [0], [1], [0, 0, 1, 1], [], []>} : vector<16x32xf32>, vector<32x32xf32>, vector<16x32xf32> -> vector<16x32xf32>
    %cst_43 = arith.constant dense<0.000000e+00> : vector<16x32xf32>
    %37 = tpu.matmul %0, %32, %cst_43 {dimension_numbers = #tpu.dot_dimension_numbers<[1], [0], [0], [1], [0, 0, 1, 1], [], []>} : vector<16x32xf32>, vector<32x32xf32>, vector<16x32xf32> -> vector<16x32xf32>
    %cst_44 = arith.constant dense<0.000000e+00> : vector<16x16xf32>
    %38 = tpu.matmul %35, %36, %cst_44 {dimension_numbers = #tpu.dot_dimension_numbers<[1], [1], [0], [0], [0, 0, 1, 0], [], []>} : vector<16x32xf32>, vector<16x32xf32>, vector<16x16xf32> -> vector<16x16xf32>
    %39 = arith.addf %38, %1 : vector<16x16xf32>
    %cst_45 = arith.constant dense<0xFF800000> : vector<16xf32>
    %40 = vector.multi_reduction <maximumf>, %39, %cst_45 [1] : vector<16x16xf32> to vector<16xf32>
    %41 = vector.shape_cast %40 : vector<16xf32> to vector<16x1xf32>
    %42 = vector.broadcast %41 : vector<16x1xf32> to vector<16x16xf32>
    %43 = arith.subf %39, %42 : vector<16x16xf32>
    %44 = math.exp %43 : vector<16x16xf32>
    %cst_46 = arith.constant dense<0.000000e+00> : vector<16xf32>
    %45 = vector.multi_reduction <add>, %44, %cst_46 [1] : vector<16x16xf32> to vector<16xf32>
    %46 = vector.shape_cast %45 : vector<16xf32> to vector<16x1xf32>
    %47 = tpu.reciprocal %46 {approx = true} : vector<16x1xf32> -> vector<16x1xf32>
    %48 = vector.broadcast %47 : vector<16x1xf32> to vector<16x16xf32>
    %49 = arith.mulf %44, %48 : vector<16x16xf32>
    %cst_47 = arith.constant dense<0.000000e+00> : vector<16x32xf32>
    %50 = tpu.matmul %49, %37, %cst_47 {dimension_numbers = #tpu.dot_dimension_numbers<[1], [0], [0], [1], [0, 0, 1, 1], [], []>} : vector<16x16xf32>, vector<16x32xf32>, vector<16x32xf32> -> vector<16x32xf32>
    %cst_48 = arith.constant dense<0.000000e+00> : vector<16x32xf32>
    %51 = tpu.matmul %50, %34, %cst_48 {dimension_numbers = #tpu.dot_dimension_numbers<[1], [0], [0], [1], [0, 0, 1, 1], [], []>} : vector<16x32xf32>, vector<32x32xf32>, vector<16x32xf32> -> vector<16x32xf32>
    %52 = arith.addf %26, %51 : vector<16x32xf32>
    %c0_49 = arith.constant 0 : index
    %c0_50 = arith.constant 0 : index
    %c0_51 = arith.constant 0 : index
    %53 = vector.load %arg6[%c0_49, %c0_50, %c0_51] : memref<2x1x32xf32, #tpu.memory_space<vmem>>, vector<1x1x32xf32>
    %54 = vector.shape_cast %53 : vector<1x1x32xf32> to vector<1x32xf32>
    %55 = vector.broadcast %54 : vector<1x32xf32> to vector<16x32xf32>
    %56 = arith.addf %52, %55 : vector<16x32xf32>
    %57 = arith.addf %56, %0 : vector<16x32xf32>
    %c0_52 = arith.constant 0 : index
    %c0_53 = arith.constant 0 : index
    %c0_54 = arith.constant 0 : index
    %58 = vector.load %arg7[%c0_52, %c0_53, %c0_54] : memref<2x1x32xf32, #tpu.memory_space<vmem>>, vector<1x1x32xf32>
    %59 = vector.shape_cast %58 : vector<1x1x32xf32> to vector<1x32xf32>
    %c0_55 = arith.constant 0 : index
    %c0_56 = arith.constant 0 : index
    %c0_57 = arith.constant 0 : index
    %60 = vector.load %arg8[%c0_55, %c0_56, %c0_57] : memref<2x1x32xf32, #tpu.memory_space<vmem>>, vector<1x1x32xf32>
    %61 = vector.shape_cast %60 : vector<1x1x32xf32> to vector<1x32xf32>
    %cst_58 = arith.constant dense<0.000000e+00> : vector<16xf32>
    %62 = vector.multi_reduction <add>, %57, %cst_58 [1] : vector<16x32xf32> to vector<16xf32>
    %63 = vector.shape_cast %62 : vector<16xf32> to vector<16x1xf32>
    %cst_59 = arith.constant 3.200000e+01 : f32
    %64 = vector.broadcast %cst_59 : f32 to vector<16x1xf32>
    %65 = arith.divf %63, %64 : vector<16x1xf32>
    %66 = vector.broadcast %65 : vector<16x1xf32> to vector<16x32xf32>
    %67 = arith.subf %57, %66 : vector<16x32xf32>
    %68 = arith.mulf %67, %67 : vector<16x32xf32>
    %cst_60 = arith.constant dense<0.000000e+00> : vector<16xf32>
    %69 = vector.multi_reduction <add>, %68, %cst_60 [1] : vector<16x32xf32> to vector<16xf32>
    %70 = vector.shape_cast %69 : vector<16xf32> to vector<16x1xf32>
    %cst_61 = arith.constant 3.200000e+01 : f32
    %71 = vector.broadcast %cst_61 : f32 to vector<16x1xf32>
    %72 = arith.divf %70, %71 : vector<16x1xf32>
    %cst_62 = arith.constant 9.99999974E-6 : f32
    %73 = vector.broadcast %cst_62 : f32 to vector<16x1xf32>
    %74 = arith.addf %72, %73 : vector<16x1xf32>
    %75 = math.rsqrt %74 : vector<16x1xf32>
    %76 = vector.broadcast %75 : vector<16x1xf32> to vector<16x32xf32>
    %77 = arith.mulf %67, %76 : vector<16x32xf32>
    %78 = vector.broadcast %59 : vector<1x32xf32> to vector<16x32xf32>
    %79 = arith.mulf %77, %78 : vector<16x32xf32>
    %80 = vector.broadcast %61 : vector<1x32xf32> to vector<16x32xf32>
    %81 = arith.addf %79, %80 : vector<16x32xf32>
    %c0_63 = arith.constant 0 : index
    %c0_64 = arith.constant 0 : index
    %c0_65 = arith.constant 0 : index
    %82 = vector.load %arg11[%c0_63, %c0_64, %c0_65] : memref<2x32x128xf32, #tpu.memory_space<vmem>>, vector<1x32x128xf32>
    %83 = vector.shape_cast %82 : vector<1x32x128xf32> to vector<32x128xf32>
    %cst_66 = arith.constant dense<0.000000e+00> : vector<16x128xf32>
    %84 = tpu.matmul %81, %83, %cst_66 {dimension_numbers = #tpu.dot_dimension_numbers<[1], [0], [0], [1], [0, 0, 1, 1], [], []>} : vector<16x32xf32>, vector<32x128xf32>, vector<16x128xf32> -> vector<16x128xf32>
    %c0_67 = arith.constant 0 : index
    %c0_68 = arith.constant 0 : index
    %c0_69 = arith.constant 0 : index
    %85 = vector.load %arg12[%c0_67, %c0_68, %c0_69] : memref<2x1x128xf32, #tpu.memory_space<vmem>>, vector<1x1x128xf32>
    %86 = vector.shape_cast %85 : vector<1x1x128xf32> to vector<1x128xf32>
    %87 = vector.broadcast %86 : vector<1x128xf32> to vector<16x128xf32>
    %88 = arith.addf %84, %87 : vector<16x128xf32>
    %cst_70 = arith.constant 0.000000e+00 : f32
    %89 = vector.broadcast %cst_70 : f32 to vector<16x128xf32>
    %90 = arith.maximumf %88, %89 : vector<16x128xf32>
    %c0_71 = arith.constant 0 : index
    %c0_72 = arith.constant 0 : index
    %c0_73 = arith.constant 0 : index
    %91 = vector.load %arg13[%c0_71, %c0_72, %c0_73] : memref<2x128x32xf32, #tpu.memory_space<vmem>>, vector<1x128x32xf32>
    %92 = vector.shape_cast %91 : vector<1x128x32xf32> to vector<128x32xf32>
    %cst_74 = arith.constant dense<0.000000e+00> : vector<16x32xf32>
    %93 = tpu.matmul %90, %92, %cst_74 {dimension_numbers = #tpu.dot_dimension_numbers<[1], [0], [0], [1], [0, 0, 1, 1], [], []>} : vector<16x128xf32>, vector<128x32xf32>, vector<16x32xf32> -> vector<16x32xf32>
    %c0_75 = arith.constant 0 : index
    %c0_76 = arith.constant 0 : index
    %c0_77 = arith.constant 0 : index
    %94 = vector.load %arg14[%c0_75, %c0_76, %c0_77] : memref<2x1x32xf32, #tpu.memory_space<vmem>>, vector<1x1x32xf32>
    %95 = vector.shape_cast %94 : vector<1x1x32xf32> to vector<1x32xf32>
    %96 = vector.broadcast %95 : vector<1x32xf32> to vector<16x32xf32>
    %97 = arith.addf %93, %96 : vector<16x32xf32>
    %98 = arith.addf %97, %81 : vector<16x32xf32>
    %c0_78 = arith.constant 0 : index
    %c0_79 = arith.constant 0 : index
    %c0_80 = arith.constant 0 : index
    %99 = vector.load %arg9[%c0_78, %c0_79, %c0_80] : memref<2x1x32xf32, #tpu.memory_space<vmem>>, vector<1x1x32xf32>
    %100 = vector.shape_cast %99 : vector<1x1x32xf32> to vector<1x32xf32>
    %c0_81 = arith.constant 0 : index
    %c0_82 = arith.constant 0 : index
    %c0_83 = arith.constant 0 : index
    %101 = vector.load %arg10[%c0_81, %c0_82, %c0_83] : memref<2x1x32xf32, #tpu.memory_space<vmem>>, vector<1x1x32xf32>
    %102 = vector.shape_cast %101 : vector<1x1x32xf32> to vector<1x32xf32>
    %cst_84 = arith.constant dense<0.000000e+00> : vector<16xf32>
    %103 = vector.multi_reduction <add>, %98, %cst_84 [1] : vector<16x32xf32> to vector<16xf32>
    %104 = vector.shape_cast %103 : vector<16xf32> to vector<16x1xf32>
    %cst_85 = arith.constant 3.200000e+01 : f32
    %105 = vector.broadcast %cst_85 : f32 to vector<16x1xf32>
    %106 = arith.divf %104, %105 : vector<16x1xf32>
    %107 = vector.broadcast %106 : vector<16x1xf32> to vector<16x32xf32>
    %108 = arith.subf %98, %107 : vector<16x32xf32>
    %109 = arith.mulf %108, %108 : vector<16x32xf32>
    %cst_86 = arith.constant dense<0.000000e+00> : vector<16xf32>
    %110 = vector.multi_reduction <add>, %109, %cst_86 [1] : vector<16x32xf32> to vector<16xf32>
    %111 = vector.shape_cast %110 : vector<16xf32> to vector<16x1xf32>
    %cst_87 = arith.constant 3.200000e+01 : f32
    %112 = vector.broadcast %cst_87 : f32 to vector<16x1xf32>
    %113 = arith.divf %111, %112 : vector<16x1xf32>
    %cst_88 = arith.constant 9.99999974E-6 : f32
    %114 = vector.broadcast %cst_88 : f32 to vector<16x1xf32>
    %115 = arith.addf %113, %114 : vector<16x1xf32>
    %116 = math.rsqrt %115 : vector<16x1xf32>
    %117 = vector.broadcast %116 : vector<16x1xf32> to vector<16x32xf32>
    %118 = arith.mulf %108, %117 : vector<16x32xf32>
    %119 = vector.broadcast %100 : vector<1x32xf32> to vector<16x32xf32>
    %120 = arith.mulf %118, %119 : vector<16x32xf32>
    %121 = vector.broadcast %102 : vector<1x32xf32> to vector<16x32xf32>
    %122 = arith.addf %120, %121 : vector<16x32xf32>
    %c1_89 = arith.constant 1 : index
    %c0_90 = arith.constant 0 : index
    %c0_91 = arith.constant 0 : index
    %c0_92 = arith.constant 0 : index
    %123 = vector.load %arg2[%c1_89, %c0_90, %c0_91, %c0_92] : memref<2x2x32x32xf32, #tpu.memory_space<vmem>>, vector<1x1x32x32xf32>
    %124 = vector.shape_cast %123 : vector<1x1x32x32xf32> to vector<32x32xf32>
    %c1_93 = arith.constant 1 : index
    %c0_94 = arith.constant 0 : index
    %c0_95 = arith.constant 0 : index
    %c0_96 = arith.constant 0 : index
    %125 = vector.load %arg3[%c1_93, %c0_94, %c0_95, %c0_96] : memref<2x2x32x32xf32, #tpu.memory_space<vmem>>, vector<1x1x32x32xf32>
    %126 = vector.shape_cast %125 : vector<1x1x32x32xf32> to vector<32x32xf32>
    %c1_97 = arith.constant 1 : index
    %c0_98 = arith.constant 0 : index
    %c0_99 = arith.constant 0 : index
    %c0_100 = arith.constant 0 : index
    %127 = vector.load %arg4[%c1_97, %c0_98, %c0_99, %c0_100] : memref<2x2x32x32xf32, #tpu.memory_space<vmem>>, vector<1x1x32x32xf32>
    %128 = vector.shape_cast %127 : vector<1x1x32x32xf32> to vector<32x32xf32>
    %c1_101 = arith.constant 1 : index
    %c0_102 = arith.constant 0 : index
    %c0_103 = arith.constant 0 : index
    %c0_104 = arith.constant 0 : index
    %129 = vector.load %arg5[%c1_101, %c0_102, %c0_103, %c0_104] : memref<2x2x32x32xf32, #tpu.memory_space<vmem>>, vector<1x1x32x32xf32>
    %130 = vector.shape_cast %129 : vector<1x1x32x32xf32> to vector<32x32xf32>
    %cst_105 = arith.constant dense<0.000000e+00> : vector<16x32xf32>
    %131 = tpu.matmul %122, %124, %cst_105 {dimension_numbers = #tpu.dot_dimension_numbers<[1], [0], [0], [1], [0, 0, 1, 1], [], []>} : vector<16x32xf32>, vector<32x32xf32>, vector<16x32xf32> -> vector<16x32xf32>
    %cst_106 = arith.constant dense<0.000000e+00> : vector<16x32xf32>
    %132 = tpu.matmul %122, %126, %cst_106 {dimension_numbers = #tpu.dot_dimension_numbers<[1], [0], [0], [1], [0, 0, 1, 1], [], []>} : vector<16x32xf32>, vector<32x32xf32>, vector<16x32xf32> -> vector<16x32xf32>
    %cst_107 = arith.constant dense<0.000000e+00> : vector<16x32xf32>
    %133 = tpu.matmul %122, %128, %cst_107 {dimension_numbers = #tpu.dot_dimension_numbers<[1], [0], [0], [1], [0, 0, 1, 1], [], []>} : vector<16x32xf32>, vector<32x32xf32>, vector<16x32xf32> -> vector<16x32xf32>
    %cst_108 = arith.constant dense<0.000000e+00> : vector<16x16xf32>
    %134 = tpu.matmul %131, %132, %cst_108 {dimension_numbers = #tpu.dot_dimension_numbers<[1], [1], [0], [0], [0, 0, 1, 0], [], []>} : vector<16x32xf32>, vector<16x32xf32>, vector<16x16xf32> -> vector<16x16xf32>
    %135 = arith.addf %134, %1 : vector<16x16xf32>
    %cst_109 = arith.constant dense<0xFF800000> : vector<16xf32>
    %136 = vector.multi_reduction <maximumf>, %135, %cst_109 [1] : vector<16x16xf32> to vector<16xf32>
    %137 = vector.shape_cast %136 : vector<16xf32> to vector<16x1xf32>
    %138 = vector.broadcast %137 : vector<16x1xf32> to vector<16x16xf32>
    %139 = arith.subf %135, %138 : vector<16x16xf32>
    %140 = math.exp %139 : vector<16x16xf32>
    %cst_110 = arith.constant dense<0.000000e+00> : vector<16xf32>
    %141 = vector.multi_reduction <add>, %140, %cst_110 [1] : vector<16x16xf32> to vector<16xf32>
    %142 = vector.shape_cast %141 : vector<16xf32> to vector<16x1xf32>
    %143 = tpu.reciprocal %142 {approx = true} : vector<16x1xf32> -> vector<16x1xf32>
    %144 = vector.broadcast %143 : vector<16x1xf32> to vector<16x16xf32>
    %145 = arith.mulf %140, %144 : vector<16x16xf32>
    %cst_111 = arith.constant dense<0.000000e+00> : vector<16x32xf32>
    %146 = tpu.matmul %145, %133, %cst_111 {dimension_numbers = #tpu.dot_dimension_numbers<[1], [0], [0], [1], [0, 0, 1, 1], [], []>} : vector<16x16xf32>, vector<16x32xf32>, vector<16x32xf32> -> vector<16x32xf32>
    %cst_112 = arith.constant dense<0.000000e+00> : vector<16x32xf32>
    %147 = tpu.matmul %146, %130, %cst_112 {dimension_numbers = #tpu.dot_dimension_numbers<[1], [0], [0], [1], [0, 0, 1, 1], [], []>} : vector<16x32xf32>, vector<32x32xf32>, vector<16x32xf32> -> vector<16x32xf32>
    %c1_113 = arith.constant 1 : index
    %c1_114 = arith.constant 1 : index
    %c0_115 = arith.constant 0 : index
    %c0_116 = arith.constant 0 : index
    %148 = vector.load %arg2[%c1_113, %c1_114, %c0_115, %c0_116] : memref<2x2x32x32xf32, #tpu.memory_space<vmem>>, vector<1x1x32x32xf32>
    %149 = vector.shape_cast %148 : vector<1x1x32x32xf32> to vector<32x32xf32>
    %c1_117 = arith.constant 1 : index
    %c1_118 = arith.constant 1 : index
    %c0_119 = arith.constant 0 : index
    %c0_120 = arith.constant 0 : index
    %150 = vector.load %arg3[%c1_117, %c1_118, %c0_119, %c0_120] : memref<2x2x32x32xf32, #tpu.memory_space<vmem>>, vector<1x1x32x32xf32>
    %151 = vector.shape_cast %150 : vector<1x1x32x32xf32> to vector<32x32xf32>
    %c1_121 = arith.constant 1 : index
    %c1_122 = arith.constant 1 : index
    %c0_123 = arith.constant 0 : index
    %c0_124 = arith.constant 0 : index
    %152 = vector.load %arg4[%c1_121, %c1_122, %c0_123, %c0_124] : memref<2x2x32x32xf32, #tpu.memory_space<vmem>>, vector<1x1x32x32xf32>
    %153 = vector.shape_cast %152 : vector<1x1x32x32xf32> to vector<32x32xf32>
    %c1_125 = arith.constant 1 : index
    %c1_126 = arith.constant 1 : index
    %c0_127 = arith.constant 0 : index
    %c0_128 = arith.constant 0 : index
    %154 = vector.load %arg5[%c1_125, %c1_126, %c0_127, %c0_128] : memref<2x2x32x32xf32, #tpu.memory_space<vmem>>, vector<1x1x32x32xf32>
    %155 = vector.shape_cast %154 : vector<1x1x32x32xf32> to vector<32x32xf32>
    %cst_129 = arith.constant dense<0.000000e+00> : vector<16x32xf32>
    %156 = tpu.matmul %122, %149, %cst_129 {dimension_numbers = #tpu.dot_dimension_numbers<[1], [0], [0], [1], [0, 0, 1, 1], [], []>} : vector<16x32xf32>, vector<32x32xf32>, vector<16x32xf32> -> vector<16x32xf32>
    %cst_130 = arith.constant dense<0.000000e+00> : vector<16x32xf32>
    %157 = tpu.matmul %122, %151, %cst_130 {dimension_numbers = #tpu.dot_dimension_numbers<[1], [0], [0], [1], [0, 0, 1, 1], [], []>} : vector<16x32xf32>, vector<32x32xf32>, vector<16x32xf32> -> vector<16x32xf32>
    %cst_131 = arith.constant dense<0.000000e+00> : vector<16x32xf32>
    %158 = tpu.matmul %122, %153, %cst_131 {dimension_numbers = #tpu.dot_dimension_numbers<[1], [0], [0], [1], [0, 0, 1, 1], [], []>} : vector<16x32xf32>, vector<32x32xf32>, vector<16x32xf32> -> vector<16x32xf32>
    %cst_132 = arith.constant dense<0.000000e+00> : vector<16x16xf32>
    %159 = tpu.matmul %156, %157, %cst_132 {dimension_numbers = #tpu.dot_dimension_numbers<[1], [1], [0], [0], [0, 0, 1, 0], [], []>} : vector<16x32xf32>, vector<16x32xf32>, vector<16x16xf32> -> vector<16x16xf32>
    %160 = arith.addf %159, %1 : vector<16x16xf32>
    %cst_133 = arith.constant dense<0xFF800000> : vector<16xf32>
    %161 = vector.multi_reduction <maximumf>, %160, %cst_133 [1] : vector<16x16xf32> to vector<16xf32>
    %162 = vector.shape_cast %161 : vector<16xf32> to vector<16x1xf32>
    %163 = vector.broadcast %162 : vector<16x1xf32> to vector<16x16xf32>
    %164 = arith.subf %160, %163 : vector<16x16xf32>
    %165 = math.exp %164 : vector<16x16xf32>
    %cst_134 = arith.constant dense<0.000000e+00> : vector<16xf32>
    %166 = vector.multi_reduction <add>, %165, %cst_134 [1] : vector<16x16xf32> to vector<16xf32>
    %167 = vector.shape_cast %166 : vector<16xf32> to vector<16x1xf32>
    %168 = tpu.reciprocal %167 {approx = true} : vector<16x1xf32> -> vector<16x1xf32>
    %169 = vector.broadcast %168 : vector<16x1xf32> to vector<16x16xf32>
    %170 = arith.mulf %165, %169 : vector<16x16xf32>
    %cst_135 = arith.constant dense<0.000000e+00> : vector<16x32xf32>
    %171 = tpu.matmul %170, %158, %cst_135 {dimension_numbers = #tpu.dot_dimension_numbers<[1], [0], [0], [1], [0, 0, 1, 1], [], []>} : vector<16x16xf32>, vector<16x32xf32>, vector<16x32xf32> -> vector<16x32xf32>
    %cst_136 = arith.constant dense<0.000000e+00> : vector<16x32xf32>
    %172 = tpu.matmul %171, %155, %cst_136 {dimension_numbers = #tpu.dot_dimension_numbers<[1], [0], [0], [1], [0, 0, 1, 1], [], []>} : vector<16x32xf32>, vector<32x32xf32>, vector<16x32xf32> -> vector<16x32xf32>
    %173 = arith.addf %147, %172 : vector<16x32xf32>
    %c1_137 = arith.constant 1 : index
    %c0_138 = arith.constant 0 : index
    %c0_139 = arith.constant 0 : index
    %174 = vector.load %arg6[%c1_137, %c0_138, %c0_139] : memref<2x1x32xf32, #tpu.memory_space<vmem>>, vector<1x1x32xf32>
    %175 = vector.shape_cast %174 : vector<1x1x32xf32> to vector<1x32xf32>
    %176 = vector.broadcast %175 : vector<1x32xf32> to vector<16x32xf32>
    %177 = arith.addf %173, %176 : vector<16x32xf32>
    %178 = arith.addf %177, %122 : vector<16x32xf32>
    %c1_140 = arith.constant 1 : index
    %c0_141 = arith.constant 0 : index
    %c0_142 = arith.constant 0 : index
    %179 = vector.load %arg7[%c1_140, %c0_141, %c0_142] : memref<2x1x32xf32, #tpu.memory_space<vmem>>, vector<1x1x32xf32>
    %180 = vector.shape_cast %179 : vector<1x1x32xf32> to vector<1x32xf32>
    %c1_143 = arith.constant 1 : index
    %c0_144 = arith.constant 0 : index
    %c0_145 = arith.constant 0 : index
    %181 = vector.load %arg8[%c1_143, %c0_144, %c0_145] : memref<2x1x32xf32, #tpu.memory_space<vmem>>, vector<1x1x32xf32>
    %182 = vector.shape_cast %181 : vector<1x1x32xf32> to vector<1x32xf32>
    %cst_146 = arith.constant dense<0.000000e+00> : vector<16xf32>
    %183 = vector.multi_reduction <add>, %178, %cst_146 [1] : vector<16x32xf32> to vector<16xf32>
    %184 = vector.shape_cast %183 : vector<16xf32> to vector<16x1xf32>
    %cst_147 = arith.constant 3.200000e+01 : f32
    %185 = vector.broadcast %cst_147 : f32 to vector<16x1xf32>
    %186 = arith.divf %184, %185 : vector<16x1xf32>
    %187 = vector.broadcast %186 : vector<16x1xf32> to vector<16x32xf32>
    %188 = arith.subf %178, %187 : vector<16x32xf32>
    %189 = arith.mulf %188, %188 : vector<16x32xf32>
    %cst_148 = arith.constant dense<0.000000e+00> : vector<16xf32>
    %190 = vector.multi_reduction <add>, %189, %cst_148 [1] : vector<16x32xf32> to vector<16xf32>
    %191 = vector.shape_cast %190 : vector<16xf32> to vector<16x1xf32>
    %cst_149 = arith.constant 3.200000e+01 : f32
    %192 = vector.broadcast %cst_149 : f32 to vector<16x1xf32>
    %193 = arith.divf %191, %192 : vector<16x1xf32>
    %cst_150 = arith.constant 9.99999974E-6 : f32
    %194 = vector.broadcast %cst_150 : f32 to vector<16x1xf32>
    %195 = arith.addf %193, %194 : vector<16x1xf32>
    %196 = math.rsqrt %195 : vector<16x1xf32>
    %197 = vector.broadcast %196 : vector<16x1xf32> to vector<16x32xf32>
    %198 = arith.mulf %188, %197 : vector<16x32xf32>
    %199 = vector.broadcast %180 : vector<1x32xf32> to vector<16x32xf32>
    %200 = arith.mulf %198, %199 : vector<16x32xf32>
    %201 = vector.broadcast %182 : vector<1x32xf32> to vector<16x32xf32>
    %202 = arith.addf %200, %201 : vector<16x32xf32>
    %c1_151 = arith.constant 1 : index
    %c0_152 = arith.constant 0 : index
    %c0_153 = arith.constant 0 : index
    %203 = vector.load %arg11[%c1_151, %c0_152, %c0_153] : memref<2x32x128xf32, #tpu.memory_space<vmem>>, vector<1x32x128xf32>
    %204 = vector.shape_cast %203 : vector<1x32x128xf32> to vector<32x128xf32>
    %cst_154 = arith.constant dense<0.000000e+00> : vector<16x128xf32>
    %205 = tpu.matmul %202, %204, %cst_154 {dimension_numbers = #tpu.dot_dimension_numbers<[1], [0], [0], [1], [0, 0, 1, 1], [], []>} : vector<16x32xf32>, vector<32x128xf32>, vector<16x128xf32> -> vector<16x128xf32>
    %c1_155 = arith.constant 1 : index
    %c0_156 = arith.constant 0 : index
    %c0_157 = arith.constant 0 : index
    %206 = vector.load %arg12[%c1_155, %c0_156, %c0_157] : memref<2x1x128xf32, #tpu.memory_space<vmem>>, vector<1x1x128xf32>
    %207 = vector.shape_cast %206 : vector<1x1x128xf32> to vector<1x128xf32>
    %208 = vector.broadcast %207 : vector<1x128xf32> to vector<16x128xf32>
    %209 = arith.addf %205, %208 : vector<16x128xf32>
    %cst_158 = arith.constant 0.000000e+00 : f32
    %210 = vector.broadcast %cst_158 : f32 to vector<16x128xf32>
    %211 = arith.maximumf %209, %210 : vector<16x128xf32>
    %c1_159 = arith.constant 1 : index
    %c0_160 = arith.constant 0 : index
    %c0_161 = arith.constant 0 : index
    %212 = vector.load %arg13[%c1_159, %c0_160, %c0_161] : memref<2x128x32xf32, #tpu.memory_space<vmem>>, vector<1x128x32xf32>
    %213 = vector.shape_cast %212 : vector<1x128x32xf32> to vector<128x32xf32>
    %cst_162 = arith.constant dense<0.000000e+00> : vector<16x32xf32>
    %214 = tpu.matmul %211, %213, %cst_162 {dimension_numbers = #tpu.dot_dimension_numbers<[1], [0], [0], [1], [0, 0, 1, 1], [], []>} : vector<16x128xf32>, vector<128x32xf32>, vector<16x32xf32> -> vector<16x32xf32>
    %c1_163 = arith.constant 1 : index
    %c0_164 = arith.constant 0 : index
    %c0_165 = arith.constant 0 : index
    %215 = vector.load %arg14[%c1_163, %c0_164, %c0_165] : memref<2x1x32xf32, #tpu.memory_space<vmem>>, vector<1x1x32xf32>
    %216 = vector.shape_cast %215 : vector<1x1x32xf32> to vector<1x32xf32>
    %217 = vector.broadcast %216 : vector<1x32xf32> to vector<16x32xf32>
    %218 = arith.addf %214, %217 : vector<16x32xf32>
    %219 = arith.addf %218, %202 : vector<16x32xf32>
    %c1_166 = arith.constant 1 : index
    %c0_167 = arith.constant 0 : index
    %c0_168 = arith.constant 0 : index
    %220 = vector.load %arg9[%c1_166, %c0_167, %c0_168] : memref<2x1x32xf32, #tpu.memory_space<vmem>>, vector<1x1x32xf32>
    %221 = vector.shape_cast %220 : vector<1x1x32xf32> to vector<1x32xf32>
    %c1_169 = arith.constant 1 : index
    %c0_170 = arith.constant 0 : index
    %c0_171 = arith.constant 0 : index
    %222 = vector.load %arg10[%c1_169, %c0_170, %c0_171] : memref<2x1x32xf32, #tpu.memory_space<vmem>>, vector<1x1x32xf32>
    %223 = vector.shape_cast %222 : vector<1x1x32xf32> to vector<1x32xf32>
    %cst_172 = arith.constant dense<0.000000e+00> : vector<16xf32>
    %224 = vector.multi_reduction <add>, %219, %cst_172 [1] : vector<16x32xf32> to vector<16xf32>
    %225 = vector.shape_cast %224 : vector<16xf32> to vector<16x1xf32>
    %cst_173 = arith.constant 3.200000e+01 : f32
    %226 = vector.broadcast %cst_173 : f32 to vector<16x1xf32>
    %227 = arith.divf %225, %226 : vector<16x1xf32>
    %228 = vector.broadcast %227 : vector<16x1xf32> to vector<16x32xf32>
    %229 = arith.subf %219, %228 : vector<16x32xf32>
    %230 = arith.mulf %229, %229 : vector<16x32xf32>
    %cst_174 = arith.constant dense<0.000000e+00> : vector<16xf32>
    %231 = vector.multi_reduction <add>, %230, %cst_174 [1] : vector<16x32xf32> to vector<16xf32>
    %232 = vector.shape_cast %231 : vector<16xf32> to vector<16x1xf32>
    %cst_175 = arith.constant 3.200000e+01 : f32
    %233 = vector.broadcast %cst_175 : f32 to vector<16x1xf32>
    %234 = arith.divf %232, %233 : vector<16x1xf32>
    %cst_176 = arith.constant 9.99999974E-6 : f32
    %235 = vector.broadcast %cst_176 : f32 to vector<16x1xf32>
    %236 = arith.addf %234, %235 : vector<16x1xf32>
    %237 = math.rsqrt %236 : vector<16x1xf32>
    %238 = vector.broadcast %237 : vector<16x1xf32> to vector<16x32xf32>
    %239 = arith.mulf %229, %238 : vector<16x32xf32>
    %240 = vector.broadcast %221 : vector<1x32xf32> to vector<16x32xf32>
    %241 = arith.mulf %239, %240 : vector<16x32xf32>
    %242 = vector.broadcast %223 : vector<1x32xf32> to vector<16x32xf32>
    %243 = arith.addf %241, %242 : vector<16x32xf32>
    %c0_177 = arith.constant 0 : index
    %c0_178 = arith.constant 0 : index
    %244 = vector.load %arg15[%c0_177, %c0_178] : memref<32x128xf32, #tpu.memory_space<vmem>>, vector<32x128xf32>
    %cst_179 = arith.constant dense<0.000000e+00> : vector<16x128xf32>
    %245 = tpu.matmul %243, %244, %cst_179 {dimension_numbers = #tpu.dot_dimension_numbers<[1], [0], [0], [1], [0, 0, 1, 1], [], []>} : vector<16x32xf32>, vector<32x128xf32>, vector<16x128xf32> -> vector<16x128xf32>
    %c0_180 = arith.constant 0 : index
    %c0_181 = arith.constant 0 : index
    %246 = vector.load %arg16[%c0_180, %c0_181] : memref<1x128xf32, #tpu.memory_space<vmem>>, vector<1x128xf32>
    %247 = vector.broadcast %246 : vector<1x128xf32> to vector<16x128xf32>
    %248 = arith.addf %245, %247 : vector<16x128xf32>
    %c0_182 = arith.constant 0 : index
    %c0_183 = arith.constant 0 : index
    %249 = vector.load %arg17[%c0_182, %c0_183] : memref<16x128xf32, #tpu.memory_space<vmem>>, vector<16x128xf32>
    tpu.vector_store %arg17[%c0_182, %c0_183], %248 {strides = array<i32>} : memref<16x128xf32, #tpu.memory_space<vmem>>, vector<16x128xf32>,
    return
  }
}

</mosaic_0001>

<llo_original>
// kernel: tpu_custom_call.1
$region0: #{tpu_custom_call.1}
  #allocation0 [shape = 'u32[]', space=smem, size = 0x4, offset = 0x4, fixed_abs, tag = 'smem constant byte address 0x4 - core index']
  #allocation1 [shape = 'u32[144,128]{1,0:T(1,128)}', space=vmem, size = 0x12000, scoped, tag = 'internal scratch']
  %s0 = inlined_call_operand.hbm [shape: f32[16,32], index: 0, kind: input, shape index: {}]
  %s1 = inlined_call_operand.hbm [shape: f32[16,16], index: 1, kind: input, shape index: {}]
  %s2 = inlined_call_operand.vmem [shape: f32[2,2,32,32], index: 2, kind: input, shape index: {}]
  %s3 = inlined_call_operand.vmem [shape: f32[2,2,32,32], index: 3, kind: input, shape index: {}]
  %s4 = inlined_call_operand.hbm [shape: f32[2,2,32,32], index: 4, kind: input, shape index: {}]
  %s5 = inlined_call_operand.hbm [shape: f32[2,2,32,32], index: 5, kind: input, shape index: {}]
  %s6 = inlined_call_operand.vmem [shape: f32[2,1,32], index: 6, kind: input, shape index: {}]
  %s7 = inlined_call_operand.hbm [shape: f32[2,1,32], index: 7, kind: input, shape index: {}]
  %s8 = inlined_call_operand.hbm [shape: f32[2,1,32], index: 8, kind: input, shape index: {}]
  %s9 = inlined_call_operand.hbm [shape: f32[2,1,32], index: 9, kind: input, shape index: {}]
  %s10 = inlined_call_operand.vmem [shape: f32[2,1,32], index: 10, kind: input, shape index: {}]
  %s11 = inlined_call_operand.vmem [shape: f32[2,32,128], index: 11, kind: input, shape index: {}]
  %s12 = inlined_call_operand.vmem [shape: f32[2,1,128], index: 12, kind: input, shape index: {}]
  %s13 = inlined_call_operand.vmem [shape: f32[2,128,32], index: 13, kind: input, shape index: {}]
  %s14 = inlined_call_operand.vmem [shape: f32[2,1,32], index: 14, kind: input, shape index: {}]
  %s15 = inlined_call_operand.vmem [shape: f32[32,128], index: 15, kind: input, shape index: {}]
  %s16 = inlined_call_operand.vmem [shape: f32[1,128], index: 16, kind: input, shape index: {}]
  %s17 = inlined_call_operand.hbm [shape: f32[16,128], index: 17, kind: output, shape index: {}]
  %s18 = sld [smem:[#allocation0]]
  $region106: #{tpu_custom_call.1} parent=0
    _
  %s20 = ssub.s32 1, %s18
  %s21 = scalar_select 0, %s20, %s18
  $region1: #{tpu_custom_call.1} parent=0
    #allocation2 [shape = 'u8[8192]{0}', space=vmem, size = 0x2000, scoped, tag = 'input window, operand 0, single buffered']
    #allocation3 [shape = 's32[1]{0}', space=sflag, size = 0x4, scoped, tag = 'scoped memory for tpu_custom_call.1']
    #allocation4 [shape = 's32[1]{0}', space=sflag, size = 0x4, scoped, tag = 'scoped memory for tpu_custom_call.1']
    #allocation5 [shape = 'u8[8192]{0}', space=vmem, size = 0x2000, scoped, tag = 'input window, operand 1, single buffered']
    #allocation6 [shape = 's32[1]{0}', space=sflag, size = 0x4, scoped, tag = 'scoped memory for tpu_custom_call.1']
    #allocation7 [shape = 'u8[65536]{0}', space=vmem, size = 0x10000, scoped, tag = 'input window, operand 4, single buffered']
    #allocation8 [shape = 'u8[65536]{0}', space=vmem, size = 0x10000, scoped, tag = 'input window, operand 5, single buffered']
    #allocation9 [shape = 's32[1]{0}', space=sflag, size = 0x4, scoped, tag = 'scoped memory for tpu_custom_call.1']
    #allocation10 [shape = 'u8[1024]{0}', space=vmem, size = 0x400, scoped, tag = 'input window, operand 7, single buffered']
    #allocation11 [shape = 'u8[1024]{0}', space=vmem, size = 0x400, scoped, tag = 'input window, operand 8, single buffered']
    #allocation12 [shape = 's32[1]{0}', space=sflag, size = 0x4, scoped, tag = 'scoped memory for tpu_custom_call.1']
    #allocation13 [shape = 'u8[1024]{0}', space=vmem, size = 0x400, scoped, tag = 'input window, operand 9, single buffered']
    #allocation14 [shape = 'u8[8192]{0}', space=vmem, size = 0x2000, scoped, tag = 'output window, operand 0, single buffered']
    %22 = vsyncpa [#allocation3], 0
    %23 = vsyncpa [#allocation6], 0
    %24 = vsyncpa [#allocation9], 0
    %25 = vsyncpa [#allocation12], 0
    %26 = vsyncpa [#allocation4], 0
    // Predicated region
    $region2: #{tpu_custom_call.1} parent=1 // pred_check
      _
    $region3: #{tpu_custom_call.1} parent=1 // pred_check_branch
      %28 = sbr.rel (0) target = $region5
    $region4: #{tpu_custom_call.1} parent=1 // pred_region
      %s30 = ssub.s32 256, 256
      %31 = vsyncadd [#allocation3], %s30
      %s32 = sshll.u32 [#allocation2], 4
      %s33 = int_to_ptr.vmem [resolvable:$true] %s32
      %38 = dma.hbm_to_vmem [thread:$0]  %s0, 256, %s33, [#allocation3], 128, 128, 8
    $region5: #{tpu_custom_call.1} parent=1 // pred_fallthru
      _
    // Predicated region
    $region6: #{tpu_custom_call.1} parent=1 // pred_check
      _
    $region7: #{tpu_custom_call.1} parent=1 // pred_check_branch
      %40 = sbr.rel (0) target = $region9
    $region8: #{tpu_custom_call.1} parent=1 // pred_region
      %s42 = ssub.s32 256, 256
      %43 = vsyncadd [#allocation6], %s42
      %s44 = sshll.u32 [#allocation5], 4
      %s45 = int_to_ptr.vmem [resolvable:$true] %s44
      %50 = dma.hbm_to_vmem [thread:$0]  %s1, 256, %s45, [#allocation6], 128, 128, 8
    $region9: #{tpu_custom_call.1} parent=1 // pred_fallthru
      _
    // Predicated region
    $region10: #{tpu_custom_call.1} parent=1 // pred_check
      _
    $region11: #{tpu_custom_call.1} parent=1 // pred_check_branch
      %52 = sbr.rel (0) target = $region13
    $region12: #{tpu_custom_call.1} parent=1 // pred_region
      _
    $region13: #{tpu_custom_call.1} parent=1 // pred_fallthru
      _
    // Predicated region
    $region14: #{tpu_custom_call.1} parent=1 // pred_check
      _
    $region15: #{tpu_custom_call.1} parent=1 // pred_check_branch
      %54 = sbr.rel (0) target = $region17
    $region16: #{tpu_custom_call.1} parent=1 // pred_region
      _
    $region17: #{tpu_custom_call.1} parent=1 // pred_fallthru
      _
    // Predicated region
    $region18: #{tpu_custom_call.1} parent=1 // pred_check
      _
    $region19: #{tpu_custom_call.1} parent=1 // pred_check_branch
      %56 = sbr.rel (0) target = $region21
    $region20: #{tpu_custom_call.1} parent=1 // pred_region
      %s58 = ssub.s32 2048, 2048
      %59 = vsyncadd [#allocation6], %s58
      %s60 = sshll.u32 [#allocation7], 4
      %s61 = int_to_ptr.vmem [resolvable:$true] %s60
      %66 = dma.hbm_to_vmem [thread:$0]  %s4, 2048, %s61, [#allocation6], 128, 128, 8
    $region21: #{tpu_custom_call.1} parent=1 // pred_fallthru
      _
    // Predicated region
    $region22: #{tpu_custom_call.1} parent=1 // pred_check
      _
    $region23: #{tpu_custom_call.1} parent=1 // pred_check_branch
      %68 = sbr.rel (0) target = $region25
    $region24: #{tpu_custom_call.1} parent=1 // pred_region
      %s70 = ssub.s32 2048, 2048
      %71 = vsyncadd [#allocation9], %s70
      %s72 = sshll.u32 [#allocation8], 4
      %s73 = int_to_ptr.vmem [resolvable:$true] %s72
      %78 = dma.hbm_to_vmem [thread:$0]  %s5, 2048, %s73, [#allocation9], 128, 128, 8
    $region25: #{tpu_custom_call.1} parent=1 // pred_fallthru
      _
    // Predicated region
    $region26: #{tpu_custom_call.1} parent=1 // pred_check
      _
    $region27: #{tpu_custom_call.1} parent=1 // pred_check_branch
      %80 = sbr.rel (0) target = $region29
    $region28: #{tpu_custom_call.1} parent=1 // pred_region
      _
    $region29: #{tpu_custom_call.1} parent=1 // pred_fallthru
      _
    // Predicated region
    $region30: #{tpu_custom_call.1} parent=1 // pred_check
      _
    $region31: #{tpu_custom_call.1} parent=1 // pred_check_branch
      %82 = sbr.rel (0) target = $region33
    $region32: #{tpu_custom_call.1} parent=1 // pred_region
      %s84 = ssub.s32 32, 32
      %85 = vsyncadd [#allocation9], %s84
      %s86 = sshll.u32 [#allocation10], 4
      %s87 = int_to_ptr.vmem [resolvable:$true] %s86
      %92 = dma.hbm_to_vmem [thread:$0]  %s7, 32, %s87, [#allocation9], 16, 16, 1
    $region33: #{tpu_custom_call.1} parent=1 // pred_fallthru
      _
    // Predicated region
    $region34: #{tpu_custom_call.1} parent=1 // pred_check
      _
    $region35: #{tpu_custom_call.1} parent=1 // pred_check_branch
      %94 = sbr.rel (0) target = $region37
    $region36: #{tpu_custom_call.1} parent=1 // pred_region
      %s96 = ssub.s32 32, 32
      %97 = vsyncadd [#allocation12], %s96
      %s98 = sshll.u32 [#allocation11], 4
      %s99 = int_to_ptr.vmem [resolvable:$true] %s98
      %104 = dma.hbm_to_vmem [thread:$0]  %s8, 32, %s99, [#allocation12], 16, 16, 1
    $region37: #{tpu_custom_call.1} parent=1 // pred_fallthru
      _
    // Predicated region
    $region38: #{tpu_custom_call.1} parent=1 // pred_check
      _
    $region39: #{tpu_custom_call.1} parent=1 // pred_check_branch
      %106 = sbr.rel (0) target = $region41
    $region40: #{tpu_custom_call.1} parent=1 // pred_region
      %s108 = ssub.s32 32, 32
      %109 = vsyncadd [#allocation12], %s108
      %s110 = sshll.u32 [#allocation13], 4
      %s111 = int_to_ptr.vmem [resolvable:$true] %s110
      %116 = dma.hbm_to_vmem [thread:$0]  %s9, 32, %s111, [#allocation12], 16, 16, 1
    $region41: #{tpu_custom_call.1} parent=1 // pred_fallthru
      _
    // Predicated region
    $region42: #{tpu_custom_call.1} parent=1 // pred_check
      _
    $region43: #{tpu_custom_call.1} parent=1 // pred_check_branch
      %118 = sbr.rel (0) target = $region45
    $region44: #{tpu_custom_call.1} parent=1 // pred_region
      _
    $region45: #{tpu_custom_call.1} parent=1 // pred_fallthru
      _
    // Predicated region
    $region46: #{tpu_custom_call.1} parent=1 // pred_check
      _
    $region47: #{tpu_custom_call.1} parent=1 // pred_check_branch
      %120 = sbr.rel (0) target = $region49
    $region48: #{tpu_custom_call.1} parent=1 // pred_region
      _
    $region49: #{tpu_custom_call.1} parent=1 // pred_fallthru
      _
    // Predicated region
    $region50: #{tpu_custom_call.1} parent=1 // pred_check
      _
    $region51: #{tpu_custom_call.1} parent=1 // pred_check_branch
      %122 = sbr.rel (0) target = $region53
    $region52: #{tpu_custom_call.1} parent=1 // pred_region
      _
    $region53: #{tpu_custom_call.1} parent=1 // pred_fallthru
      _
    // Predicated region
    $region54: #{tpu_custom_call.1} parent=1 // pred_check
      _
    $region55: #{tpu_custom_call.1} parent=1 // pred_check_branch
      %124 = sbr.rel (0) target = $region57
    $region56: #{tpu_custom_call.1} parent=1 // pred_region
      _
    $region57: #{tpu_custom_call.1} parent=1 // pred_fallthru
      _
    // Predicated region
    $region58: #{tpu_custom_call.1} parent=1 // pred_check
      _
    $region59: #{tpu_custom_call.1} parent=1 // pred_check_branch
      %126 = sbr.rel (0) target = $region61
    $region60: #{tpu_custom_call.1} parent=1 // pred_region
      _
    $region61: #{tpu_custom_call.1} parent=1 // pred_fallthru
      _
    // Predicated region
    $region62: #{tpu_custom_call.1} parent=1 // pred_check
      _
    $region63: #{tpu_custom_call.1} parent=1 // pred_check_branch
      %128 = sbr.rel (0) target = $region65
    $region64: #{tpu_custom_call.1} parent=1 // pred_region
      _
    $region65: #{tpu_custom_call.1} parent=1 // pred_fallthru
      _
    // Predicated region
    $region66: #{tpu_custom_call.1} parent=1 // pred_check
      _
    $region67: #{tpu_custom_call.1} parent=1 // pred_check_branch
      %130 = sbr.rel (0) target = $region69
    $region68: #{tpu_custom_call.1} parent=1 // pred_region
      _
    $region69: #{tpu_custom_call.1} parent=1 // pred_fallthru
      _
    // Predicated region
    $region70: #{tpu_custom_call.1} parent=1 // pred_check
      _
    $region71: #{tpu_custom_call.1} parent=1 // pred_check_branch
      %132 = sbr.rel (0) target = $region73
    $region72: #{tpu_custom_call.1} parent=1 // pred_region
      %133 = dma.done [#allocation3], 256
    $region73: #{tpu_custom_call.1} parent=1 // pred_fallthru
      _
    // Predicated region
    $region74: #{tpu_custom_call.1} parent=1 // pred_check
      _
    $region75: #{tpu_custom_call.1} parent=1 // pred_check_branch
      %135 = sbr.rel (0) target = $region77
    $region76: #{tpu_custom_call.1} parent=1 // pred_region
      %136 = dma.done [#allocation6], 256
    $region77: #{tpu_custom_call.1} parent=1 // pred_fallthru
      _
    // Predicated region
    $region78: #{tpu_custom_call.1} parent=1 // pred_check
      _
    $region79: #{tpu_custom_call.1} parent=1 // pred_check_branch
      %138 = sbr.rel (0) target = $region81
    $region80: #{tpu_custom_call.1} parent=1 // pred_region
      %139 = dma.done [#allocation6], 2048
    $region81: #{tpu_custom_call.1} parent=1 // pred_fallthru
      _
    // Predicated region
    $region82: #{tpu_custom_call.1} parent=1 // pred_check
      _
    $region83: #{tpu_custom_call.1} parent=1 // pred_check_branch
      %141 = sbr.rel (0) target = $region85
    $region84: #{tpu_custom_call.1} parent=1 // pred_region
      %142 = dma.done [#allocation9], 2048
    $region85: #{tpu_custom_call.1} parent=1 // pred_fallthru
      _
    // Predicated region
    $region86: #{tpu_custom_call.1} parent=1 // pred_check
      _
    $region87: #{tpu_custom_call.1} parent=1 // pred_check_branch
      %144 = sbr.rel (0) target = $region89
    $region88: #{tpu_custom_call.1} parent=1 // pred_region
      %145 = dma.done [#allocation9], 32
    $region89: #{tpu_custom_call.1} parent=1 // pred_fallthru
      _
    // Predicated region
    $region90: #{tpu_custom_call.1} parent=1 // pred_check
      _
    $region91: #{tpu_custom_call.1} parent=1 // pred_check_branch
      %147 = sbr.rel (0) target = $region93
    $region92: #{tpu_custom_call.1} parent=1 // pred_region
      %148 = dma.done [#allocation12], 32
    $region93: #{tpu_custom_call.1} parent=1 // pred_fallthru
      _
    // Predicated region
    $region94: #{tpu_custom_call.1} parent=1 // pred_check
      _
    $region95: #{tpu_custom_call.1} parent=1 // pred_check_branch
      %150 = sbr.rel (0) target = $region97
    $region96: #{tpu_custom_call.1} parent=1 // pred_region
      %151 = dma.done [#allocation12], 32
    $region97: #{tpu_custom_call.1} parent=1 // pred_fallthru
      _
    %v152 = vld [vmem:[#allocation2] sm:$0xff]
    %v153 = vld [vmem:[#allocation2 + $0x8] sm:$0xff]
    %v154 = vld [vmem:[#allocation5] sm:$0xff]
    %v155 = vld [vmem:[#allocation5 + $0x8] sm:$0xff]
    %v156 = vld [vmem:[%s2] sm:$0xff]
    %v157 = vld [vmem:[%s2 + $0x8] sm:$0xff]
    %v158 = vld [vmem:[%s2 + $0x10] sm:$0xff]
    %v159 = vld [vmem:[%s2 + $0x18] sm:$0xff]
    %v160 = vld [vmem:[%s3] sm:$0xff]
    %v161 = vld [vmem:[%s3 + $0x8] sm:$0xff]
    %v162 = vld [vmem:[%s3 + $0x10] sm:$0xff]
    %v163 = vld [vmem:[%s3 + $0x18] sm:$0xff]
    %v164 = vld [vmem:[#allocation7] sm:$0xff]
    %v165 = vld [vmem:[#allocation7 + $0x8] sm:$0xff]
    %v166 = vld [vmem:[#allocation7 + $0x10] sm:$0xff]
    %v167 = vld [vmem:[#allocation7 + $0x18] sm:$0xff]
    %v168 = vld [vmem:[#allocation8] sm:$0xff]
    %v169 = vld [vmem:[#allocation8 + $0x8] sm:$0xff]
    %v170 = vld [vmem:[#allocation8 + $0x10] sm:$0xff]
    %v171 = vld [vmem:[#allocation8 + $0x18] sm:$0xff]
    %vm172 = vcmask 261120
    %v174 = vsel %vm172, %v152, 0
    %v177 = vsel %vm172, %v153, 0
    %179 = vmatprep.subr.mxu0 0.0
    %180 = vmatpush1.msra.mxu0 %v156
    %181 = vmatprep.subr.mxu0 0.0
    %182 = vmatpush1.msra.mxu0 %v157
    %183 = vmatprep.subr.mxu0 0.0
    %184 = vmatpush1.msra.mxu0 %v158
    %185 = vmatprep.subr.mxu0 0.0
    %186 = vmatpush1.msra.mxu0 %v159
    %187 = vmatprep.subr.mxu0 0.0
    %188 = vmatpush1.msra.mxu0 0.0
    %189 = vmatprep.subr.mxu0 0.0
    %190 = vmatpush1.msra.mxu0 0.0
    %191 = vmatprep.subr.mxu0 0.0
    %192 = vmatpush1.msra.mxu0 0.0
    %193 = vmatprep.subr.mxu0 0.0
    %194 = vmatpush1.msra.mxu0 0.0
    %195 = vmatprep.subr.mxu0 0.0
    %196 = vmatpush1.msra.mxu0 0.0
    %197 = vmatprep.subr.mxu0 0.0
    %198 = vmatpush1.msra.mxu0 0.0
    %199 = vmatprep.subr.mxu0 0.0
    %200 = vmatpush1.msra.mxu0 0.0
    %201 = vmatprep.subr.mxu0 0.0
    %202 = vmatpush1.msra.mxu0 0.0
    %203 = vmatprep.subr.mxu0 0.0
    %204 = vmatpush1.msra.mxu0 0.0
    %205 = vmatprep.subr.mxu0 0.0
    %206 = vmatpush1.msra.mxu0 0.0
    %207 = vmatprep.subr.mxu0 0.0
    %208 = vmatpush1.msra.mxu0 0.0
    %209 = vmatprep.subr.mxu0 0.0
    %210 = vmatpush1.msra.mxu0 0.0
    %211 = vmatprep.subr.mxu0 0.0
    %212 = vmatpush1.msra.mxu0 0.0
    %213 = vmatprep.subr.mxu0 0.0
    %214 = vmatpush1.msra.mxu0 0.0
    %215 = vmatprep.subr.mxu0 0.0
    %216 = vmatpush1.msra.mxu0 0.0
    %217 = vmatprep.subr.mxu0 0.0
    %218 = vmatpush1.msra.mxu0 0.0
    %219 = vmatprep.subr.mxu0 0.0
    %220 = vmatpush1.msra.mxu0 0.0
    %221 = vmatprep.subr.mxu0 0.0
    %222 = vmatpush1.msra.mxu0 0.0
    %223 = vmatprep.subr.mxu0 0.0
    %224 = vmatpush1.msra.mxu0 0.0
    %225 = vmatprep.subr.mxu0 0.0
    %226 = vmatpush1.msra.mxu0 0.0
    %227 = vmatprep.subr.mxu0 0.0
    %228 = vmatpush1.msra.mxu0 0.0
    %229 = vmatprep.subr.mxu0 0.0
    %230 = vmatpush1.msra.mxu0 0.0
    %231 = vmatprep.subr.mxu0 0.0
    %232 = vmatpush1.msra.mxu0 0.0
    %233 = vmatprep.subr.mxu0 0.0
    %234 = vmatpush1.msra.mxu0 0.0
    %235 = vmatprep.subr.mxu0 0.0
    %236 = vmatpush1.msra.mxu0 0.0
    %237 = vmatprep.subr.mxu0 0.0
    %238 = vmatpush1.msra.mxu0 0.0
    %239 = vmatprep.subr.mxu0 0.0
    %240 = vmatpush1.msra.mxu0 0.0
    %241 = vmatprep.subr.mxu0 0.0
    %242 = vmatpush1.msra.mxu0 0.0
    %243 = vmatprep.mubr.f32.mxu0 0.0
    %244 = vmatmul.mubr.f32.gmra.mrb[0].mxu0 %v174
    %v245 = vpop.f32.mrb[0].mxu0
    %v246 = vadd.f32 0.0, %v245
    %v247 = vpop.f32.mrb[0].mxu0
    %248 = vmatprep.mubr.f32.mxu0 0.0
    %249 = vmatmul.mubr.f32.gmra.mrb[0].mxu0 %v177
    %v250 = vpop.f32.mrb[0].mxu0
    %v251 = vadd.f32 0.0, %v250
    %v252 = vpop.f32.mrb[0].mxu0
    %253 = vdwg.mxu0
    %254 = vmatprep.subr.mxu0 0.0
    %255 = vmatpush1.msra.mxu0 %v160
    %256 = vmatprep.subr.mxu0 0.0
    %257 = vmatpush1.msra.mxu0 %v161
    %258 = vmatprep.subr.mxu0 0.0
    %259 = vmatpush1.msra.mxu0 %v162
    %260 = vmatprep.subr.mxu0 0.0
    %261 = vmatpush1.msra.mxu0 %v163
    %262 = vmatprep.subr.mxu0 0.0
    %263 = vmatpush1.msra.mxu0 0.0
    %264 = vmatprep.subr.mxu0 0.0
    %265 = vmatpush1.msra.mxu0 0.0
    %266 = vmatprep.subr.mxu0 0.0
    %267 = vmatpush1.msra.mxu0 0.0
    %268 = vmatprep.subr.mxu0 0.0
    %269 = vmatpush1.msra.mxu0 0.0
    %270 = vmatprep.subr.mxu0 0.0
    %271 = vmatpush1.msra.mxu0 0.0
    %272 = vmatprep.subr.mxu0 0.0
    %273 = vmatpush1.msra.mxu0 0.0
    %274 = vmatprep.subr.mxu0 0.0
    %275 = vmatpush1.msra.mxu0 0.0
    %276 = vmatprep.subr.mxu0 0.0
    %277 = vmatpush1.msra.mxu0 0.0
    %278 = vmatprep.subr.mxu0 0.0
    %279 = vmatpush1.msra.mxu0 0.0
    %280 = vmatprep.subr.mxu0 0.0
    %281 = vmatpush1.msra.mxu0 0.0
    %282 = vmatprep.subr.mxu0 0.0
    %283 = vmatpush1.msra.mxu0 0.0
    %284 = vmatprep.subr.mxu0 0.0
    %285 = vmatpush1.msra.mxu0 0.0
    %286 = vmatprep.subr.mxu0 0.0
    %287 = vmatpush1.msra.mxu0 0.0
    %288 = vmatprep.subr.mxu0 0.0
    %289 = vmatpush1.msra.mxu0 0.0
    %290 = vmatprep.subr.mxu0 0.0
    %291 = vmatpush1.msra.mxu0 0.0
    %292 = vmatprep.subr.mxu0 0.0
    %293 = vmatpush1.msra.mxu0 0.0
    %294 = vmatprep.subr.mxu0 0.0
    %295 = vmatpush1.msra.mxu0 0.0
    %296 = vmatprep.subr.mxu0 0.0
    %297 = vmatpush1.msra.mxu0 0.0
    %298 = vmatprep.subr.mxu0 0.0
    %299 = vmatpush1.msra.mxu0 0.0
    %300 = vmatprep.subr.mxu0 0.0
    %301 = vmatpush1.msra.mxu0 0.0
    %302 = vmatprep.subr.mxu0 0.0
    %303 = vmatpush1.msra.mxu0 0.0
    %304 = vmatprep.subr.mxu0 0.0
    %305 = vmatpush1.msra.mxu0 0.0
    %306 = vmatprep.subr.mxu0 0.0
    %307 = vmatpush1.msra.mxu0 0.0
    %308 = vmatprep.subr.mxu0 0.0
    %309 = vmatpush1.msra.mxu0 0.0
    %310 = vmatprep.subr.mxu0 0.0
    %311 = vmatpush1.msra.mxu0 0.0
    %312 = vmatprep.subr.mxu0 0.0
    %313 = vmatpush1.msra.mxu0 0.0
    %314 = vmatprep.subr.mxu0 0.0
    %315 = vmatpush1.msra.mxu0 0.0
    %316 = vmatprep.subr.mxu0 0.0
    %317 = vmatpush1.msra.mxu0 0.0
    %318 = vmatprep.mubr.f32.mxu0 0.0
    %319 = vmatmul.mubr.f32.gmra.mrb[0].mxu0 %v174
    %v320 = vpop.f32.mrb[0].mxu0
    %v321 = vadd.f32 0.0, %v320
    %v322 = vpop.f32.mrb[0].mxu0
    %323 = vmatprep.mubr.f32.mxu0 0.0
    %324 = vmatmul.mubr.f32.gmra.mrb[0].mxu0 %v177
    %v325 = vpop.f32.mrb[0].mxu0
    %v326 = vadd.f32 0.0, %v325
    %v327 = vpop.f32.mrb[0].mxu0
    %328 = vdwg.mxu0
    %329 = vmatprep.subr.mxu0 0.0
    %330 = vmatpush1.msra.mxu0 %v164
    %331 = vmatprep.subr.mxu0 0.0
    %332 = vmatpush1.msra.mxu0 %v165
    %333 = vmatprep.subr.mxu0 0.0
    %334 = vmatpush1.msra.mxu0 %v166
    %335 = vmatprep.subr.mxu0 0.0
    %336 = vmatpush1.msra.mxu0 %v167
    %337 = vmatprep.subr.mxu0 0.0
    %338 = vmatpush1.msra.mxu0 0.0
    %339 = vmatprep.subr.mxu0 0.0
    %340 = vmatpush1.msra.mxu0 0.0
    %341 = vmatprep.subr.mxu0 0.0
    %342 = vmatpush1.msra.mxu0 0.0
    %343 = vmatprep.subr.mxu0 0.0
    %344 = vmatpush1.msra.mxu0 0.0
    %345 = vmatprep.subr.mxu0 0.0
    %346 = vmatpush1.msra.mxu0 0.0
    %347 = vmatprep.subr.mxu0 0.0
    %348 = vmatpush1.msra.mxu0 0.0
    %349 = vmatprep.subr.mxu0 0.0
    %350 = vmatpush1.msra.mxu0 0.0
    %351 = vmatprep.subr.mxu0 0.0
    %352 = vmatpush1.msra.mxu0 0.0
    %353 = vmatprep.subr.mxu0 0.0
    %354 = vmatpush1.msra.mxu0 0.0
    %355 = vmatprep.subr.mxu0 0.0
    %356 = vmatpush1.msra.mxu0 0.0
    %357 = vmatprep.subr.mxu0 0.0
    %358 = vmatpush1.msra.mxu0 0.0
    %359 = vmatprep.subr.mxu0 0.0
    %360 = vmatpush1.msra.mxu0 0.0
    %361 = vmatprep.subr.mxu0 0.0
    %362 = vmatpush1.msra.mxu0 0.0
    %363 = vmatprep.subr.mxu0 0.0
    %364 = vmatpush1.msra.mxu0 0.0
    %365 = vmatprep.subr.mxu0 0.0
    %366 = vmatpush1.msra.mxu0 0.0
    %367 = vmatprep.subr.mxu0 0.0
    %368 = vmatpush1.msra.mxu0 0.0
    %369 = vmatprep.subr.mxu0 0.0
    %370 = vmatpush1.msra.mxu0 0.0
    %371 = vmatprep.subr.mxu0 0.0
    %372 = vmatpush1.msra.mxu0 0.0
    %373 = vmatprep.subr.mxu0 0.0
    %374 = vmatpush1.msra.mxu0 0.0
    %375 = vmatprep.subr.mxu0 0.0
    %376 = vmatpush1.msra.mxu0 0.0
    %377 = vmatprep.subr.mxu0 0.0
    %378 = vmatpush1.msra.mxu0 0.0
    %379 = vmatprep.subr.mxu0 0.0
    %380 = vmatpush1.msra.mxu0 0.0
    %381 = vmatprep.subr.mxu0 0.0
    %382 = vmatpush1.msra.mxu0 0.0
    %383 = vmatprep.subr.mxu0 0.0
    %384 = vmatpush1.msra.mxu0 0.0
    %385 = vmatprep.subr.mxu0 0.0
    %386 = vmatpush1.msra.mxu0 0.0
    %387 = vmatprep.subr.mxu0 0.0
    %388 = vmatpush1.msra.mxu0 0.0
    %389 = vmatprep.subr.mxu0 0.0
    %390 = vmatpush1.msra.mxu0 0.0
    %391 = vmatprep.subr.mxu0 0.0
    %392 = vmatpush1.msra.mxu0 0.0
    %393 = vmatprep.mubr.f32.mxu0 0.0
    %394 = vmatmul.mubr.f32.gmra.mrb[0].mxu0 %v174
    %v395 = vpop.f32.mrb[0].mxu0
    %v396 = vadd.f32 0.0, %v395
    %v397 = vpop.f32.mrb[0].mxu0
    %398 = vmatprep.mubr.f32.mxu0 0.0
    %399 = vmatmul.mubr.f32.gmra.mrb[0].mxu0 %v177
    %v400 = vpop.f32.mrb[0].mxu0
    %v401 = vadd.f32 0.0, %v400
    %v402 = vpop.f32.mrb[0].mxu0
    %403 = vdwg.mxu0
    %v405 = vsel %vm172, %v246, 0
    %v408 = vsel %vm172, %v251, 0
    %v411 = vsel %vm172, %v321, 0
    %v414 = vsel %vm172, %v326, 0
    %416 = vmatprep.subr.mxu0 0.0
    %417 = vmatpush1.xpose.msra.mxu0 %v411
    %418 = vmatprep.subr.mxu0 0.0
    %419 = vmatpush1.xpose.msra.mxu0 %v414
    %420 = vmatprep.subr.mxu0 0.0
    %421 = vmatpush1.xpose.msra.mxu0 0.0
    %422 = vmatprep.subr.mxu0 0.0
    %423 = vmatpush1.xpose.msra.mxu0 0.0
    %424 = vmatprep.subr.mxu0 0.0
    %425 = vmatpush1.xpose.msra.mxu0 0.0
    %426 = vmatprep.subr.mxu0 0.0
    %427 = vmatpush1.xpose.msra.mxu0 0.0
    %428 = vmatprep.subr.mxu0 0.0
    %429 = vmatpush1.xpose.msra.mxu0 0.0
    %430 = vmatprep.subr.mxu0 0.0
    %431 = vmatpush1.xpose.msra.mxu0 0.0
    %432 = vmatprep.subr.mxu0 0.0
    %433 = vmatpush1.xpose.msra.mxu0 0.0
    %434 = vmatprep.subr.mxu0 0.0
    %435 = vmatpush1.xpose.msra.mxu0 0.0
    %436 = vmatprep.subr.mxu0 0.0
    %437 = vmatpush1.xpose.msra.mxu0 0.0
    %438 = vmatprep.subr.mxu0 0.0
    %439 = vmatpush1.xpose.msra.mxu0 0.0
    %440 = vmatprep.subr.mxu0 0.0
    %441 = vmatpush1.xpose.msra.mxu0 0.0
    %442 = vmatprep.subr.mxu0 0.0
    %443 = vmatpush1.xpose.msra.mxu0 0.0
    %444 = vmatprep.subr.mxu0 0.0
    %445 = vmatpush1.xpose.msra.mxu0 0.0
    %446 = vmatprep.subr.mxu0 0.0
    %447 = vmatpush1.xpose.msra.mxu0 0.0
    %448 = vmatprep.subr.mxu0 0.0
    %449 = vmatpush1.xpose.msra.mxu0 0.0
    %450 = vmatprep.subr.mxu0 0.0
    %451 = vmatpush1.xpose.msra.mxu0 0.0
    %452 = vmatprep.subr.mxu0 0.0
    %453 = vmatpush1.xpose.msra.mxu0 0.0
    %454 = vmatprep.subr.mxu0 0.0
    %455 = vmatpush1.xpose.msra.mxu0 0.0
    %456 = vmatprep.subr.mxu0 0.0
    %457 = vmatpush1.xpose.msra.mxu0 0.0
    %458 = vmatprep.subr.mxu0 0.0
    %459 = vmatpush1.xpose.msra.mxu0 0.0
    %460 = vmatprep.subr.mxu0 0.0
    %461 = vmatpush1.xpose.msra.mxu0 0.0
    %462 = vmatprep.subr.mxu0 0.0
    %463 = vmatpush1.xpose.msra.mxu0 0.0
    %464 = vmatprep.subr.mxu0 0.0
    %465 = vmatpush1.xpose.msra.mxu0 0.0
    %466 = vmatprep.subr.mxu0 0.0
    %467 = vmatpush1.xpose.msra.mxu0 0.0
    %468 = vmatprep.subr.mxu0 0.0
    %469 = vmatpush1.xpose.msra.mxu0 0.0
    %470 = vmatprep.subr.mxu0 0.0
    %471 = vmatpush1.xpose.msra.mxu0 0.0
    %472 = vmatprep.subr.mxu0 0.0
    %473 = vmatpush1.xpose.msra.mxu0 0.0
    %474 = vmatprep.subr.mxu0 0.0
    %475 = vmatpush1.xpose.msra.mxu0 0.0
    %476 = vmatprep.subr.mxu0 0.0
    %477 = vmatpush1.xpose.msra.mxu0 0.0
    %478 = vmatprep.subr.mxu0 0.0
    %479 = vmatpush1.xpose.msra.mxu0 0.0
    %480 = vmatprep.mubr.f32.mxu0 0.0
    %481 = vmatmul.mubr.f32.gmra.mrb[0].mxu0 %v405
    %v482 = vpop.f32.mrb[0].mxu0
    %v483 = vadd.f32 %v154, %v482
    %v484 = vpop.f32.mrb[0].mxu0
    %485 = vmatprep.mubr.f32.mxu0 0.0
    %486 = vmatmul.mubr.f32.gmra.mrb[0].mxu0 %v408
    %v487 = vpop.f32.mrb[0].mxu0
    %v488 = vadd.f32 %v155, %v487
    %v489 = vpop.f32.mrb[0].mxu0
    %490 = vdwg.mxu0
    %vm491 = vcmask 130048
    %v492 = vsel %vm491, %v483, -inf
    %493 = vmax.xlane.f32.xlu0 %v492
    %v494 = vpop.xlane.xlu0 %493
    %v495 = vsel %vm491, %v488, -inf
    %496 = vmax.xlane.f32.xlu0 %v495
    %v497 = vpop.xlane.xlu0 %496
    %v498 = vsub.f32 %v483, %v494
    %v499 = vsub.f32 %v488, %v497
    %v500 = vmul.f32 %v498, 1.442695
    %v501 = vpow.pop %v500
    %v502 = vmul.f32 %v499, 1.442695
    %v503 = vpow.pop %v502
    %v504 = vsel %vm491, %v501, 0.0
    %505 = vadd.xlane.f32.xlu0 %v504
    %v506 = vpop.xlane.xlu0 %505
    %v507 = vsel %vm491, %v503, 0.0
    %508 = vadd.xlane.f32.xlu0 %v507
    %v509 = vpop.xlane.xlu0 %508
    %v510 = vrcp.pop %v506
    %v511 = vrcp.pop %v509
    %v512 = vmul.f32 %v501, %v510
    %v513 = vmul.f32 %v503, %v511
    %v515 = vsel %vm491, %v512, 0
    %v518 = vsel %vm491, %v513, 0
    %520 = vmatprep.subr.mxu0 0.0
    %521 = vmatpush1.msra.mxu0 %v396
    %522 = vmatprep.subr.mxu0 0.0
    %523 = vmatpush1.msra.mxu0 %v401
    %524 = vmatprep.subr.mxu0 0.0
    %525 = vmatpush1.msra.mxu0 0.0
    %526 = vmatprep.subr.mxu0 0.0
    %527 = vmatpush1.msra.mxu0 0.0
    %528 = vmatprep.subr.mxu0 0.0
    %529 = vmatpush1.msra.mxu0 0.0
    %530 = vmatprep.subr.mxu0 0.0
    %531 = vmatpush1.msra.mxu0 0.0
    %532 = vmatprep.subr.mxu0 0.0
    %533 = vmatpush1.msra.mxu0 0.0
    %534 = vmatprep.subr.mxu0 0.0
    %535 = vmatpush1.msra.mxu0 0.0
    %536 = vmatprep.subr.mxu0 0.0
    %537 = vmatpush1.msra.mxu0 0.0
    %538 = vmatprep.subr.mxu0 0.0
    %539 = vmatpush1.msra.mxu0 0.0
    %540 = vmatprep.subr.mxu0 0.0
    %541 = vmatpush1.msra.mxu0 0.0
    %542 = vmatprep.subr.mxu0 0.0
    %543 = vmatpush1.msra.mxu0 0.0
    %544 = vmatprep.subr.mxu0 0.0
    %545 = vmatpush1.msra.mxu0 0.0
    %546 = vmatprep.subr.mxu0 0.0
    %547 = vmatpush1.msra.mxu0 0.0
    %548 = vmatprep.subr.mxu0 0.0
    %549 = vmatpush1.msra.mxu0 0.0
    %550 = vmatprep.subr.mxu0 0.0
    %551 = vmatpush1.msra.mxu0 0.0
    %552 = vmatprep.subr.mxu0 0.0
    %553 = vmatpush1.msra.mxu0 0.0
    %554 = vmatprep.subr.mxu0 0.0
    %555 = vmatpush1.msra.mxu0 0.0
    %556 = vmatprep.subr.mxu0 0.0
    %557 = vmatpush1.msra.mxu0 0.0
    %558 = vmatprep.subr.mxu0 0.0
    %559 = vmatpush1.msra.mxu0 0.0
    %560 = vmatprep.subr.mxu0 0.0
    %561 = vmatpush1.msra.mxu0 0.0
    %562 = vmatprep.subr.mxu0 0.0
    %563 = vmatpush1.msra.mxu0 0.0
    %564 = vmatprep.subr.mxu0 0.0
    %565 = vmatpush1.msra.mxu0 0.0
    %566 = vmatprep.subr.mxu0 0.0
    %567 = vmatpush1.msra.mxu0 0.0
    %568 = vmatprep.subr.mxu0 0.0
    %569 = vmatpush1.msra.mxu0 0.0
    %570 = vmatprep.subr.mxu0 0.0
    %571 = vmatpush1.msra.mxu0 0.0
    %572 = vmatprep.subr.mxu0 0.0
    %573 = vmatpush1.msra.mxu0 0.0
    %574 = vmatprep.subr.mxu0 0.0
    %575 = vmatpush1.msra.mxu0 0.0
    %576 = vmatprep.subr.mxu0 0.0
    %577 = vmatpush1.msra.mxu0 0.0
    %578 = vmatprep.subr.mxu0 0.0
    %579 = vmatpush1.msra.mxu0 0.0
    %580 = vmatprep.subr.mxu0 0.0
    %581 = vmatpush1.msra.mxu0 0.0
    %582 = vmatprep.subr.mxu0 0.0
    %583 = vmatpush1.msra.mxu0 0.0
    %584 = vmatprep.mubr.f32.mxu0 0.0
    %585 = vmatmul.mubr.f32.gmra.mrb[0].mxu0 %v515
    %v586 = vpop.f32.mrb[0].mxu0
    %v587 = vadd.f32 0.0, %v586
    %v588 = vpop.f32.mrb[0].mxu0
    %589 = vmatprep.mubr.f32.mxu0 0.0
    %590 = vmatmul.mubr.f32.gmra.mrb[0].mxu0 %v518
    %v591 = vpop.f32.mrb[0].mxu0
    %v592 = vadd.f32 0.0, %v591
    %v593 = vpop.f32.mrb[0].mxu0
    %594 = vdwg.mxu0
    %s595 = scalar_lea.vmem %s2, 32
    %v596 = vld [vmem:[%s595] sm:$0xff]
    %v597 = vld [vmem:[%s595 + $0x8] sm:$0xff]
    %v598 = vld [vmem:[%s595 + $0x10] sm:$0xff]
    %v599 = vld [vmem:[%s595 + $0x18] sm:$0xff]
    %s600 = scalar_lea.vmem %s3, 32
    %v601 = vld [vmem:[%s600] sm:$0xff]
    %v602 = vld [vmem:[%s600 + $0x8] sm:$0xff]
    %v603 = vld [vmem:[%s600 + $0x10] sm:$0xff]
    %v604 = vld [vmem:[%s600 + $0x18] sm:$0xff]
    %s605 = scalar_lea.vmem [#allocation7], 32
    %v606 = vld [vmem:[%s605] sm:$0xff]
    %v607 = vld [vmem:[%s605 + $0x8] sm:$0xff]
    %v608 = vld [vmem:[%s605 + $0x10] sm:$0xff]
    %v609 = vld [vmem:[%s605 + $0x18] sm:$0xff]
    %s610 = scalar_lea.vmem [#allocation8], 32
    %v611 = vld [vmem:[%s610] sm:$0xff]
    %v612 = vld [vmem:[%s610 + $0x8] sm:$0xff]
    %v613 = vld [vmem:[%s610 + $0x10] sm:$0xff]
    %v614 = vld [vmem:[%s610 + $0x18] sm:$0xff]
    %615 = vmatprep.subr.mxu0 0.0
    %616 = vmatpush1.msra.mxu0 %v596
    %617 = vmatprep.subr.mxu0 0.0
    %618 = vmatpush1.msra.mxu0 %v597
    %619 = vmatprep.subr.mxu0 0.0
    %620 = vmatpush1.msra.mxu0 %v598
    %621 = vmatprep.subr.mxu0 0.0
    %622 = vmatpush1.msra.mxu0 %v599
    %623 = vmatprep.subr.mxu0 0.0
    %624 = vmatpush1.msra.mxu0 0.0
    %625 = vmatprep.subr.mxu0 0.0
    %626 = vmatpush1.msra.mxu0 0.0
    %627 = vmatprep.subr.mxu0 0.0
    %628 = vmatpush1.msra.mxu0 0.0
    %629 = vmatprep.subr.mxu0 0.0
    %630 = vmatpush1.msra.mxu0 0.0
    %631 = vmatprep.subr.mxu0 0.0
    %632 = vmatpush1.msra.mxu0 0.0
    %633 = vmatprep.subr.mxu0 0.0
    %634 = vmatpush1.msra.mxu0 0.0
    %635 = vmatprep.subr.mxu0 0.0
    %636 = vmatpush1.msra.mxu0 0.0
    %637 = vmatprep.subr.mxu0 0.0
    %638 = vmatpush1.msra.mxu0 0.0
    %639 = vmatprep.subr.mxu0 0.0
    %640 = vmatpush1.msra.mxu0 0.0
    %641 = vmatprep.subr.mxu0 0.0
    %642 = vmatpush1.msra.mxu0 0.0
    %643 = vmatprep.subr.mxu0 0.0
    %644 = vmatpush1.msra.mxu0 0.0
    %645 = vmatprep.subr.mxu0 0.0
    %646 = vmatpush1.msra.mxu0 0.0
    %647 = vmatprep.subr.mxu0 0.0
    %648 = vmatpush1.msra.mxu0 0.0
    %649 = vmatprep.subr.mxu0 0.0
    %650 = vmatpush1.msra.mxu0 0.0
    %651 = vmatprep.subr.mxu0 0.0
    %652 = vmatpush1.msra.mxu0 0.0
    %653 = vmatprep.subr.mxu0 0.0
    %654 = vmatpush1.msra.mxu0 0.0
    %655 = vmatprep.subr.mxu0 0.0
    %656 = vmatpush1.msra.mxu0 0.0
    %657 = vmatprep.subr.mxu0 0.0
    %658 = vmatpush1.msra.mxu0 0.0
    %659 = vmatprep.subr.mxu0 0.0
    %660 = vmatpush1.msra.mxu0 0.0
    %661 = vmatprep.subr.mxu0 0.0
    %662 = vmatpush1.msra.mxu0 0.0
    %663 = vmatprep.subr.mxu0 0.0
    %664 = vmatpush1.msra.mxu0 0.0
    %665 = vmatprep.subr.mxu0 0.0
    %666 = vmatpush1.msra.mxu0 0.0
    %667 = vmatprep.subr.mxu0 0.0
    %668 = vmatpush1.msra.mxu0 0.0
    %669 = vmatprep.subr.mxu0 0.0
    %670 = vmatpush1.msra.mxu0 0.0
    %671 = vmatprep.subr.mxu0 0.0
    %672 = vmatpush1.msra.mxu0 0.0
    %673 = vmatprep.subr.mxu0 0.0
    %674 = vmatpush1.msra.mxu0 0.0
    %675 = vmatprep.subr.mxu0 0.0
    %676 = vmatpush1.msra.mxu0 0.0
    %677 = vmatprep.subr.mxu0 0.0
    %678 = vmatpush1.msra.mxu0 0.0
    %679 = vmatprep.mubr.f32.mxu0 0.0
    %680 = vmatmul.mubr.f32.gmra.mrb[0].mxu0 %v174
    %v681 = vpop.f32.mrb[0].mxu0
    %v682 = vadd.f32 0.0, %v681
    %v683 = vpop.f32.mrb[0].mxu0
    %684 = vmatprep.mubr.f32.mxu0 0.0
    %685 = vmatmul.mubr.f32.gmra.mrb[0].mxu0 %v177
    %v686 = vpop.f32.mrb[0].mxu0
    %v687 = vadd.f32 0.0, %v686
    %v688 = vpop.f32.mrb[0].mxu0
    %689 = vdwg.mxu0
    %690 = vmatprep.subr.mxu0 0.0
    %691 = vmatpush1.msra.mxu0 %v601
    %692 = vmatprep.subr.mxu0 0.0
    %693 = vmatpush1.msra.mxu0 %v602
    %694 = vmatprep.subr.mxu0 0.0
    %695 = vmatpush1.msra.mxu0 %v603
    %696 = vmatprep.subr.mxu0 0.0
    %697 = vmatpush1.msra.mxu0 %v604
    %698 = vmatprep.subr.mxu0 0.0
    %699 = vmatpush1.msra.mxu0 0.0
    %700 = vmatprep.subr.mxu0 0.0
    %701 = vmatpush1.msra.mxu0 0.0
    %702 = vmatprep.subr.mxu0 0.0
    %703 = vmatpush1.msra.mxu0 0.0
    %704 = vmatprep.subr.mxu0 0.0
    %705 = vmatpush1.msra.mxu0 0.0
    %706 = vmatprep.subr.mxu0 0.0
    %707 = vmatpush1.msra.mxu0 0.0
    %708 = vmatprep.subr.mxu0 0.0
    %709 = vmatpush1.msra.mxu0 0.0
    %710 = vmatprep.subr.mxu0 0.0
    %711 = vmatpush1.msra.mxu0 0.0
    %712 = vmatprep.subr.mxu0 0.0
    %713 = vmatpush1.msra.mxu0 0.0
    %714 = vmatprep.subr.mxu0 0.0
    %715 = vmatpush1.msra.mxu0 0.0
    %716 = vmatprep.subr.mxu0 0.0
    %717 = vmatpush1.msra.mxu0 0.0
    %718 = vmatprep.subr.mxu0 0.0
    %719 = vmatpush1.msra.mxu0 0.0
    %720 = vmatprep.subr.mxu0 0.0
    %721 = vmatpush1.msra.mxu0 0.0
    %722 = vmatprep.subr.mxu0 0.0
    %723 = vmatpush1.msra.mxu0 0.0
    %724 = vmatprep.subr.mxu0 0.0
    %725 = vmatpush1.msra.mxu0 0.0
    %726 = vmatprep.subr.mxu0 0.0
    %727 = vmatpush1.msra.mxu0 0.0
    %728 = vmatprep.subr.mxu0 0.0
    %729 = vmatpush1.msra.mxu0 0.0
    %730 = vmatprep.subr.mxu0 0.0
    %731 = vmatpush1.msra.mxu0 0.0
    %732 = vmatprep.subr.mxu0 0.0
    %733 = vmatpush1.msra.mxu0 0.0
    %734 = vmatprep.subr.mxu0 0.0
    %735 = vmatpush1.msra.mxu0 0.0
    %736 = vmatprep.subr.mxu0 0.0
    %737 = vmatpush1.msra.mxu0 0.0
    %738 = vmatprep.subr.mxu0 0.0
    %739 = vmatpush1.msra.mxu0 0.0
    %740 = vmatprep.subr.mxu0 0.0
    %741 = vmatpush1.msra.mxu0 0.0
    %742 = vmatprep.subr.mxu0 0.0
    %743 = vmatpush1.msra.mxu0 0.0
    %744 = vmatprep.subr.mxu0 0.0
    %745 = vmatpush1.msra.mxu0 0.0
    %746 = vmatprep.subr.mxu0 0.0
    %747 = vmatpush1.msra.mxu0 0.0
    %748 = vmatprep.subr.mxu0 0.0
    %749 = vmatpush1.msra.mxu0 0.0
    %750 = vmatprep.subr.mxu0 0.0
    %751 = vmatpush1.msra.mxu0 0.0
    %752 = vmatprep.subr.mxu0 0.0
    %753 = vmatpush1.msra.mxu0 0.0
    %754 = vmatprep.mubr.f32.mxu0 0.0
    %755 = vmatmul.mubr.f32.gmra.mrb[0].mxu0 %v174
    %v756 = vpop.f32.mrb[0].mxu0
    %v757 = vadd.f32 0.0, %v756
    %v758 = vpop.f32.mrb[0].mxu0
    %759 = vmatprep.mubr.f32.mxu0 0.0
    %760 = vmatmul.mubr.f32.gmra.mrb[0].mxu0 %v177
    %v761 = vpop.f32.mrb[0].mxu0
    %v762 = vadd.f32 0.0, %v761
    %v763 = vpop.f32.mrb[0].mxu0
    %764 = vdwg.mxu0
    %765 = vmatprep.subr.mxu0 0.0
    %766 = vmatpush1.msra.mxu0 %v606
    %767 = vmatprep.subr.mxu0 0.0
    %768 = vmatpush1.msra.mxu0 %v607
    %769 = vmatprep.subr.mxu0 0.0
    %770 = vmatpush1.msra.mxu0 %v608
    %771 = vmatprep.subr.mxu0 0.0
    %772 = vmatpush1.msra.mxu0 %v609
    %773 = vmatprep.subr.mxu0 0.0
    %774 = vmatpush1.msra.mxu0 0.0
    %775 = vmatprep.subr.mxu0 0.0
    %776 = vmatpush1.msra.mxu0 0.0
    %777 = vmatprep.subr.mxu0 0.0
    %778 = vmatpush1.msra.mxu0 0.0
    %779 = vmatprep.subr.mxu0 0.0
    %780 = vmatpush1.msra.mxu0 0.0
    %781 = vmatprep.subr.mxu0 0.0
    %782 = vmatpush1.msra.mxu0 0.0
    %783 = vmatprep.subr.mxu0 0.0
    %784 = vmatpush1.msra.mxu0 0.0
    %785 = vmatprep.subr.mxu0 0.0
    %786 = vmatpush1.msra.mxu0 0.0
    %787 = vmatprep.subr.mxu0 0.0
    %788 = vmatpush1.msra.mxu0 0.0
    %789 = vmatprep.subr.mxu0 0.0
    %790 = vmatpush1.msra.mxu0 0.0
    %791 = vmatprep.subr.mxu0 0.0
    %792 = vmatpush1.msra.mxu0 0.0
    %793 = vmatprep.subr.mxu0 0.0
    %794 = vmatpush1.msra.mxu0 0.0
    %795 = vmatprep.subr.mxu0 0.0
    %796 = vmatpush1.msra.mxu0 0.0
    %797 = vmatprep.subr.mxu0 0.0
    %798 = vmatpush1.msra.mxu0 0.0
    %799 = vmatprep.subr.mxu0 0.0
    %800 = vmatpush1.msra.mxu0 0.0
    %801 = vmatprep.subr.mxu0 0.0
    %802 = vmatpush1.msra.mxu0 0.0
    %803 = vmatprep.subr.mxu0 0.0
    %804 = vmatpush1.msra.mxu0 0.0
    %805 = vmatprep.subr.mxu0 0.0
    %806 = vmatpush1.msra.mxu0 0.0
    %807 = vmatprep.subr.mxu0 0.0
    %808 = vmatpush1.msra.mxu0 0.0
    %809 = vmatprep.subr.mxu0 0.0
    %810 = vmatpush1.msra.mxu0 0.0
    %811 = vmatprep.subr.mxu0 0.0
    %812 = vmatpush1.msra.mxu0 0.0
    %813 = vmatprep.subr.mxu0 0.0
    %814 = vmatpush1.msra.mxu0 0.0
    %815 = vmatprep.subr.mxu0 0.0
    %816 = vmatpush1.msra.mxu0 0.0
    %817 = vmatprep.subr.mxu0 0.0
    %818 = vmatpush1.msra.mxu0 0.0
    %819 = vmatprep.subr.mxu0 0.0
    %820 = vmatpush1.msra.mxu0 0.0
    %821 = vmatprep.subr.mxu0 0.0
    %822 = vmatpush1.msra.mxu0 0.0
    %823 = vmatprep.subr.mxu0 0.0
    %824 = vmatpush1.msra.mxu0 0.0
    %825 = vmatprep.subr.mxu0 0.0
    %826 = vmatpush1.msra.mxu0 0.0
    %827 = vmatprep.subr.mxu0 0.0
    %828 = vmatpush1.msra.mxu0 0.0
    %829 = vmatprep.mubr.f32.mxu0 0.0
    %830 = vmatmul.mubr.f32.gmra.mrb[0].mxu0 %v174
    %v831 = vpop.f32.mrb[0].mxu0
    %v832 = vadd.f32 0.0, %v831
    %v833 = vpop.f32.mrb[0].mxu0
    %834 = vmatprep.mubr.f32.mxu0 0.0
    %835 = vmatmul.mubr.f32.gmra.mrb[0].mxu0 %v177
    %v836 = vpop.f32.mrb[0].mxu0
    %v837 = vadd.f32 0.0, %v836
    %v838 = vpop.f32.mrb[0].mxu0
    %839 = vdwg.mxu0
    %v841 = vsel %vm172, %v682, 0
    %v844 = vsel %vm172, %v687, 0
    %v847 = vsel %vm172, %v757, 0
    %v850 = vsel %vm172, %v762, 0
    %852 = vmatprep.subr.mxu0 0.0
    %853 = vmatpush1.xpose.msra.mxu0 %v847
    %854 = vmatprep.subr.mxu0 0.0
    %855 = vmatpush1.xpose.msra.mxu0 %v850
    %856 = vmatprep.subr.mxu0 0.0
    %857 = vmatpush1.xpose.msra.mxu0 0.0
    %858 = vmatprep.subr.mxu0 0.0
    %859 = vmatpush1.xpose.msra.mxu0 0.0
    %860 = vmatprep.subr.mxu0 0.0
    %861 = vmatpush1.xpose.msra.mxu0 0.0
    %862 = vmatprep.subr.mxu0 0.0
    %863 = vmatpush1.xpose.msra.mxu0 0.0
    %864 = vmatprep.subr.mxu0 0.0
    %865 = vmatpush1.xpose.msra.mxu0 0.0
    %866 = vmatprep.subr.mxu0 0.0
    %867 = vmatpush1.xpose.msra.mxu0 0.0
    %868 = vmatprep.subr.mxu0 0.0
    %869 = vmatpush1.xpose.msra.mxu0 0.0
    %870 = vmatprep.subr.mxu0 0.0
    %871 = vmatpush1.xpose.msra.mxu0 0.0
    %872 = vmatprep.subr.mxu0 0.0
    %873 = vmatpush1.xpose.msra.mxu0 0.0
    %874 = vmatprep.subr.mxu0 0.0
    %875 = vmatpush1.xpose.msra.mxu0 0.0
    %876 = vmatprep.subr.mxu0 0.0
    %877 = vmatpush1.xpose.msra.mxu0 0.0
    %878 = vmatprep.subr.mxu0 0.0
    %879 = vmatpush1.xpose.msra.mxu0 0.0
    %880 = vmatprep.subr.mxu0 0.0
    %881 = vmatpush1.xpose.msra.mxu0 0.0
    %882 = vmatprep.subr.mxu0 0.0
    %883 = vmatpush1.xpose.msra.mxu0 0.0
    %884 = vmatprep.subr.mxu0 0.0
    %885 = vmatpush1.xpose.msra.mxu0 0.0
    %886 = vmatprep.subr.mxu0 0.0
    %887 = vmatpush1.xpose.msra.mxu0 0.0
    %888 = vmatprep.subr.mxu0 0.0
    %889 = vmatpush1.xpose.msra.mxu0 0.0
    %890 = vmatprep.subr.mxu0 0.0
    %891 = vmatpush1.xpose.msra.mxu0 0.0
    %892 = vmatprep.subr.mxu0 0.0
    %893 = vmatpush1.xpose.msra.mxu0 0.0
    %894 = vmatprep.subr.mxu0 0.0
    %895 = vmatpush1.xpose.msra.mxu0 0.0
    %896 = vmatprep.subr.mxu0 0.0
    %897 = vmatpush1.xpose.msra.mxu0 0.0
    %898 = vmatprep.subr.mxu0 0.0
    %899 = vmatpush1.xpose.msra.mxu0 0.0
    %900 = vmatprep.subr.mxu0 0.0
    %901 = vmatpush1.xpose.msra.mxu0 0.0
    %902 = vmatprep.subr.mxu0 0.0
    %903 = vmatpush1.xpose.msra.mxu0 0.0
    %904 = vmatprep.subr.mxu0 0.0
    %905 = vmatpush1.xpose.msra.mxu0 0.0
    %906 = vmatprep.subr.mxu0 0.0
    %907 = vmatpush1.xpose.msra.mxu0 0.0
    %908 = vmatprep.subr.mxu0 0.0
    %909 = vmatpush1.xpose.msra.mxu0 0.0
    %910 = vmatprep.subr.mxu0 0.0
    %911 = vmatpush1.xpose.msra.mxu0 0.0
    %912 = vmatprep.subr.mxu0 0.0
    %913 = vmatpush1.xpose.msra.mxu0 0.0
    %914 = vmatprep.subr.mxu0 0.0
    %915 = vmatpush1.xpose.msra.mxu0 0.0
    %916 = vmatprep.mubr.f32.mxu0 0.0
    %917 = vmatmul.mubr.f32.gmra.mrb[0].mxu0 %v841
    %v918 = vpop.f32.mrb[0].mxu0
    %v919 = vadd.f32 %v154, %v918
    %v920 = vpop.f32.mrb[0].mxu0
    %921 = vmatprep.mubr.f32.mxu0 0.0
    %922 = vmatmul.mubr.f32.gmra.mrb[0].mxu0 %v844
    %v923 = vpop.f32.mrb[0].mxu0
    %v924 = vadd.f32 %v155, %v923
    %v925 = vpop.f32.mrb[0].mxu0
    %926 = vdwg.mxu0
    %v927 = vsel %vm491, %v919, -inf
    %928 = vmax.xlane.f32.xlu0 %v927
    %v929 = vpop.xlane.xlu0 %928
    %v930 = vsel %vm491, %v924, -inf
    %931 = vmax.xlane.f32.xlu0 %v930
    %v932 = vpop.xlane.xlu0 %931
    %v933 = vsub.f32 %v919, %v929
    %v934 = vsub.f32 %v924, %v932
    %v935 = vmul.f32 %v933, 1.442695
    %v936 = vpow.pop %v935
    %v937 = vmul.f32 %v934, 1.442695
    %v938 = vpow.pop %v937
    %v939 = vsel %vm491, %v936, 0.0
    %940 = vadd.xlane.f32.xlu0 %v939
    %v941 = vpop.xlane.xlu0 %940
    %v942 = vsel %vm491, %v938, 0.0
    %943 = vadd.xlane.f32.xlu0 %v942
    %v944 = vpop.xlane.xlu0 %943
    %v945 = vrcp.pop %v941
    %v946 = vrcp.pop %v944
    %v947 = vmul.f32 %v936, %v945
    %v948 = vmul.f32 %v938, %v946
    %v950 = vsel %vm491, %v947, 0
    %v953 = vsel %vm491, %v948, 0
    %955 = vmatprep.subr.mxu0 0.0
    %956 = vmatpush1.msra.mxu0 %v832
    %957 = vmatprep.subr.mxu0 0.0
    %958 = vmatpush1.msra.mxu0 %v837
    %959 = vmatprep.subr.mxu0 0.0
    %960 = vmatpush1.msra.mxu0 0.0
    %961 = vmatprep.subr.mxu0 0.0
    %962 = vmatpush1.msra.mxu0 0.0
    %963 = vmatprep.subr.mxu0 0.0
    %964 = vmatpush1.msra.mxu0 0.0
    %965 = vmatprep.subr.mxu0 0.0
    %966 = vmatpush1.msra.mxu0 0.0
    %967 = vmatprep.subr.mxu0 0.0
    %968 = vmatpush1.msra.mxu0 0.0
    %969 = vmatprep.subr.mxu0 0.0
    %970 = vmatpush1.msra.mxu0 0.0
    %971 = vmatprep.subr.mxu0 0.0
    %972 = vmatpush1.msra.mxu0 0.0
    %973 = vmatprep.subr.mxu0 0.0
    %974 = vmatpush1.msra.mxu0 0.0
    %975 = vmatprep.subr.mxu0 0.0
    %976 = vmatpush1.msra.mxu0 0.0
    %977 = vmatprep.subr.mxu0 0.0
    %978 = vmatpush1.msra.mxu0 0.0
    %979 = vmatprep.subr.mxu0 0.0
    %980 = vmatpush1.msra.mxu0 0.0
    %981 = vmatprep.subr.mxu0 0.0
    %982 = vmatpush1.msra.mxu0 0.0
    %983 = vmatprep.subr.mxu0 0.0
    %984 = vmatpush1.msra.mxu0 0.0
    %985 = vmatprep.subr.mxu0 0.0
    %986 = vmatpush1.msra.mxu0 0.0
    %987 = vmatprep.subr.mxu0 0.0
    %988 = vmatpush1.msra.mxu0 0.0
    %989 = vmatprep.subr.mxu0 0.0
    %990 = vmatpush1.msra.mxu0 0.0
    %991 = vmatprep.subr.mxu0 0.0
    %992 = vmatpush1.msra.mxu0 0.0
    %993 = vmatprep.subr.mxu0 0.0
    %994 = vmatpush1.msra.mxu0 0.0
    %995 = vmatprep.subr.mxu0 0.0
    %996 = vmatpush1.msra.mxu0 0.0
    %997 = vmatprep.subr.mxu0 0.0
    %998 = vmatpush1.msra.mxu0 0.0
    %999 = vmatprep.subr.mxu0 0.0
    %1000 = vmatpush1.msra.mxu0 0.0
    %1001 = vmatprep.subr.mxu0 0.0
    %1002 = vmatpush1.msra.mxu0 0.0
    %1003 = vmatprep.subr.mxu0 0.0
    %1004 = vmatpush1.msra.mxu0 0.0
    %1005 = vmatprep.subr.mxu0 0.0
    %1006 = vmatpush1.msra.mxu0 0.0
    %1007 = vmatprep.subr.mxu0 0.0
    %1008 = vmatpush1.msra.mxu0 0.0
    %1009 = vmatprep.subr.mxu0 0.0
    %1010 = vmatpush1.msra.mxu0 0.0
    %1011 = vmatprep.subr.mxu0 0.0
    %1012 = vmatpush1.msra.mxu0 0.0
    %1013 = vmatprep.subr.mxu0 0.0
    %1014 = vmatpush1.msra.mxu0 0.0
    %1015 = vmatprep.subr.mxu0 0.0
    %1016 = vmatpush1.msra.mxu0 0.0
    %1017 = vmatprep.subr.mxu0 0.0
    %1018 = vmatpush1.msra.mxu0 0.0
    %1019 = vmatprep.mubr.f32.mxu0 0.0
    %1020 = vmatmul.mubr.f32.gmra.mrb[0].mxu0 %v950
    %v1021 = vpop.f32.mrb[0].mxu0
    %v1022 = vadd.f32 0.0, %v1021
    %v1023 = vpop.f32.mrb[0].mxu0
    %1024 = vmatprep.mubr.f32.mxu0 0.0
    %1025 = vmatmul.mubr.f32.gmra.mrb[0].mxu0 %v953
    %v1026 = vpop.f32.mrb[0].mxu0
    %v1027 = vadd.f32 0.0, %v1026
    %v1028 = vpop.f32.mrb[0].mxu0
    %1029 = vdwg.mxu0
    %v1031 = vsel %vm172, %v1022, 0
    %v1034 = vsel %vm172, %v1027, 0
    %1036 = vmatprep.subr.mxu0 0.0
    %1037 = vmatpush1.msra.mxu0 %v611
    %1038 = vmatprep.subr.mxu0 0.0
    %1039 = vmatpush1.msra.mxu0 %v612
    %1040 = vmatprep.subr.mxu0 0.0
    %1041 = vmatpush1.msra.mxu0 %v613
    %1042 = vmatprep.subr.mxu0 0.0
    %1043 = vmatpush1.msra.mxu0 %v614
    %1044 = vmatprep.subr.mxu0 0.0
    %1045 = vmatpush1.msra.mxu0 0.0
    %1046 = vmatprep.subr.mxu0 0.0
    %1047 = vmatpush1.msra.mxu0 0.0
    %1048 = vmatprep.subr.mxu0 0.0
    %1049 = vmatpush1.msra.mxu0 0.0
    %1050 = vmatprep.subr.mxu0 0.0
    %1051 = vmatpush1.msra.mxu0 0.0
    %1052 = vmatprep.subr.mxu0 0.0
    %1053 = vmatpush1.msra.mxu0 0.0
    %1054 = vmatprep.subr.mxu0 0.0
    %1055 = vmatpush1.msra.mxu0 0.0
    %1056 = vmatprep.subr.mxu0 0.0
    %1057 = vmatpush1.msra.mxu0 0.0
    %1058 = vmatprep.subr.mxu0 0.0
    %1059 = vmatpush1.msra.mxu0 0.0
    %1060 = vmatprep.subr.mxu0 0.0
    %1061 = vmatpush1.msra.mxu0 0.0
    %1062 = vmatprep.subr.mxu0 0.0
    %1063 = vmatpush1.msra.mxu0 0.0
    %1064 = vmatprep.subr.mxu0 0.0
    %1065 = vmatpush1.msra.mxu0 0.0
    %1066 = vmatprep.subr.mxu0 0.0
    %1067 = vmatpush1.msra.mxu0 0.0
    %1068 = vmatprep.subr.mxu0 0.0
    %1069 = vmatpush1.msra.mxu0 0.0
    %1070 = vmatprep.subr.mxu0 0.0
    %1071 = vmatpush1.msra.mxu0 0.0
    %1072 = vmatprep.subr.mxu0 0.0
    %1073 = vmatpush1.msra.mxu0 0.0
    %1074 = vmatprep.subr.mxu0 0.0
    %1075 = vmatpush1.msra.mxu0 0.0
    %1076 = vmatprep.subr.mxu0 0.0
    %1077 = vmatpush1.msra.mxu0 0.0
    %1078 = vmatprep.subr.mxu0 0.0
    %1079 = vmatpush1.msra.mxu0 0.0
    %1080 = vmatprep.subr.mxu0 0.0
    %1081 = vmatpush1.msra.mxu0 0.0
    %1082 = vmatprep.subr.mxu0 0.0
    %1083 = vmatpush1.msra.mxu0 0.0
    %1084 = vmatprep.subr.mxu0 0.0
    %1085 = vmatpush1.msra.mxu0 0.0
    %1086 = vmatprep.subr.mxu0 0.0
    %1087 = vmatpush1.msra.mxu0 0.0
    %1088 = vmatprep.subr.mxu0 0.0
    %1089 = vmatpush1.msra.mxu0 0.0
    %1090 = vmatprep.subr.mxu0 0.0
    %1091 = vmatpush1.msra.mxu0 0.0
    %1092 = vmatprep.subr.mxu0 0.0
    %1093 = vmatpush1.msra.mxu0 0.0
    %1094 = vmatprep.subr.mxu0 0.0
    %1095 = vmatpush1.msra.mxu0 0.0
    %1096 = vmatprep.subr.mxu0 0.0
    %1097 = vmatpush1.msra.mxu0 0.0
    %1098 = vmatprep.subr.mxu0 0.0
    %1099 = vmatpush1.msra.mxu0 0.0
    %1100 = vmatprep.mubr.f32.mxu0 0.0
    %1101 = vmatmul.mubr.f32.gmra.mrb[0].mxu0 %v1031
    %v1102 = vpop.f32.mrb[0].mxu0
    %v1103 = vadd.f32 0.0, %v1102
    %v1104 = vpop.f32.mrb[0].mxu0
    %1105 = vmatprep.mubr.f32.mxu0 0.0
    %1106 = vmatmul.mubr.f32.gmra.mrb[0].mxu0 %v1034
    %v1107 = vpop.f32.mrb[0].mxu0
    %v1108 = vadd.f32 0.0, %v1107
    %v1109 = vpop.f32.mrb[0].mxu0
    %1110 = vdwg.mxu0
    %v1112 = vsel %vm172, %v587, 0
    %v1115 = vsel %vm172, %v592, 0
    %1117 = vmatprep.subr.mxu0 0.0
    %1118 = vmatpush1.msra.mxu0 %v168
    %1119 = vmatprep.subr.mxu0 0.0
    %1120 = vmatpush1.msra.mxu0 %v169
    %1121 = vmatprep.subr.mxu0 0.0
    %1122 = vmatpush1.msra.mxu0 %v170
    %1123 = vmatprep.subr.mxu0 0.0
    %1124 = vmatpush1.msra.mxu0 %v171
    %1125 = vmatprep.subr.mxu0 0.0
    %1126 = vmatpush1.msra.mxu0 0.0
    %1127 = vmatprep.subr.mxu0 0.0
    %1128 = vmatpush1.msra.mxu0 0.0
    %1129 = vmatprep.subr.mxu0 0.0
    %1130 = vmatpush1.msra.mxu0 0.0
    %1131 = vmatprep.subr.mxu0 0.0
    %1132 = vmatpush1.msra.mxu0 0.0
    %1133 = vmatprep.subr.mxu0 0.0
    %1134 = vmatpush1.msra.mxu0 0.0
    %1135 = vmatprep.subr.mxu0 0.0
    %1136 = vmatpush1.msra.mxu0 0.0
    %1137 = vmatprep.subr.mxu0 0.0
    %1138 = vmatpush1.msra.mxu0 0.0
    %1139 = vmatprep.subr.mxu0 0.0
    %1140 = vmatpush1.msra.mxu0 0.0
    %1141 = vmatprep.subr.mxu0 0.0
    %1142 = vmatpush1.msra.mxu0 0.0
    %1143 = vmatprep.subr.mxu0 0.0
    %1144 = vmatpush1.msra.mxu0 0.0
    %1145 = vmatprep.subr.mxu0 0.0
    %1146 = vmatpush1.msra.mxu0 0.0
    %1147 = vmatprep.subr.mxu0 0.0
    %1148 = vmatpush1.msra.mxu0 0.0
    %1149 = vmatprep.subr.mxu0 0.0
    %1150 = vmatpush1.msra.mxu0 0.0
    %1151 = vmatprep.subr.mxu0 0.0
    %1152 = vmatpush1.msra.mxu0 0.0
    %1153 = vmatprep.subr.mxu0 0.0
    %1154 = vmatpush1.msra.mxu0 0.0
    %1155 = vmatprep.subr.mxu0 0.0
    %1156 = vmatpush1.msra.mxu0 0.0
    %1157 = vmatprep.subr.mxu0 0.0
    %1158 = vmatpush1.msra.mxu0 0.0
    %1159 = vmatprep.subr.mxu0 0.0
    %1160 = vmatpush1.msra.mxu0 0.0
    %1161 = vmatprep.subr.mxu0 0.0
    %1162 = vmatpush1.msra.mxu0 0.0
    %1163 = vmatprep.subr.mxu0 0.0
    %1164 = vmatpush1.msra.mxu0 0.0
    %1165 = vmatprep.subr.mxu0 0.0
    %1166 = vmatpush1.msra.mxu0 0.0
    %1167 = vmatprep.subr.mxu0 0.0
    %1168 = vmatpush1.msra.mxu0 0.0
    %1169 = vmatprep.subr.mxu0 0.0
    %1170 = vmatpush1.msra.mxu0 0.0
    %1171 = vmatprep.subr.mxu0 0.0
    %1172 = vmatpush1.msra.mxu0 0.0
    %1173 = vmatprep.subr.mxu0 0.0
    %1174 = vmatpush1.msra.mxu0 0.0
    %1175 = vmatprep.subr.mxu0 0.0
    %1176 = vmatpush1.msra.mxu0 0.0
    %1177 = vmatprep.subr.mxu0 0.0
    %1178 = vmatpush1.msra.mxu0 0.0
    %1179 = vmatprep.subr.mxu0 0.0
    %1180 = vmatpush1.msra.mxu0 0.0
    %1181 = vmatprep.mubr.f32.mxu0 0.0
    %1182 = vmatmul.mubr.f32.gmra.mrb[0].mxu0 %v1112
    %v1183 = vpop.f32.mrb[0].mxu0
    %v1184 = vadd.f32 %v1103, %v1183
    %v1185 = vpop.f32.mrb[0].mxu0
    %1186 = vmatprep.mubr.f32.mxu0 0.0
    %1187 = vmatmul.mubr.f32.gmra.mrb[0].mxu0 %v1115
    %v1188 = vpop.f32.mrb[0].mxu0
    %v1189 = vadd.f32 %v1108, %v1188
    %v1190 = vpop.f32.mrb[0].mxu0
    %1191 = vdwg.mxu0
    %v1192 = vld [vmem:[%s6] sm:$0x1]
    %v1194 = vlaneseq
    %v1195 = vshrl.u32 %v1194, 7
    %v1196 = vsub.s32 0, %v1195
    %v1197 = vrot.slane %v1192, %v1196
    %v1199 = vadd.f32 %v1184, %v1197
    %v1200 = vadd.f32 %v1189, %v1197
    %v1201 = vadd.f32 %v1199, %v152
    %v1202 = vadd.f32 %v1200, %v153
    %v1203 = vld [vmem:[#allocation10] sm:$0x1]
    %v1204 = vld [vmem:[#allocation11] sm:$0x1]
    %v1205 = vsel %vm172, %v1201, 0.0
    %1206 = vadd.xlane.f32.xlu0 %v1205
    %v1207 = vpop.xlane.xlu0 %1206
    %v1208 = vsel %vm172, %v1202, 0.0
    %1209 = vadd.xlane.f32.xlu0 %v1208
    %v1210 = vpop.xlane.xlu0 %1209
    %v1211 = vrcp.pop 32.0
    %v1212 = vmul.f32 %v1207, %v1211
    %v1213 = vmul.f32 %v1210, %v1211
    %v1214 = vsub.f32 %v1201, %v1212
    %v1215 = vsub.f32 %v1202, %v1213
    %v1216 = vmul.f32 %v1214, %v1214
    %v1217 = vmul.f32 %v1215, %v1215
    %v1218 = vsel %vm172, %v1216, 0.0
    %1219 = vadd.xlane.f32.xlu0 %v1218
    %v1220 = vpop.xlane.xlu0 %1219
    %v1221 = vsel %vm172, %v1217, 0.0
    %1222 = vadd.xlane.f32.xlu0 %v1221
    %v1223 = vpop.xlane.xlu0 %1222
    %v1224 = vmul.f32 %v1220, %v1211
    %v1225 = vmul.f32 %v1223, %v1211
    %v1226 = vadd.f32 %v1224, 1e-05
    %v1227 = vadd.f32 %v1225, 1e-05
    %v1228 = vrsqrt.pop %v1226
    %v1229 = vrsqrt.pop %v1227
    %v1230 = vmul.f32 %v1214, %v1228
    %v1231 = vmul.f32 %v1215, %v1229
    %v1233 = vlaneseq
    %v1234 = vshrl.u32 %v1233, 7
    %v1235 = vsub.s32 0, %v1234
    %v1236 = vrot.slane %v1203, %v1235
    %v1238 = vmul.f32 %v1230, %v1236
    %v1239 = vmul.f32 %v1231, %v1236
    %v1241 = vlaneseq
    %v1242 = vshrl.u32 %v1241, 7
    %v1243 = vsub.s32 0, %v1242
    %v1244 = vrot.slane %v1204, %v1243
    %v1246 = vadd.f32 %v1238, %v1244
    %v1247 = vadd.f32 %v1239, %v1244
    %v1248 = vld [vmem:[%s11] sm:$0xff]
    %v1249 = vld [vmem:[%s11 + $0x8] sm:$0xff]
    %v1250 = vld [vmem:[%s11 + $0x10] sm:$0xff]
    %v1251 = vld [vmem:[%s11 + $0x18] sm:$0xff]
    %v1252 = vld [vmem:[%s12] sm:$0x1]
    %v1254 = vlaneseq
    %v1255 = vshrl.u32 %v1254, 7
    %v1256 = vsub.s32 0, %v1255
    %v1257 = vrot.slane %v1252, %v1256
    %v1260 = vsel %vm172, %v1246, 0
    %v1263 = vsel %vm172, %v1247, 0
    %1265 = vmatprep.subr.mxu0 0.0
    %1266 = vmatpush1.msra.mxu0 %v1248
    %1267 = vmatprep.subr.mxu0 0.0
    %1268 = vmatpush1.msra.mxu0 %v1249
    %1269 = vmatprep.subr.mxu0 0.0
    %1270 = vmatpush1.msra.mxu0 %v1250
    %1271 = vmatprep.subr.mxu0 0.0
    %1272 = vmatpush1.msra.mxu0 %v1251
    %1273 = vmatprep.subr.mxu0 0.0
    %1274 = vmatpush1.msra.mxu0 0.0
    %1275 = vmatprep.subr.mxu0 0.0
    %1276 = vmatpush1.msra.mxu0 0.0
    %1277 = vmatprep.subr.mxu0 0.0
    %1278 = vmatpush1.msra.mxu0 0.0
    %1279 = vmatprep.subr.mxu0 0.0
    %1280 = vmatpush1.msra.mxu0 0.0
    %1281 = vmatprep.subr.mxu0 0.0
    %1282 = vmatpush1.msra.mxu0 0.0
    %1283 = vmatprep.subr.mxu0 0.0
    %1284 = vmatpush1.msra.mxu0 0.0
    %1285 = vmatprep.subr.mxu0 0.0
    %1286 = vmatpush1.msra.mxu0 0.0
    %1287 = vmatprep.subr.mxu0 0.0
    %1288 = vmatpush1.msra.mxu0 0.0
    %1289 = vmatprep.subr.mxu0 0.0
    %1290 = vmatpush1.msra.mxu0 0.0
    %1291 = vmatprep.subr.mxu0 0.0
    %1292 = vmatpush1.msra.mxu0 0.0
    %1293 = vmatprep.subr.mxu0 0.0
    %1294 = vmatpush1.msra.mxu0 0.0
    %1295 = vmatprep.subr.mxu0 0.0
    %1296 = vmatpush1.msra.mxu0 0.0
    %1297 = vmatprep.subr.mxu0 0.0
    %1298 = vmatpush1.msra.mxu0 0.0
    %1299 = vmatprep.subr.mxu0 0.0
    %1300 = vmatpush1.msra.mxu0 0.0
    %1301 = vmatprep.subr.mxu0 0.0
    %1302 = vmatpush1.msra.mxu0 0.0
    %1303 = vmatprep.subr.mxu0 0.0
    %1304 = vmatpush1.msra.mxu0 0.0
    %1305 = vmatprep.subr.mxu0 0.0
    %1306 = vmatpush1.msra.mxu0 0.0
    %1307 = vmatprep.subr.mxu0 0.0
    %1308 = vmatpush1.msra.mxu0 0.0
    %1309 = vmatprep.subr.mxu0 0.0
    %1310 = vmatpush1.msra.mxu0 0.0
    %1311 = vmatprep.subr.mxu0 0.0
    %1312 = vmatpush1.msra.mxu0 0.0
    %1313 = vmatprep.subr.mxu0 0.0
    %1314 = vmatpush1.msra.mxu0 0.0
    %1315 = vmatprep.subr.mxu0 0.0
    %1316 = vmatpush1.msra.mxu0 0.0
    %1317 = vmatprep.subr.mxu0 0.0
    %1318 = vmatpush1.msra.mxu0 0.0
    %1319 = vmatprep.subr.mxu0 0.0
    %1320 = vmatpush1.msra.mxu0 0.0
    %1321 = vmatprep.subr.mxu0 0.0
    %1322 = vmatpush1.msra.mxu0 0.0
    %1323 = vmatprep.subr.mxu0 0.0
    %1324 = vmatpush1.msra.mxu0 0.0
    %1325 = vmatprep.subr.mxu0 0.0
    %1326 = vmatpush1.msra.mxu0 0.0
    %1327 = vmatprep.subr.mxu0 0.0
    %1328 = vmatpush1.msra.mxu0 0.0
    %1329 = vmatprep.mubr.f32.mxu0 0.0
    %1330 = vmatmul.mubr.f32.gmra.mrb[0].mxu0 %v1260
    %v1331 = vpop.f32.mrb[0].mxu0
    %v1332 = vadd.f32 %v1257, %v1331
    %v1333 = vpop.f32.mrb[0].mxu0
    %1334 = vmatprep.mubr.f32.mxu0 0.0
    %1335 = vmatmul.mubr.f32.gmra.mrb[0].mxu0 %v1263
    %v1336 = vpop.f32.mrb[0].mxu0
    %v1337 = vadd.f32 %v1257, %v1336
    %v1338 = vpop.f32.mrb[0].mxu0
    %1339 = vdwg.mxu0
    %v1340 = vmax.f32 %v1332, 0.0
    %v1341 = vmax.f32 %v1337, 0.0
    %v1342 = vld [vmem:[%s13] sm:$0xff]
    %v1343 = vld [vmem:[%s13 + $0x8] sm:$0xff]
    %v1344 = vld [vmem:[%s13 + $0x10] sm:$0xff]
    %v1345 = vld [vmem:[%s13 + $0x18] sm:$0xff]
    %v1346 = vld [vmem:[%s13 + $0x20] sm:$0xff]
    %v1347 = vld [vmem:[%s13 + $0x28] sm:$0xff]
    %v1348 = vld [vmem:[%s13 + $0x30] sm:$0xff]
    %v1349 = vld [vmem:[%s13 + $0x38] sm:$0xff]
    %v1350 = vld [vmem:[%s13 + $0x40] sm:$0xff]
    %v1351 = vld [vmem:[%s13 + $0x48] sm:$0xff]
    %v1352 = vld [vmem:[%s13 + $0x50] sm:$0xff]
    %v1353 = vld [vmem:[%s13 + $0x58] sm:$0xff]
    %v1354 = vld [vmem:[%s13 + $0x60] sm:$0xff]
    %v1355 = vld [vmem:[%s13 + $0x68] sm:$0xff]
    %v1356 = vld [vmem:[%s13 + $0x70] sm:$0xff]
    %v1357 = vld [vmem:[%s13 + $0x78] sm:$0xff]
    %v1358 = vld [vmem:[%s14] sm:$0x1]
    %v1360 = vlaneseq
    %v1361 = vshrl.u32 %v1360, 7
    %v1362 = vsub.s32 0, %v1361
    %v1363 = vrot.slane %v1358, %v1362
    %1365 = vmatprep.subr.mxu0 0.0
    %1366 = vmatpush1.msra.mxu0 %v1342
    %1367 = vmatprep.subr.mxu0 0.0
    %1368 = vmatpush1.msra.mxu0 %v1343
    %1369 = vmatprep.subr.mxu0 0.0
    %1370 = vmatpush1.msra.mxu0 %v1344
    %1371 = vmatprep.subr.mxu0 0.0
    %1372 = vmatpush1.msra.mxu0 %v1345
    %1373 = vmatprep.subr.mxu0 0.0
    %1374 = vmatpush1.msra.mxu0 %v1346
    %1375 = vmatprep.subr.mxu0 0.0
    %1376 = vmatpush1.msra.mxu0 %v1347
    %1377 = vmatprep.subr.mxu0 0.0
    %1378 = vmatpush1.msra.mxu0 %v1348
    %1379 = vmatprep.subr.mxu0 0.0
    %1380 = vmatpush1.msra.mxu0 %v1349
    %1381 = vmatprep.subr.mxu0 0.0
    %1382 = vmatpush1.msra.mxu0 %v1350
    %1383 = vmatprep.subr.mxu0 0.0
    %1384 = vmatpush1.msra.mxu0 %v1351
    %1385 = vmatprep.subr.mxu0 0.0
    %1386 = vmatpush1.msra.mxu0 %v1352
    %1387 = vmatprep.subr.mxu0 0.0
    %1388 = vmatpush1.msra.mxu0 %v1353
    %1389 = vmatprep.subr.mxu0 0.0
    %1390 = vmatpush1.msra.mxu0 %v1354
    %1391 = vmatprep.subr.mxu0 0.0
    %1392 = vmatpush1.msra.mxu0 %v1355
    %1393 = vmatprep.subr.mxu0 0.0
    %1394 = vmatpush1.msra.mxu0 %v1356
    %1395 = vmatprep.subr.mxu0 0.0
    %1396 = vmatpush1.msra.mxu0 %v1357
    %1397 = vmatprep.subr.mxu0 0.0
    %1398 = vmatpush1.msra.mxu0 0.0
    %1399 = vmatprep.subr.mxu0 0.0
    %1400 = vmatpush1.msra.mxu0 0.0
    %1401 = vmatprep.subr.mxu0 0.0
    %1402 = vmatpush1.msra.mxu0 0.0
    %1403 = vmatprep.subr.mxu0 0.0
    %1404 = vmatpush1.msra.mxu0 0.0
    %1405 = vmatprep.subr.mxu0 0.0
    %1406 = vmatpush1.msra.mxu0 0.0
    %1407 = vmatprep.subr.mxu0 0.0
    %1408 = vmatpush1.msra.mxu0 0.0
    %1409 = vmatprep.subr.mxu0 0.0
    %1410 = vmatpush1.msra.mxu0 0.0
    %1411 = vmatprep.subr.mxu0 0.0
    %1412 = vmatpush1.msra.mxu0 0.0
    %1413 = vmatprep.subr.mxu0 0.0
    %1414 = vmatpush1.msra.mxu0 0.0
    %1415 = vmatprep.subr.mxu0 0.0
    %1416 = vmatpush1.msra.mxu0 0.0
    %1417 = vmatprep.subr.mxu0 0.0
    %1418 = vmatpush1.msra.mxu0 0.0
    %1419 = vmatprep.subr.mxu0 0.0
    %1420 = vmatpush1.msra.mxu0 0.0
    %1421 = vmatprep.subr.mxu0 0.0
    %1422 = vmatpush1.msra.mxu0 0.0
    %1423 = vmatprep.subr.mxu0 0.0
    %1424 = vmatpush1.msra.mxu0 0.0
    %1425 = vmatprep.subr.mxu0 0.0
    %1426 = vmatpush1.msra.mxu0 0.0
    %1427 = vmatprep.subr.mxu0 0.0
    %1428 = vmatpush1.msra.mxu0 0.0
    %1429 = vmatprep.mubr.f32.mxu0 0.0
    %1430 = vmatmul.mubr.f32.gmra.mrb[0].mxu0 %v1340
    %v1431 = vpop.f32.mrb[0].mxu0
    %v1432 = vadd.f32 %v1363, %v1431
    %v1433 = vpop.f32.mrb[0].mxu0
    %1434 = vmatprep.mubr.f32.mxu0 0.0
    %1435 = vmatmul.mubr.f32.gmra.mrb[0].mxu0 %v1341
    %v1436 = vpop.f32.mrb[0].mxu0
    %v1437 = vadd.f32 %v1363, %v1436
    %v1438 = vpop.f32.mrb[0].mxu0
    %1439 = vdwg.mxu0
    %v1440 = vadd.f32 %v1432, %v1246
    %v1441 = vadd.f32 %v1437, %v1247
    %v1442 = vld [vmem:[#allocation13] sm:$0x1]
    %v1443 = vld [vmem:[%s10] sm:$0x1]
    %v1444 = vsel %vm172, %v1440, 0.0
    %1445 = vadd.xlane.f32.xlu0 %v1444
    %v1446 = vpop.xlane.xlu0 %1445
    %v1447 = vsel %vm172, %v1441, 0.0
    %1448 = vadd.xlane.f32.xlu0 %v1447
    %v1449 = vpop.xlane.xlu0 %1448
    %v1450 = vmul.f32 %v1446, %v1211
    %v1451 = vmul.f32 %v1449, %v1211
    %v1452 = vsub.f32 %v1440, %v1450
    %v1453 = vsub.f32 %v1441, %v1451
    %v1454 = vmul.f32 %v1452, %v1452
    %v1455 = vmul.f32 %v1453, %v1453
    %v1456 = vsel %vm172, %v1454, 0.0
    %1457 = vadd.xlane.f32.xlu0 %v1456
    %v1458 = vpop.xlane.xlu0 %1457
    %v1459 = vsel %vm172, %v1455, 0.0
    %1460 = vadd.xlane.f32.xlu0 %v1459
    %v1461 = vpop.xlane.xlu0 %1460
    %v1462 = vmul.f32 %v1458, %v1211
    %v1463 = vmul.f32 %v1461, %v1211
    %v1464 = vadd.f32 %v1462, 1e-05
    %v1465 = vadd.f32 %v1463, 1e-05
    %v1466 = vrsqrt.pop %v1464
    %v1467 = vrsqrt.pop %v1465
    %v1468 = vmul.f32 %v1452, %v1466
    %v1469 = vmul.f32 %v1453, %v1467
    %v1471 = vlaneseq
    %v1472 = vshrl.u32 %v1471, 7
    %v1473 = vsub.s32 0, %v1472
    %v1474 = vrot.slane %v1442, %v1473
    %v1476 = vmul.f32 %v1468, %v1474
    %v1477 = vmul.f32 %v1469, %v1474
    %v1479 = vlaneseq
    %v1480 = vshrl.u32 %v1479, 7
    %v1481 = vsub.s32 0, %v1480
    %v1482 = vrot.slane %v1443, %v1481
    %v1484 = vadd.f32 %v1476, %v1482
    %v1485 = vadd.f32 %v1477, %v1482
    %s1486 = scalar_lea.vmem %s2, 64
    %v1487 = vld [vmem:[%s1486] sm:$0xff]
    %v1488 = vld [vmem:[%s1486 + $0x8] sm:$0xff]
    %v1489 = vld [vmem:[%s1486 + $0x10] sm:$0xff]
    %v1490 = vld [vmem:[%s1486 + $0x18] sm:$0xff]
    %s1491 = scalar_lea.vmem %s3, 64
    %v1492 = vld [vmem:[%s1491] sm:$0xff]
    %v1493 = vld [vmem:[%s1491 + $0x8] sm:$0xff]
    %v1494 = vld [vmem:[%s1491 + $0x10] sm:$0xff]
    %v1495 = vld [vmem:[%s1491 + $0x18] sm:$0xff]
    %s1496 = scalar_lea.vmem [#allocation7], 64
    %v1497 = vld [vmem:[%s1496] sm:$0xff]
    %v1498 = vld [vmem:[%s1496 + $0x8] sm:$0xff]
    %v1499 = vld [vmem:[%s1496 + $0x10] sm:$0xff]
    %v1500 = vld [vmem:[%s1496 + $0x18] sm:$0xff]
    %s1501 = scalar_lea.vmem [#allocation8], 64
    %v1502 = vld [vmem:[%s1501] sm:$0xff]
    %v1503 = vld [vmem:[%s1501 + $0x8] sm:$0xff]
    %v1504 = vld [vmem:[%s1501 + $0x10] sm:$0xff]
    %v1505 = vld [vmem:[%s1501 + $0x18] sm:$0xff]
    %v1507 = vsel %vm172, %v1484, 0
    %v1510 = vsel %vm172, %v1485, 0
    %1512 = vmatprep.subr.mxu0 0.0
    %1513 = vmatpush1.msra.mxu0 %v1487
    %1514 = vmatprep.subr.mxu0 0.0
    %1515 = vmatpush1.msra.mxu0 %v1488
    %1516 = vmatprep.subr.mxu0 0.0
    %1517 = vmatpush1.msra.mxu0 %v1489
    %1518 = vmatprep.subr.mxu0 0.0
    %1519 = vmatpush1.msra.mxu0 %v1490
    %1520 = vmatprep.subr.mxu0 0.0
    %1521 = vmatpush1.msra.mxu0 0.0
    %1522 = vmatprep.subr.mxu0 0.0
    %1523 = vmatpush1.msra.mxu0 0.0
    %1524 = vmatprep.subr.mxu0 0.0
    %1525 = vmatpush1.msra.mxu0 0.0
    %1526 = vmatprep.subr.mxu0 0.0
    %1527 = vmatpush1.msra.mxu0 0.0
    %1528 = vmatprep.subr.mxu0 0.0
    %1529 = vmatpush1.msra.mxu0 0.0
    %1530 = vmatprep.subr.mxu0 0.0
    %1531 = vmatpush1.msra.mxu0 0.0
    %1532 = vmatprep.subr.mxu0 0.0
    %1533 = vmatpush1.msra.mxu0 0.0
    %1534 = vmatprep.subr.mxu0 0.0
    %1535 = vmatpush1.msra.mxu0 0.0
    %1536 = vmatprep.subr.mxu0 0.0
    %1537 = vmatpush1.msra.mxu0 0.0
    %1538 = vmatprep.subr.mxu0 0.0
    %1539 = vmatpush1.msra.mxu0 0.0
    %1540 = vmatprep.subr.mxu0 0.0
    %1541 = vmatpush1.msra.mxu0 0.0
    %1542 = vmatprep.subr.mxu0 0.0
    %1543 = vmatpush1.msra.mxu0 0.0
    %1544 = vmatprep.subr.mxu0 0.0
    %1545 = vmatpush1.msra.mxu0 0.0
    %1546 = vmatprep.subr.mxu0 0.0
    %1547 = vmatpush1.msra.mxu0 0.0
    %1548 = vmatprep.subr.mxu0 0.0
    %1549 = vmatpush1.msra.mxu0 0.0
    %1550 = vmatprep.subr.mxu0 0.0
    %1551 = vmatpush1.msra.mxu0 0.0
    %1552 = vmatprep.subr.mxu0 0.0
    %1553 = vmatpush1.msra.mxu0 0.0
    %1554 = vmatprep.subr.mxu0 0.0
    %1555 = vmatpush1.msra.mxu0 0.0
    %1556 = vmatprep.subr.mxu0 0.0
    %1557 = vmatpush1.msra.mxu0 0.0
    %1558 = vmatprep.subr.mxu0 0.0
    %1559 = vmatpush1.msra.mxu0 0.0
    %1560 = vmatprep.subr.mxu0 0.0
    %1561 = vmatpush1.msra.mxu0 0.0
    %1562 = vmatprep.subr.mxu0 0.0
    %1563 = vmatpush1.msra.mxu0 0.0
    %1564 = vmatprep.subr.mxu0 0.0
    %1565 = vmatpush1.msra.mxu0 0.0
    %1566 = vmatprep.subr.mxu0 0.0
    %1567 = vmatpush1.msra.mxu0 0.0
    %1568 = vmatprep.subr.mxu0 0.0
    %1569 = vmatpush1.msra.mxu0 0.0
    %1570 = vmatprep.subr.mxu0 0.0
    %1571 = vmatpush1.msra.mxu0 0.0
    %1572 = vmatprep.subr.mxu0 0.0
    %1573 = vmatpush1.msra.mxu0 0.0
    %1574 = vmatprep.subr.mxu0 0.0
    %1575 = vmatpush1.msra.mxu0 0.0
    %1576 = vmatprep.mubr.f32.mxu0 0.0
    %1577 = vmatmul.mubr.f32.gmra.mrb[0].mxu0 %v1507
    %v1578 = vpop.f32.mrb[0].mxu0
    %v1579 = vadd.f32 0.0, %v1578
    %v1580 = vpop.f32.mrb[0].mxu0
    %1581 = vmatprep.mubr.f32.mxu0 0.0
    %1582 = vmatmul.mubr.f32.gmra.mrb[0].mxu0 %v1510
    %v1583 = vpop.f32.mrb[0].mxu0
    %v1584 = vadd.f32 0.0, %v1583
    %v1585 = vpop.f32.mrb[0].mxu0
    %1586 = vdwg.mxu0
    %1587 = vmatprep.subr.mxu0 0.0
    %1588 = vmatpush1.msra.mxu0 %v1492
    %1589 = vmatprep.subr.mxu0 0.0
    %1590 = vmatpush1.msra.mxu0 %v1493
    %1591 = vmatprep.subr.mxu0 0.0
    %1592 = vmatpush1.msra.mxu0 %v1494
    %1593 = vmatprep.subr.mxu0 0.0
    %1594 = vmatpush1.msra.mxu0 %v1495
    %1595 = vmatprep.subr.mxu0 0.0
    %1596 = vmatpush1.msra.mxu0 0.0
    %1597 = vmatprep.subr.mxu0 0.0
    %1598 = vmatpush1.msra.mxu0 0.0
    %1599 = vmatprep.subr.mxu0 0.0
    %1600 = vmatpush1.msra.mxu0 0.0
    %1601 = vmatprep.subr.mxu0 0.0
    %1602 = vmatpush1.msra.mxu0 0.0
    %1603 = vmatprep.subr.mxu0 0.0
    %1604 = vmatpush1.msra.mxu0 0.0
    %1605 = vmatprep.subr.mxu0 0.0
    %1606 = vmatpush1.msra.mxu0 0.0
    %1607 = vmatprep.subr.mxu0 0.0
    %1608 = vmatpush1.msra.mxu0 0.0
    %1609 = vmatprep.subr.mxu0 0.0
    %1610 = vmatpush1.msra.mxu0 0.0
    %1611 = vmatprep.subr.mxu0 0.0
    %1612 = vmatpush1.msra.mxu0 0.0
    %1613 = vmatprep.subr.mxu0 0.0
    %1614 = vmatpush1.msra.mxu0 0.0
    %1615 = vmatprep.subr.mxu0 0.0
    %1616 = vmatpush1.msra.mxu0 0.0
    %1617 = vmatprep.subr.mxu0 0.0
    %1618 = vmatpush1.msra.mxu0 0.0
    %1619 = vmatprep.subr.mxu0 0.0
    %1620 = vmatpush1.msra.mxu0 0.0
    %1621 = vmatprep.subr.mxu0 0.0
    %1622 = vmatpush1.msra.mxu0 0.0
    %1623 = vmatprep.subr.mxu0 0.0
    %1624 = vmatpush1.msra.mxu0 0.0
    %1625 = vmatprep.subr.mxu0 0.0
    %1626 = vmatpush1.msra.mxu0 0.0
    %1627 = vmatprep.subr.mxu0 0.0
    %1628 = vmatpush1.msra.mxu0 0.0
    %1629 = vmatprep.subr.mxu0 0.0
    %1630 = vmatpush1.msra.mxu0 0.0
    %1631 = vmatprep.subr.mxu0 0.0
    %1632 = vmatpush1.msra.mxu0 0.0
    %1633 = vmatprep.subr.mxu0 0.0
    %1634 = vmatpush1.msra.mxu0 0.0
    %1635 = vmatprep.subr.mxu0 0.0
    %1636 = vmatpush1.msra.mxu0 0.0
    %1637 = vmatprep.subr.mxu0 0.0
    %1638 = vmatpush1.msra.mxu0 0.0
    %1639 = vmatprep.subr.mxu0 0.0
    %1640 = vmatpush1.msra.mxu0 0.0
    %1641 = vmatprep.subr.mxu0 0.0
    %1642 = vmatpush1.msra.mxu0 0.0
    %1643 = vmatprep.subr.mxu0 0.0
    %1644 = vmatpush1.msra.mxu0 0.0
    %1645 = vmatprep.subr.mxu0 0.0
    %1646 = vmatpush1.msra.mxu0 0.0
    %1647 = vmatprep.subr.mxu0 0.0
    %1648 = vmatpush1.msra.mxu0 0.0
    %1649 = vmatprep.subr.mxu0 0.0
    %1650 = vmatpush1.msra.mxu0 0.0
    %1651 = vmatprep.mubr.f32.mxu0 0.0
    %1652 = vmatmul.mubr.f32.gmra.mrb[0].mxu0 %v1507
    %v1653 = vpop.f32.mrb[0].mxu0
    %v1654 = vadd.f32 0.0, %v1653
    %v1655 = vpop.f32.mrb[0].mxu0
    %1656 = vmatprep.mubr.f32.mxu0 0.0
    %1657 = vmatmul.mubr.f32.gmra.mrb[0].mxu0 %v1510
    %v1658 = vpop.f32.mrb[0].mxu0
    %v1659 = vadd.f32 0.0, %v1658
    %v1660 = vpop.f32.mrb[0].mxu0
    %1661 = vdwg.mxu0
    %1662 = vmatprep.subr.mxu0 0.0
    %1663 = vmatpush1.msra.mxu0 %v1497
    %1664 = vmatprep.subr.mxu0 0.0
    %1665 = vmatpush1.msra.mxu0 %v1498
    %1666 = vmatprep.subr.mxu0 0.0
    %1667 = vmatpush1.msra.mxu0 %v1499
    %1668 = vmatprep.subr.mxu0 0.0
    %1669 = vmatpush1.msra.mxu0 %v1500
    %1670 = vmatprep.subr.mxu0 0.0
    %1671 = vmatpush1.msra.mxu0 0.0
    %1672 = vmatprep.subr.mxu0 0.0
    %1673 = vmatpush1.msra.mxu0 0.0
    %1674 = vmatprep.subr.mxu0 0.0
    %1675 = vmatpush1.msra.mxu0 0.0
    %1676 = vmatprep.subr.mxu0 0.0
    %1677 = vmatpush1.msra.mxu0 0.0
    %1678 = vmatprep.subr.mxu0 0.0
    %1679 = vmatpush1.msra.mxu0 0.0
    %1680 = vmatprep.subr.mxu0 0.0
    %1681 = vmatpush1.msra.mxu0 0.0
    %1682 = vmatprep.subr.mxu0 0.0
    %1683 = vmatpush1.msra.mxu0 0.0
    %1684 = vmatprep.subr.mxu0 0.0
    %1685 = vmatpush1.msra.mxu0 0.0
    %1686 = vmatprep.subr.mxu0 0.0
    %1687 = vmatpush1.msra.mxu0 0.0
    %1688 = vmatprep.subr.mxu0 0.0
    %1689 = vmatpush1.msra.mxu0 0.0
    %1690 = vmatprep.subr.mxu0 0.0
    %1691 = vmatpush1.msra.mxu0 0.0
    %1692 = vmatprep.subr.mxu0 0.0
    %1693 = vmatpush1.msra.mxu0 0.0
    %1694 = vmatprep.subr.mxu0 0.0
    %1695 = vmatpush1.msra.mxu0 0.0
    %1696 = vmatprep.subr.mxu0 0.0
    %1697 = vmatpush1.msra.mxu0 0.0
    %1698 = vmatprep.subr.mxu0 0.0
    %1699 = vmatpush1.msra.mxu0 0.0
    %1700 = vmatprep.subr.mxu0 0.0
    %1701 = vmatpush1.msra.mxu0 0.0
    %1702 = vmatprep.subr.mxu0 0.0
    %1703 = vmatpush1.msra.mxu0 0.0
    %1704 = vmatprep.subr.mxu0 0.0
    %1705 = vmatpush1.msra.mxu0 0.0
    %1706 = vmatprep.subr.mxu0 0.0
    %1707 = vmatpush1.msra.mxu0 0.0
    %1708 = vmatprep.subr.mxu0 0.0
    %1709 = vmatpush1.msra.mxu0 0.0
    %1710 = vmatprep.subr.mxu0 0.0
    %1711 = vmatpush1.msra.mxu0 0.0
    %1712 = vmatprep.subr.mxu0 0.0
    %1713 = vmatpush1.msra.mxu0 0.0
    %1714 = vmatprep.subr.mxu0 0.0
    %1715 = vmatpush1.msra.mxu0 0.0
    %1716 = vmatprep.subr.mxu0 0.0
    %1717 = vmatpush1.msra.mxu0 0.0
    %1718 = vmatprep.subr.mxu0 0.0
    %1719 = vmatpush1.msra.mxu0 0.0
    %1720 = vmatprep.subr.mxu0 0.0
    %1721 = vmatpush1.msra.mxu0 0.0
    %1722 = vmatprep.subr.mxu0 0.0
    %1723 = vmatpush1.msra.mxu0 0.0
    %1724 = vmatprep.subr.mxu0 0.0
    %1725 = vmatpush1.msra.mxu0 0.0
    %1726 = vmatprep.mubr.f32.mxu0 0.0
    %1727 = vmatmul.mubr.f32.gmra.mrb[0].mxu0 %v1507
    %v1728 = vpop.f32.mrb[0].mxu0
    %v1729 = vadd.f32 0.0, %v1728
    %v1730 = vpop.f32.mrb[0].mxu0
    %1731 = vmatprep.mubr.f32.mxu0 0.0
    %1732 = vmatmul.mubr.f32.gmra.mrb[0].mxu0 %v1510
    %v1733 = vpop.f32.mrb[0].mxu0
    %v1734 = vadd.f32 0.0, %v1733
    %v1735 = vpop.f32.mrb[0].mxu0
    %1736 = vdwg.mxu0
    %v1738 = vsel %vm172, %v1579, 0
    %v1741 = vsel %vm172, %v1584, 0
    %v1744 = vsel %vm172, %v1654, 0
    %v1747 = vsel %vm172, %v1659, 0
    %1749 = vmatprep.subr.mxu0 0.0
    %1750 = vmatpush1.xpose.msra.mxu0 %v1744
    %1751 = vmatprep.subr.mxu0 0.0
    %1752 = vmatpush1.xpose.msra.mxu0 %v1747
    %1753 = vmatprep.subr.mxu0 0.0
    %1754 = vmatpush1.xpose.msra.mxu0 0.0
    %1755 = vmatprep.subr.mxu0 0.0
    %1756 = vmatpush1.xpose.msra.mxu0 0.0
    %1757 = vmatprep.subr.mxu0 0.0
    %1758 = vmatpush1.xpose.msra.mxu0 0.0
    %1759 = vmatprep.subr.mxu0 0.0
    %1760 = vmatpush1.xpose.msra.mxu0 0.0
    %1761 = vmatprep.subr.mxu0 0.0
    %1762 = vmatpush1.xpose.msra.mxu0 0.0
    %1763 = vmatprep.subr.mxu0 0.0
    %1764 = vmatpush1.xpose.msra.mxu0 0.0
    %1765 = vmatprep.subr.mxu0 0.0
    %1766 = vmatpush1.xpose.msra.mxu0 0.0
    %1767 = vmatprep.subr.mxu0 0.0
    %1768 = vmatpush1.xpose.msra.mxu0 0.0
    %1769 = vmatprep.subr.mxu0 0.0
    %1770 = vmatpush1.xpose.msra.mxu0 0.0
    %1771 = vmatprep.subr.mxu0 0.0
    %1772 = vmatpush1.xpose.msra.mxu0 0.0
    %1773 = vmatprep.subr.mxu0 0.0
    %1774 = vmatpush1.xpose.msra.mxu0 0.0
    %1775 = vmatprep.subr.mxu0 0.0
    %1776 = vmatpush1.xpose.msra.mxu0 0.0
    %1777 = vmatprep.subr.mxu0 0.0
    %1778 = vmatpush1.xpose.msra.mxu0 0.0
    %1779 = vmatprep.subr.mxu0 0.0
    %1780 = vmatpush1.xpose.msra.mxu0 0.0
    %1781 = vmatprep.subr.mxu0 0.0
    %1782 = vmatpush1.xpose.msra.mxu0 0.0
    %1783 = vmatprep.subr.mxu0 0.0
    %1784 = vmatpush1.xpose.msra.mxu0 0.0
    %1785 = vmatprep.subr.mxu0 0.0
    %1786 = vmatpush1.xpose.msra.mxu0 0.0
    %1787 = vmatprep.subr.mxu0 0.0
    %1788 = vmatpush1.xpose.msra.mxu0 0.0
    %1789 = vmatprep.subr.mxu0 0.0
    %1790 = vmatpush1.xpose.msra.mxu0 0.0
    %1791 = vmatprep.subr.mxu0 0.0
    %1792 = vmatpush1.xpose.msra.mxu0 0.0
    %1793 = vmatprep.subr.mxu0 0.0
    %1794 = vmatpush1.xpose.msra.mxu0 0.0
    %1795 = vmatprep.subr.mxu0 0.0
    %1796 = vmatpush1.xpose.msra.mxu0 0.0
    %1797 = vmatprep.subr.mxu0 0.0
    %1798 = vmatpush1.xpose.msra.mxu0 0.0
    %1799 = vmatprep.subr.mxu0 0.0
    %1800 = vmatpush1.xpose.msra.mxu0 0.0
    %1801 = vmatprep.subr.mxu0 0.0
    %1802 = vmatpush1.xpose.msra.mxu0 0.0
    %1803 = vmatprep.subr.mxu0 0.0
    %1804 = vmatpush1.xpose.msra.mxu0 0.0
    %1805 = vmatprep.subr.mxu0 0.0
    %1806 = vmatpush1.xpose.msra.mxu0 0.0
    %1807 = vmatprep.subr.mxu0 0.0
    %1808 = vmatpush1.xpose.msra.mxu0 0.0
    %1809 = vmatprep.subr.mxu0 0.0
    %1810 = vmatpush1.xpose.msra.mxu0 0.0
    %1811 = vmatprep.subr.mxu0 0.0
    %1812 = vmatpush1.xpose.msra.mxu0 0.0
    %1813 = vmatprep.mubr.f32.mxu0 0.0
    %1814 = vmatmul.mubr.f32.gmra.mrb[0].mxu0 %v1738
    %v1815 = vpop.f32.mrb[0].mxu0
    %v1816 = vadd.f32 %v154, %v1815
    %v1817 = vpop.f32.mrb[0].mxu0
    %1818 = vmatprep.mubr.f32.mxu0 0.0
    %1819 = vmatmul.mubr.f32.gmra.mrb[0].mxu0 %v1741
    %v1820 = vpop.f32.mrb[0].mxu0
    %v1821 = vadd.f32 %v155, %v1820
    %v1822 = vpop.f32.mrb[0].mxu0
    %1823 = vdwg.mxu0
    %v1824 = vsel %vm491, %v1816, -inf
    %1825 = vmax.xlane.f32.xlu0 %v1824
    %v1826 = vpop.xlane.xlu0 %1825
    %v1827 = vsel %vm491, %v1821, -inf
    %1828 = vmax.xlane.f32.xlu0 %v1827
    %v1829 = vpop.xlane.xlu0 %1828
    %v1830 = vsub.f32 %v1816, %v1826
    %v1831 = vsub.f32 %v1821, %v1829
    %v1832 = vmul.f32 %v1830, 1.442695
    %v1833 = vpow.pop %v1832
    %v1834 = vmul.f32 %v1831, 1.442695
    %v1835 = vpow.pop %v1834
    %v1836 = vsel %vm491, %v1833, 0.0
    %1837 = vadd.xlane.f32.xlu0 %v1836
    %v1838 = vpop.xlane.xlu0 %1837
    %v1839 = vsel %vm491, %v1835, 0.0
    %1840 = vadd.xlane.f32.xlu0 %v1839
    %v1841 = vpop.xlane.xlu0 %1840
    %v1842 = vrcp.pop %v1838
    %v1843 = vrcp.pop %v1841
    %v1844 = vmul.f32 %v1833, %v1842
    %v1845 = vmul.f32 %v1835, %v1843
    %v1847 = vsel %vm491, %v1844, 0
    %v1850 = vsel %vm491, %v1845, 0
    %1852 = vmatprep.subr.mxu0 0.0
    %1853 = vmatpush1.msra.mxu0 %v1729
    %1854 = vmatprep.subr.mxu0 0.0
    %1855 = vmatpush1.msra.mxu0 %v1734
    %1856 = vmatprep.subr.mxu0 0.0
    %1857 = vmatpush1.msra.mxu0 0.0
    %1858 = vmatprep.subr.mxu0 0.0
    %1859 = vmatpush1.msra.mxu0 0.0
    %1860 = vmatprep.subr.mxu0 0.0
    %1861 = vmatpush1.msra.mxu0 0.0
    %1862 = vmatprep.subr.mxu0 0.0
    %1863 = vmatpush1.msra.mxu0 0.0
    %1864 = vmatprep.subr.mxu0 0.0
    %1865 = vmatpush1.msra.mxu0 0.0
    %1866 = vmatprep.subr.mxu0 0.0
    %1867 = vmatpush1.msra.mxu0 0.0
    %1868 = vmatprep.subr.mxu0 0.0
    %1869 = vmatpush1.msra.mxu0 0.0
    %1870 = vmatprep.subr.mxu0 0.0
    %1871 = vmatpush1.msra.mxu0 0.0
    %1872 = vmatprep.subr.mxu0 0.0
    %1873 = vmatpush1.msra.mxu0 0.0
    %1874 = vmatprep.subr.mxu0 0.0
    %1875 = vmatpush1.msra.mxu0 0.0
    %1876 = vmatprep.subr.mxu0 0.0
    %1877 = vmatpush1.msra.mxu0 0.0
    %1878 = vmatprep.subr.mxu0 0.0
    %1879 = vmatpush1.msra.mxu0 0.0
    %1880 = vmatprep.subr.mxu0 0.0
    %1881 = vmatpush1.msra.mxu0 0.0
    %1882 = vmatprep.subr.mxu0 0.0
    %1883 = vmatpush1.msra.mxu0 0.0
    %1884 = vmatprep.subr.mxu0 0.0
    %1885 = vmatpush1.msra.mxu0 0.0
    %1886 = vmatprep.subr.mxu0 0.0
    %1887 = vmatpush1.msra.mxu0 0.0
    %1888 = vmatprep.subr.mxu0 0.0
    %1889 = vmatpush1.msra.mxu0 0.0
    %1890 = vmatprep.subr.mxu0 0.0
    %1891 = vmatpush1.msra.mxu0 0.0
    %1892 = vmatprep.subr.mxu0 0.0
    %1893 = vmatpush1.msra.mxu0 0.0
    %1894 = vmatprep.subr.mxu0 0.0
    %1895 = vmatpush1.msra.mxu0 0.0
    %1896 = vmatprep.subr.mxu0 0.0
    %1897 = vmatpush1.msra.mxu0 0.0
    %1898 = vmatprep.subr.mxu0 0.0
    %1899 = vmatpush1.msra.mxu0 0.0
    %1900 = vmatprep.subr.mxu0 0.0
    %1901 = vmatpush1.msra.mxu0 0.0
    %1902 = vmatprep.subr.mxu0 0.0
    %1903 = vmatpush1.msra.mxu0 0.0
    %1904 = vmatprep.subr.mxu0 0.0
    %1905 = vmatpush1.msra.mxu0 0.0
    %1906 = vmatprep.subr.mxu0 0.0
    %1907 = vmatpush1.msra.mxu0 0.0
    %1908 = vmatprep.subr.mxu0 0.0
    %1909 = vmatpush1.msra.mxu0 0.0
    %1910 = vmatprep.subr.mxu0 0.0
    %1911 = vmatpush1.msra.mxu0 0.0
    %1912 = vmatprep.subr.mxu0 0.0
    %1913 = vmatpush1.msra.mxu0 0.0
    %1914 = vmatprep.subr.mxu0 0.0
    %1915 = vmatpush1.msra.mxu0 0.0
    %1916 = vmatprep.mubr.f32.mxu0 0.0
    %1917 = vmatmul.mubr.f32.gmra.mrb[0].mxu0 %v1847
    %v1918 = vpop.f32.mrb[0].mxu0
    %v1919 = vadd.f32 0.0, %v1918
    %v1920 = vpop.f32.mrb[0].mxu0
    %1921 = vmatprep.mubr.f32.mxu0 0.0
    %1922 = vmatmul.mubr.f32.gmra.mrb[0].mxu0 %v1850
    %v1923 = vpop.f32.mrb[0].mxu0
    %v1924 = vadd.f32 0.0, %v1923
    %v1925 = vpop.f32.mrb[0].mxu0
    %1926 = vdwg.mxu0
    %s1927 = scalar_lea.vmem %s2, 96
    %v1928 = vld [vmem:[%s1927] sm:$0xff]
    %v1929 = vld [vmem:[%s1927 + $0x8] sm:$0xff]
    %v1930 = vld [vmem:[%s1927 + $0x10] sm:$0xff]
    %v1931 = vld [vmem:[%s1927 + $0x18] sm:$0xff]
    %s1932 = scalar_lea.vmem %s3, 96
    %v1933 = vld [vmem:[%s1932] sm:$0xff]
    %v1934 = vld [vmem:[%s1932 + $0x8] sm:$0xff]
    %v1935 = vld [vmem:[%s1932 + $0x10] sm:$0xff]
    %v1936 = vld [vmem:[%s1932 + $0x18] sm:$0xff]
    %s1937 = scalar_lea.vmem [#allocation7], 96
    %v1938 = vld [vmem:[%s1937] sm:$0xff]
    %v1939 = vld [vmem:[%s1937 + $0x8] sm:$0xff]
    %v1940 = vld [vmem:[%s1937 + $0x10] sm:$0xff]
    %v1941 = vld [vmem:[%s1937 + $0x18] sm:$0xff]
    %s1942 = scalar_lea.vmem [#allocation8], 96
    %v1943 = vld [vmem:[%s1942] sm:$0xff]
    %v1944 = vld [vmem:[%s1942 + $0x8] sm:$0xff]
    %v1945 = vld [vmem:[%s1942 + $0x10] sm:$0xff]
    %v1946 = vld [vmem:[%s1942 + $0x18] sm:$0xff]
    %1947 = vmatprep.subr.mxu0 0.0
    %1948 = vmatpush1.msra.mxu0 %v1928
    %1949 = vmatprep.subr.mxu0 0.0
    %1950 = vmatpush1.msra.mxu0 %v1929
    %1951 = vmatprep.subr.mxu0 0.0
    %1952 = vmatpush1.msra.mxu0 %v1930
    %1953 = vmatprep.subr.mxu0 0.0
    %1954 = vmatpush1.msra.mxu0 %v1931
    %1955 = vmatprep.subr.mxu0 0.0
    %1956 = vmatpush1.msra.mxu0 0.0
    %1957 = vmatprep.subr.mxu0 0.0
    %1958 = vmatpush1.msra.mxu0 0.0
    %1959 = vmatprep.subr.mxu0 0.0
    %1960 = vmatpush1.msra.mxu0 0.0
    %1961 = vmatprep.subr.mxu0 0.0
    %1962 = vmatpush1.msra.mxu0 0.0
    %1963 = vmatprep.subr.mxu0 0.0
    %1964 = vmatpush1.msra.mxu0 0.0
    %1965 = vmatprep.subr.mxu0 0.0
    %1966 = vmatpush1.msra.mxu0 0.0
    %1967 = vmatprep.subr.mxu0 0.0
    %1968 = vmatpush1.msra.mxu0 0.0
    %1969 = vmatprep.subr.mxu0 0.0
    %1970 = vmatpush1.msra.mxu0 0.0
    %1971 = vmatprep.subr.mxu0 0.0
    %1972 = vmatpush1.msra.mxu0 0.0
    %1973 = vmatprep.subr.mxu0 0.0
    %1974 = vmatpush1.msra.mxu0 0.0
    %1975 = vmatprep.subr.mxu0 0.0
    %1976 = vmatpush1.msra.mxu0 0.0
    %1977 = vmatprep.subr.mxu0 0.0
    %1978 = vmatpush1.msra.mxu0 0.0
    %1979 = vmatprep.subr.mxu0 0.0
    %1980 = vmatpush1.msra.mxu0 0.0
    %1981 = vmatprep.subr.mxu0 0.0
    %1982 = vmatpush1.msra.mxu0 0.0
    %1983 = vmatprep.subr.mxu0 0.0
    %1984 = vmatpush1.msra.mxu0 0.0
    %1985 = vmatprep.subr.mxu0 0.0
    %1986 = vmatpush1.msra.mxu0 0.0
    %1987 = vmatprep.subr.mxu0 0.0
    %1988 = vmatpush1.msra.mxu0 0.0
    %1989 = vmatprep.subr.mxu0 0.0
    %1990 = vmatpush1.msra.mxu0 0.0
    %1991 = vmatprep.subr.mxu0 0.0
    %1992 = vmatpush1.msra.mxu0 0.0
    %1993 = vmatprep.subr.mxu0 0.0
    %1994 = vmatpush1.msra.mxu0 0.0
    %1995 = vmatprep.subr.mxu0 0.0
    %1996 = vmatpush1.msra.mxu0 0.0
    %1997 = vmatprep.subr.mxu0 0.0
    %1998 = vmatpush1.msra.mxu0 0.0
    %1999 = vmatprep.subr.mxu0 0.0
    %2000 = vmatpush1.msra.mxu0 0.0
    %2001 = vmatprep.subr.mxu0 0.0
    %2002 = vmatpush1.msra.mxu0 0.0
    %2003 = vmatprep.subr.mxu0 0.0
    %2004 = vmatpush1.msra.mxu0 0.0
    %2005 = vmatprep.subr.mxu0 0.0
    %2006 = vmatpush1.msra.mxu0 0.0
    %2007 = vmatprep.subr.mxu0 0.0
    %2008 = vmatpush1.msra.mxu0 0.0
    %2009 = vmatprep.subr.mxu0 0.0
    %2010 = vmatpush1.msra.mxu0 0.0
    %2011 = vmatprep.mubr.f32.mxu0 0.0
    %2012 = vmatmul.mubr.f32.gmra.mrb[0].mxu0 %v1507
    %v2013 = vpop.f32.mrb[0].mxu0
    %v2014 = vadd.f32 0.0, %v2013
    %v2015 = vpop.f32.mrb[0].mxu0
    %2016 = vmatprep.mubr.f32.mxu0 0.0
    %2017 = vmatmul.mubr.f32.gmra.mrb[0].mxu0 %v1510
    %v2018 = vpop.f32.mrb[0].mxu0
    %v2019 = vadd.f32 0.0, %v2018
    %v2020 = vpop.f32.mrb[0].mxu0
    %2021 = vdwg.mxu0
    %2022 = vmatprep.subr.mxu0 0.0
    %2023 = vmatpush1.msra.mxu0 %v1933
    %2024 = vmatprep.subr.mxu0 0.0
    %2025 = vmatpush1.msra.mxu0 %v1934
    %2026 = vmatprep.subr.mxu0 0.0
    %2027 = vmatpush1.msra.mxu0 %v1935
    %2028 = vmatprep.subr.mxu0 0.0
    %2029 = vmatpush1.msra.mxu0 %v1936
    %2030 = vmatprep.subr.mxu0 0.0
    %2031 = vmatpush1.msra.mxu0 0.0
    %2032 = vmatprep.subr.mxu0 0.0
    %2033 = vmatpush1.msra.mxu0 0.0
    %2034 = vmatprep.subr.mxu0 0.0
    %2035 = vmatpush1.msra.mxu0 0.0
    %2036 = vmatprep.subr.mxu0 0.0
    %2037 = vmatpush1.msra.mxu0 0.0
    %2038 = vmatprep.subr.mxu0 0.0
    %2039 = vmatpush1.msra.mxu0 0.0
    %2040 = vmatprep.subr.mxu0 0.0
    %2041 = vmatpush1.msra.mxu0 0.0
    %2042 = vmatprep.subr.mxu0 0.0
    %2043 = vmatpush1.msra.mxu0 0.0
    %2044 = vmatprep.subr.mxu0 0.0
    %2045 = vmatpush1.msra.mxu0 0.0
    %2046 = vmatprep.subr.mxu0 0.0
    %2047 = vmatpush1.msra.mxu0 0.0
    %2048 = vmatprep.subr.mxu0 0.0
    %2049 = vmatpush1.msra.mxu0 0.0
    %2050 = vmatprep.subr.mxu0 0.0
    %2051 = vmatpush1.msra.mxu0 0.0
    %2052 = vmatprep.subr.mxu0 0.0
    %2053 = vmatpush1.msra.mxu0 0.0
    %2054 = vmatprep.subr.mxu0 0.0
    %2055 = vmatpush1.msra.mxu0 0.0
    %2056 = vmatprep.subr.mxu0 0.0
    %2057 = vmatpush1.msra.mxu0 0.0
    %2058 = vmatprep.subr.mxu0 0.0
    %2059 = vmatpush1.msra.mxu0 0.0
    %2060 = vmatprep.subr.mxu0 0.0
    %2061 = vmatpush1.msra.mxu0 0.0
    %2062 = vmatprep.subr.mxu0 0.0
    %2063 = vmatpush1.msra.mxu0 0.0
    %2064 = vmatprep.subr.mxu0 0.0
    %2065 = vmatpush1.msra.mxu0 0.0
    %2066 = vmatprep.subr.mxu0 0.0
    %2067 = vmatpush1.msra.mxu0 0.0
    %2068 = vmatprep.subr.mxu0 0.0
    %2069 = vmatpush1.msra.mxu0 0.0
    %2070 = vmatprep.subr.mxu0 0.0
    %2071 = vmatpush1.msra.mxu0 0.0
    %2072 = vmatprep.subr.mxu0 0.0
    %2073 = vmatpush1.msra.mxu0 0.0
    %2074 = vmatprep.subr.mxu0 0.0
    %2075 = vmatpush1.msra.mxu0 0.0
    %2076 = vmatprep.subr.mxu0 0.0
    %2077 = vmatpush1.msra.mxu0 0.0
    %2078 = vmatprep.subr.mxu0 0.0
    %2079 = vmatpush1.msra.mxu0 0.0
    %2080 = vmatprep.subr.mxu0 0.0
    %2081 = vmatpush1.msra.mxu0 0.0
    %2082 = vmatprep.subr.mxu0 0.0
    %2083 = vmatpush1.msra.mxu0 0.0
    %2084 = vmatprep.subr.mxu0 0.0
    %2085 = vmatpush1.msra.mxu0 0.0
    %2086 = vmatprep.mubr.f32.mxu0 0.0
    %2087 = vmatmul.mubr.f32.gmra.mrb[0].mxu0 %v1507
    %v2088 = vpop.f32.mrb[0].mxu0
    %v2089 = vadd.f32 0.0, %v2088
    %v2090 = vpop.f32.mrb[0].mxu0
    %2091 = vmatprep.mubr.f32.mxu0 0.0
    %2092 = vmatmul.mubr.f32.gmra.mrb[0].mxu0 %v1510
    %v2093 = vpop.f32.mrb[0].mxu0
    %v2094 = vadd.f32 0.0, %v2093
    %v2095 = vpop.f32.mrb[0].mxu0
    %2096 = vdwg.mxu0
    %2097 = vmatprep.subr.mxu0 0.0
    %2098 = vmatpush1.msra.mxu0 %v1938
    %2099 = vmatprep.subr.mxu0 0.0
    %2100 = vmatpush1.msra.mxu0 %v1939
    %2101 = vmatprep.subr.mxu0 0.0
    %2102 = vmatpush1.msra.mxu0 %v1940
    %2103 = vmatprep.subr.mxu0 0.0
    %2104 = vmatpush1.msra.mxu0 %v1941
    %2105 = vmatprep.subr.mxu0 0.0
    %2106 = vmatpush1.msra.mxu0 0.0
    %2107 = vmatprep.subr.mxu0 0.0
    %2108 = vmatpush1.msra.mxu0 0.0
    %2109 = vmatprep.subr.mxu0 0.0
    %2110 = vmatpush1.msra.mxu0 0.0
    %2111 = vmatprep.subr.mxu0 0.0
    %2112 = vmatpush1.msra.mxu0 0.0
    %2113 = vmatprep.subr.mxu0 0.0
    %2114 = vmatpush1.msra.mxu0 0.0
    %2115 = vmatprep.subr.mxu0 0.0
    %2116 = vmatpush1.msra.mxu0 0.0
    %2117 = vmatprep.subr.mxu0 0.0
    %2118 = vmatpush1.msra.mxu0 0.0
    %2119 = vmatprep.subr.mxu0 0.0
    %2120 = vmatpush1.msra.mxu0 0.0
    %2121 = vmatprep.subr.mxu0 0.0
    %2122 = vmatpush1.msra.mxu0 0.0
    %2123 = vmatprep.subr.mxu0 0.0
    %2124 = vmatpush1.msra.mxu0 0.0
    %2125 = vmatprep.subr.mxu0 0.0
    %2126 = vmatpush1.msra.mxu0 0.0
    %2127 = vmatprep.subr.mxu0 0.0
    %2128 = vmatpush1.msra.mxu0 0.0
    %2129 = vmatprep.subr.mxu0 0.0
    %2130 = vmatpush1.msra.mxu0 0.0
    %2131 = vmatprep.subr.mxu0 0.0
    %2132 = vmatpush1.msra.mxu0 0.0
    %2133 = vmatprep.subr.mxu0 0.0
    %2134 = vmatpush1.msra.mxu0 0.0
    %2135 = vmatprep.subr.mxu0 0.0
    %2136 = vmatpush1.msra.mxu0 0.0
    %2137 = vmatprep.subr.mxu0 0.0
    %2138 = vmatpush1.msra.mxu0 0.0
    %2139 = vmatprep.subr.mxu0 0.0
    %2140 = vmatpush1.msra.mxu0 0.0
    %2141 = vmatprep.subr.mxu0 0.0
    %2142 = vmatpush1.msra.mxu0 0.0
    %2143 = vmatprep.subr.mxu0 0.0
    %2144 = vmatpush1.msra.mxu0 0.0
    %2145 = vmatprep.subr.mxu0 0.0
    %2146 = vmatpush1.msra.mxu0 0.0
    %2147 = vmatprep.subr.mxu0 0.0
    %2148 = vmatpush1.msra.mxu0 0.0
    %2149 = vmatprep.subr.mxu0 0.0
    %2150 = vmatpush1.msra.mxu0 0.0
    %2151 = vmatprep.subr.mxu0 0.0
    %2152 = vmatpush1.msra.mxu0 0.0
    %2153 = vmatprep.subr.mxu0 0.0
    %2154 = vmatpush1.msra.mxu0 0.0
    %2155 = vmatprep.subr.mxu0 0.0
    %2156 = vmatpush1.msra.mxu0 0.0
    %2157 = vmatprep.subr.mxu0 0.0
    %2158 = vmatpush1.msra.mxu0 0.0
    %2159 = vmatprep.subr.mxu0 0.0
    %2160 = vmatpush1.msra.mxu0 0.0
    %2161 = vmatprep.mubr.f32.mxu0 0.0
    %2162 = vmatmul.mubr.f32.gmra.mrb[0].mxu0 %v1507
    %v2163 = vpop.f32.mrb[0].mxu0
    %v2164 = vadd.f32 0.0, %v2163
    %v2165 = vpop.f32.mrb[0].mxu0
    %2166 = vmatprep.mubr.f32.mxu0 0.0
    %2167 = vmatmul.mubr.f32.gmra.mrb[0].mxu0 %v1510
    %v2168 = vpop.f32.mrb[0].mxu0
    %v2169 = vadd.f32 0.0, %v2168
    %v2170 = vpop.f32.mrb[0].mxu0
    %2171 = vdwg.mxu0
    %v2173 = vsel %vm172, %v2014, 0
    %v2176 = vsel %vm172, %v2019, 0
    %v2179 = vsel %vm172, %v2089, 0
    %v2182 = vsel %vm172, %v2094, 0
    %2184 = vmatprep.subr.mxu0 0.0
    %2185 = vmatpush1.xpose.msra.mxu0 %v2179
    %2186 = vmatprep.subr.mxu0 0.0
    %2187 = vmatpush1.xpose.msra.mxu0 %v2182
    %2188 = vmatprep.subr.mxu0 0.0
    %2189 = vmatpush1.xpose.msra.mxu0 0.0
    %2190 = vmatprep.subr.mxu0 0.0
    %2191 = vmatpush1.xpose.msra.mxu0 0.0
    %2192 = vmatprep.subr.mxu0 0.0
    %2193 = vmatpush1.xpose.msra.mxu0 0.0
    %2194 = vmatprep.subr.mxu0 0.0
    %2195 = vmatpush1.xpose.msra.mxu0 0.0
    %2196 = vmatprep.subr.mxu0 0.0
    %2197 = vmatpush1.xpose.msra.mxu0 0.0
    %2198 = vmatprep.subr.mxu0 0.0
    %2199 = vmatpush1.xpose.msra.mxu0 0.0
    %2200 = vmatprep.subr.mxu0 0.0
    %2201 = vmatpush1.xpose.msra.mxu0 0.0
    %2202 = vmatprep.subr.mxu0 0.0
    %2203 = vmatpush1.xpose.msra.mxu0 0.0
    %2204 = vmatprep.subr.mxu0 0.0
    %2205 = vmatpush1.xpose.msra.mxu0 0.0
    %2206 = vmatprep.subr.mxu0 0.0
    %2207 = vmatpush1.xpose.msra.mxu0 0.0
    %2208 = vmatprep.subr.mxu0 0.0
    %2209 = vmatpush1.xpose.msra.mxu0 0.0
    %2210 = vmatprep.subr.mxu0 0.0
    %2211 = vmatpush1.xpose.msra.mxu0 0.0
    %2212 = vmatprep.subr.mxu0 0.0
    %2213 = vmatpush1.xpose.msra.mxu0 0.0
    %2214 = vmatprep.subr.mxu0 0.0
    %2215 = vmatpush1.xpose.msra.mxu0 0.0
    %2216 = vmatprep.subr.mxu0 0.0
    %2217 = vmatpush1.xpose.msra.mxu0 0.0
    %2218 = vmatprep.subr.mxu0 0.0
    %2219 = vmatpush1.xpose.msra.mxu0 0.0
    %2220 = vmatprep.subr.mxu0 0.0
    %2221 = vmatpush1.xpose.msra.mxu0 0.0
    %2222 = vmatprep.subr.mxu0 0.0
    %2223 = vmatpush1.xpose.msra.mxu0 0.0
    %2224 = vmatprep.subr.mxu0 0.0
    %2225 = vmatpush1.xpose.msra.mxu0 0.0
    %2226 = vmatprep.subr.mxu0 0.0
    %2227 = vmatpush1.xpose.msra.mxu0 0.0
    %2228 = vmatprep.subr.mxu0 0.0
    %2229 = vmatpush1.xpose.msra.mxu0 0.0
    %2230 = vmatprep.subr.mxu0 0.0
    %2231 = vmatpush1.xpose.msra.mxu0 0.0
    %2232 = vmatprep.subr.mxu0 0.0
    %2233 = vmatpush1.xpose.msra.mxu0 0.0
    %2234 = vmatprep.subr.mxu0 0.0
    %2235 = vmatpush1.xpose.msra.mxu0 0.0
    %2236 = vmatprep.subr.mxu0 0.0
    %2237 = vmatpush1.xpose.msra.mxu0 0.0
    %2238 = vmatprep.subr.mxu0 0.0
    %2239 = vmatpush1.xpose.msra.mxu0 0.0
    %2240 = vmatprep.subr.mxu0 0.0
    %2241 = vmatpush1.xpose.msra.mxu0 0.0
    %2242 = vmatprep.subr.mxu0 0.0
    %2243 = vmatpush1.xpose.msra.mxu0 0.0
    %2244 = vmatprep.subr.mxu0 0.0
    %2245 = vmatpush1.xpose.msra.mxu0 0.0
    %2246 = vmatprep.subr.mxu0 0.0
    %2247 = vmatpush1.xpose.msra.mxu0 0.0
    %2248 = vmatprep.mubr.f32.mxu0 0.0
    %2249 = vmatmul.mubr.f32.gmra.mrb[0].mxu0 %v2173
    %v2250 = vpop.f32.mrb[0].mxu0
    %v2251 = vadd.f32 %v154, %v2250
    %v2252 = vpop.f32.mrb[0].mxu0
    %2253 = vmatprep.mubr.f32.mxu0 0.0
    %2254 = vmatmul.mubr.f32.gmra.mrb[0].mxu0 %v2176
    %v2255 = vpop.f32.mrb[0].mxu0
    %v2256 = vadd.f32 %v155, %v2255
    %v2257 = vpop.f32.mrb[0].mxu0
    %2258 = vdwg.mxu0
    %v2259 = vsel %vm491, %v2251, -inf
    %2260 = vmax.xlane.f32.xlu0 %v2259
    %v2261 = vpop.xlane.xlu0 %2260
    %v2262 = vsel %vm491, %v2256, -inf
    %2263 = vmax.xlane.f32.xlu0 %v2262
    %v2264 = vpop.xlane.xlu0 %2263
    %v2265 = vsub.f32 %v2251, %v2261
    %v2266 = vsub.f32 %v2256, %v2264
    %v2267 = vmul.f32 %v2265, 1.442695
    %v2268 = vpow.pop %v2267
    %v2269 = vmul.f32 %v2266, 1.442695
    %v2270 = vpow.pop %v2269
    %v2271 = vsel %vm491, %v2268, 0.0
    %2272 = vadd.xlane.f32.xlu0 %v2271
    %v2273 = vpop.xlane.xlu0 %2272
    %v2274 = vsel %vm491, %v2270, 0.0
    %2275 = vadd.xlane.f32.xlu0 %v2274
    %v2276 = vpop.xlane.xlu0 %2275
    %v2277 = vrcp.pop %v2273
    %v2278 = vrcp.pop %v2276
    %v2279 = vmul.f32 %v2268, %v2277
    %v2280 = vmul.f32 %v2270, %v2278
    %v2282 = vsel %vm491, %v2279, 0
    %v2285 = vsel %vm491, %v2280, 0
    %2287 = vmatprep.subr.mxu0 0.0
    %2288 = vmatpush1.msra.mxu0 %v2164
    %2289 = vmatprep.subr.mxu0 0.0
    %2290 = vmatpush1.msra.mxu0 %v2169
    %2291 = vmatprep.subr.mxu0 0.0
    %2292 = vmatpush1.msra.mxu0 0.0
    %2293 = vmatprep.subr.mxu0 0.0
    %2294 = vmatpush1.msra.mxu0 0.0
    %2295 = vmatprep.subr.mxu0 0.0
    %2296 = vmatpush1.msra.mxu0 0.0
    %2297 = vmatprep.subr.mxu0 0.0
    %2298 = vmatpush1.msra.mxu0 0.0
    %2299 = vmatprep.subr.mxu0 0.0
    %2300 = vmatpush1.msra.mxu0 0.0
    %2301 = vmatprep.subr.mxu0 0.0
    %2302 = vmatpush1.msra.mxu0 0.0
    %2303 = vmatprep.subr.mxu0 0.0
    %2304 = vmatpush1.msra.mxu0 0.0
    %2305 = vmatprep.subr.mxu0 0.0
    %2306 = vmatpush1.msra.mxu0 0.0
    %2307 = vmatprep.subr.mxu0 0.0
    %2308 = vmatpush1.msra.mxu0 0.0
    %2309 = vmatprep.subr.mxu0 0.0
    %2310 = vmatpush1.msra.mxu0 0.0
    %2311 = vmatprep.subr.mxu0 0.0
    %2312 = vmatpush1.msra.mxu0 0.0
    %2313 = vmatprep.subr.mxu0 0.0
    %2314 = vmatpush1.msra.mxu0 0.0
    %2315 = vmatprep.subr.mxu0 0.0
    %2316 = vmatpush1.msra.mxu0 0.0
    %2317 = vmatprep.subr.mxu0 0.0
    %2318 = vmatpush1.msra.mxu0 0.0
    %2319 = vmatprep.subr.mxu0 0.0
    %2320 = vmatpush1.msra.mxu0 0.0
    %2321 = vmatprep.subr.mxu0 0.0
    %2322 = vmatpush1.msra.mxu0 0.0
    %2323 = vmatprep.subr.mxu0 0.0
    %2324 = vmatpush1.msra.mxu0 0.0
    %2325 = vmatprep.subr.mxu0 0.0
    %2326 = vmatpush1.msra.mxu0 0.0
    %2327 = vmatprep.subr.mxu0 0.0
    %2328 = vmatpush1.msra.mxu0 0.0
    %2329 = vmatprep.subr.mxu0 0.0
    %2330 = vmatpush1.msra.mxu0 0.0
    %2331 = vmatprep.subr.mxu0 0.0
    %2332 = vmatpush1.msra.mxu0 0.0
    %2333 = vmatprep.subr.mxu0 0.0
    %2334 = vmatpush1.msra.mxu0 0.0
    %2335 = vmatprep.subr.mxu0 0.0
    %2336 = vmatpush1.msra.mxu0 0.0
    %2337 = vmatprep.subr.mxu0 0.0
    %2338 = vmatpush1.msra.mxu0 0.0
    %2339 = vmatprep.subr.mxu0 0.0
    %2340 = vmatpush1.msra.mxu0 0.0
    %2341 = vmatprep.subr.mxu0 0.0
    %2342 = vmatpush1.msra.mxu0 0.0
    %2343 = vmatprep.subr.mxu0 0.0
    %2344 = vmatpush1.msra.mxu0 0.0
    %2345 = vmatprep.subr.mxu0 0.0
    %2346 = vmatpush1.msra.mxu0 0.0
    %2347 = vmatprep.subr.mxu0 0.0
    %2348 = vmatpush1.msra.mxu0 0.0
    %2349 = vmatprep.subr.mxu0 0.0
    %2350 = vmatpush1.msra.mxu0 0.0
    %2351 = vmatprep.mubr.f32.mxu0 0.0
    %2352 = vmatmul.mubr.f32.gmra.mrb[0].mxu0 %v2282
    %v2353 = vpop.f32.mrb[0].mxu0
    %v2354 = vadd.f32 0.0, %v2353
    %v2355 = vpop.f32.mrb[0].mxu0
    %2356 = vmatprep.mubr.f32.mxu0 0.0
    %2357 = vmatmul.mubr.f32.gmra.mrb[0].mxu0 %v2285
    %v2358 = vpop.f32.mrb[0].mxu0
    %v2359 = vadd.f32 0.0, %v2358
    %v2360 = vpop.f32.mrb[0].mxu0
    %2361 = vdwg.mxu0
    %v2363 = vsel %vm172, %v2354, 0
    %v2366 = vsel %vm172, %v2359, 0
    %2368 = vmatprep.subr.mxu0 0.0
    %2369 = vmatpush1.msra.mxu0 %v1943
    %2370 = vmatprep.subr.mxu0 0.0
    %2371 = vmatpush1.msra.mxu0 %v1944
    %2372 = vmatprep.subr.mxu0 0.0
    %2373 = vmatpush1.msra.mxu0 %v1945
    %2374 = vmatprep.subr.mxu0 0.0
    %2375 = vmatpush1.msra.mxu0 %v1946
    %2376 = vmatprep.subr.mxu0 0.0
    %2377 = vmatpush1.msra.mxu0 0.0
    %2378 = vmatprep.subr.mxu0 0.0
    %2379 = vmatpush1.msra.mxu0 0.0
    %2380 = vmatprep.subr.mxu0 0.0
    %2381 = vmatpush1.msra.mxu0 0.0
    %2382 = vmatprep.subr.mxu0 0.0
    %2383 = vmatpush1.msra.mxu0 0.0
    %2384 = vmatprep.subr.mxu0 0.0
    %2385 = vmatpush1.msra.mxu0 0.0
    %2386 = vmatprep.subr.mxu0 0.0
    %2387 = vmatpush1.msra.mxu0 0.0
    %2388 = vmatprep.subr.mxu0 0.0
    %2389 = vmatpush1.msra.mxu0 0.0
    %2390 = vmatprep.subr.mxu0 0.0
    %2391 = vmatpush1.msra.mxu0 0.0
    %2392 = vmatprep.subr.mxu0 0.0
    %2393 = vmatpush1.msra.mxu0 0.0
    %2394 = vmatprep.subr.mxu0 0.0
    %2395 = vmatpush1.msra.mxu0 0.0
    %2396 = vmatprep.subr.mxu0 0.0
    %2397 = vmatpush1.msra.mxu0 0.0
    %2398 = vmatprep.subr.mxu0 0.0
    %2399 = vmatpush1.msra.mxu0 0.0
    %2400 = vmatprep.subr.mxu0 0.0
    %2401 = vmatpush1.msra.mxu0 0.0
    %2402 = vmatprep.subr.mxu0 0.0
    %2403 = vmatpush1.msra.mxu0 0.0
    %2404 = vmatprep.subr.mxu0 0.0
    %2405 = vmatpush1.msra.mxu0 0.0
    %2406 = vmatprep.subr.mxu0 0.0
    %2407 = vmatpush1.msra.mxu0 0.0
    %2408 = vmatprep.subr.mxu0 0.0
    %2409 = vmatpush1.msra.mxu0 0.0
    %2410 = vmatprep.subr.mxu0 0.0
    %2411 = vmatpush1.msra.mxu0 0.0
    %2412 = vmatprep.subr.mxu0 0.0
    %2413 = vmatpush1.msra.mxu0 0.0
    %2414 = vmatprep.subr.mxu0 0.0
    %2415 = vmatpush1.msra.mxu0 0.0
    %2416 = vmatprep.subr.mxu0 0.0
    %2417 = vmatpush1.msra.mxu0 0.0
    %2418 = vmatprep.subr.mxu0 0.0
    %2419 = vmatpush1.msra.mxu0 0.0
    %2420 = vmatprep.subr.mxu0 0.0
    %2421 = vmatpush1.msra.mxu0 0.0
    %2422 = vmatprep.subr.mxu0 0.0
    %2423 = vmatpush1.msra.mxu0 0.0
    %2424 = vmatprep.subr.mxu0 0.0
    %2425 = vmatpush1.msra.mxu0 0.0
    %2426 = vmatprep.subr.mxu0 0.0
    %2427 = vmatpush1.msra.mxu0 0.0
    %2428 = vmatprep.subr.mxu0 0.0
    %2429 = vmatpush1.msra.mxu0 0.0
    %2430 = vmatprep.subr.mxu0 0.0
    %2431 = vmatpush1.msra.mxu0 0.0
    %2432 = vmatprep.mubr.f32.mxu0 0.0
    %2433 = vmatmul.mubr.f32.gmra.mrb[0].mxu0 %v2363
    %v2434 = vpop.f32.mrb[0].mxu0
    %v2435 = vadd.f32 0.0, %v2434
    %v2436 = vpop.f32.mrb[0].mxu0
    %2437 = vmatprep.mubr.f32.mxu0 0.0
    %2438 = vmatmul.mubr.f32.gmra.mrb[0].mxu0 %v2366
    %v2439 = vpop.f32.mrb[0].mxu0
    %v2440 = vadd.f32 0.0, %v2439
    %v2441 = vpop.f32.mrb[0].mxu0
    %2442 = vdwg.mxu0
    %v2444 = vsel %vm172, %v1919, 0
    %v2447 = vsel %vm172, %v1924, 0
    %2449 = vmatprep.subr.mxu0 0.0
    %2450 = vmatpush1.msra.mxu0 %v1502
    %2451 = vmatprep.subr.mxu0 0.0
    %2452 = vmatpush1.msra.mxu0 %v1503
    %2453 = vmatprep.subr.mxu0 0.0
    %2454 = vmatpush1.msra.mxu0 %v1504
    %2455 = vmatprep.subr.mxu0 0.0
    %2456 = vmatpush1.msra.mxu0 %v1505
    %2457 = vmatprep.subr.mxu0 0.0
    %2458 = vmatpush1.msra.mxu0 0.0
    %2459 = vmatprep.subr.mxu0 0.0
    %2460 = vmatpush1.msra.mxu0 0.0
    %2461 = vmatprep.subr.mxu0 0.0
    %2462 = vmatpush1.msra.mxu0 0.0
    %2463 = vmatprep.subr.mxu0 0.0
    %2464 = vmatpush1.msra.mxu0 0.0
    %2465 = vmatprep.subr.mxu0 0.0
    %2466 = vmatpush1.msra.mxu0 0.0
    %2467 = vmatprep.subr.mxu0 0.0
    %2468 = vmatpush1.msra.mxu0 0.0
    %2469 = vmatprep.subr.mxu0 0.0
    %2470 = vmatpush1.msra.mxu0 0.0
    %2471 = vmatprep.subr.mxu0 0.0
    %2472 = vmatpush1.msra.mxu0 0.0
    %2473 = vmatprep.subr.mxu0 0.0
    %2474 = vmatpush1.msra.mxu0 0.0
    %2475 = vmatprep.subr.mxu0 0.0
    %2476 = vmatpush1.msra.mxu0 0.0
    %2477 = vmatprep.subr.mxu0 0.0
    %2478 = vmatpush1.msra.mxu0 0.0
    %2479 = vmatprep.subr.mxu0 0.0
    %2480 = vmatpush1.msra.mxu0 0.0
    %2481 = vmatprep.subr.mxu0 0.0
    %2482 = vmatpush1.msra.mxu0 0.0
    %2483 = vmatprep.subr.mxu0 0.0
    %2484 = vmatpush1.msra.mxu0 0.0
    %2485 = vmatprep.subr.mxu0 0.0
    %2486 = vmatpush1.msra.mxu0 0.0
    %2487 = vmatprep.subr.mxu0 0.0
    %2488 = vmatpush1.msra.mxu0 0.0
    %2489 = vmatprep.subr.mxu0 0.0
    %2490 = vmatpush1.msra.mxu0 0.0
    %2491 = vmatprep.subr.mxu0 0.0
    %2492 = vmatpush1.msra.mxu0 0.0
    %2493 = vmatprep.subr.mxu0 0.0
    %2494 = vmatpush1.msra.mxu0 0.0
    %2495 = vmatprep.subr.mxu0 0.0
    %2496 = vmatpush1.msra.mxu0 0.0
    %2497 = vmatprep.subr.mxu0 0.0
    %2498 = vmatpush1.msra.mxu0 0.0
    %2499 = vmatprep.subr.mxu0 0.0
    %2500 = vmatpush1.msra.mxu0 0.0
    %2501 = vmatprep.subr.mxu0 0.0
    %2502 = vmatpush1.msra.mxu0 0.0
    %2503 = vmatprep.subr.mxu0 0.0
    %2504 = vmatpush1.msra.mxu0 0.0
    %2505 = vmatprep.subr.mxu0 0.0
    %2506 = vmatpush1.msra.mxu0 0.0
    %2507 = vmatprep.subr.mxu0 0.0
    %2508 = vmatpush1.msra.mxu0 0.0
    %2509 = vmatprep.subr.mxu0 0.0
    %2510 = vmatpush1.msra.mxu0 0.0
    %2511 = vmatprep.subr.mxu0 0.0
    %2512 = vmatpush1.msra.mxu0 0.0
    %2513 = vmatprep.mubr.f32.mxu0 0.0
    %2514 = vmatmul.mubr.f32.gmra.mrb[0].mxu0 %v2444
    %v2515 = vpop.f32.mrb[0].mxu0
    %v2516 = vadd.f32 %v2435, %v2515
    %v2517 = vpop.f32.mrb[0].mxu0
    %2518 = vmatprep.mubr.f32.mxu0 0.0
    %2519 = vmatmul.mubr.f32.gmra.mrb[0].mxu0 %v2447
    %v2520 = vpop.f32.mrb[0].mxu0
    %v2521 = vadd.f32 %v2440, %v2520
    %v2522 = vpop.f32.mrb[0].mxu0
    %2523 = vdwg.mxu0
    %s2524 = scalar_lea.vmem %s6, 1
    %v2525 = vld [vmem:[%s2524] sm:$0x1]
    %v2527 = vlaneseq
    %v2528 = vshrl.u32 %v2527, 7
    %v2529 = vsub.s32 0, %v2528
    %v2530 = vrot.slane %v2525, %v2529
    %v2532 = vadd.f32 %v2516, %v2530
    %v2533 = vadd.f32 %v2521, %v2530
    %v2534 = vadd.f32 %v2532, %v1484
    %v2535 = vadd.f32 %v2533, %v1485
    %s2536 = scalar_lea.vmem [#allocation10], 1
    %v2537 = vld [vmem:[%s2536] sm:$0x1]
    %s2538 = scalar_lea.vmem [#allocation11], 1
    %v2539 = vld [vmem:[%s2538] sm:$0x1]
    %v2540 = vsel %vm172, %v2534, 0.0
    %2541 = vadd.xlane.f32.xlu0 %v2540
    %v2542 = vpop.xlane.xlu0 %2541
    %v2543 = vsel %vm172, %v2535, 0.0
    %2544 = vadd.xlane.f32.xlu0 %v2543
    %v2545 = vpop.xlane.xlu0 %2544
    %v2546 = vmul.f32 %v2542, %v1211
    %v2547 = vmul.f32 %v2545, %v1211
    %v2548 = vsub.f32 %v2534, %v2546
    %v2549 = vsub.f32 %v2535, %v2547
    %v2550 = vmul.f32 %v2548, %v2548
    %v2551 = vmul.f32 %v2549, %v2549
    %v2552 = vsel %vm172, %v2550, 0.0
    %2553 = vadd.xlane.f32.xlu0 %v2552
    %v2554 = vpop.xlane.xlu0 %2553
    %v2555 = vsel %vm172, %v2551, 0.0
    %2556 = vadd.xlane.f32.xlu0 %v2555
    %v2557 = vpop.xlane.xlu0 %2556
    %v2558 = vmul.f32 %v2554, %v1211
    %v2559 = vmul.f32 %v2557, %v1211
    %v2560 = vadd.f32 %v2558, 1e-05
    %v2561 = vadd.f32 %v2559, 1e-05
    %v2562 = vrsqrt.pop %v2560
    %v2563 = vrsqrt.pop %v2561
    %v2564 = vmul.f32 %v2548, %v2562
    %v2565 = vmul.f32 %v2549, %v2563
    %v2567 = vlaneseq
    %v2568 = vshrl.u32 %v2567, 7
    %v2569 = vsub.s32 0, %v2568
    %v2570 = vrot.slane %v2537, %v2569
    %v2572 = vmul.f32 %v2564, %v2570
    %v2573 = vmul.f32 %v2565, %v2570
    %v2575 = vlaneseq
    %v2576 = vshrl.u32 %v2575, 7
    %v2577 = vsub.s32 0, %v2576
    %v2578 = vrot.slane %v2539, %v2577
    %v2580 = vadd.f32 %v2572, %v2578
    %v2581 = vadd.f32 %v2573, %v2578
    %s2582 = scalar_lea.vmem %s11, 32
    %v2583 = vld [vmem:[%s2582] sm:$0xff]
    %v2584 = vld [vmem:[%s2582 + $0x8] sm:$0xff]
    %v2585 = vld [vmem:[%s2582 + $0x10] sm:$0xff]
    %v2586 = vld [vmem:[%s2582 + $0x18] sm:$0xff]
    %s2587 = scalar_lea.vmem %s12, 1
    %v2588 = vld [vmem:[%s2587] sm:$0x1]
    %v2590 = vlaneseq
    %v2591 = vshrl.u32 %v2590, 7
    %v2592 = vsub.s32 0, %v2591
    %v2593 = vrot.slane %v2588, %v2592
    %v2596 = vsel %vm172, %v2580, 0
    %v2599 = vsel %vm172, %v2581, 0
    %2601 = vmatprep.subr.mxu0 0.0
    %2602 = vmatpush1.msra.mxu0 %v2583
    %2603 = vmatprep.subr.mxu0 0.0
    %2604 = vmatpush1.msra.mxu0 %v2584
    %2605 = vmatprep.subr.mxu0 0.0
    %2606 = vmatpush1.msra.mxu0 %v2585
    %2607 = vmatprep.subr.mxu0 0.0
    %2608 = vmatpush1.msra.mxu0 %v2586
    %2609 = vmatprep.subr.mxu0 0.0
    %2610 = vmatpush1.msra.mxu0 0.0
    %2611 = vmatprep.subr.mxu0 0.0
    %2612 = vmatpush1.msra.mxu0 0.0
    %2613 = vmatprep.subr.mxu0 0.0
    %2614 = vmatpush1.msra.mxu0 0.0
    %2615 = vmatprep.subr.mxu0 0.0
    %2616 = vmatpush1.msra.mxu0 0.0
    %2617 = vmatprep.subr.mxu0 0.0
    %2618 = vmatpush1.msra.mxu0 0.0
    %2619 = vmatprep.subr.mxu0 0.0
    %2620 = vmatpush1.msra.mxu0 0.0
    %2621 = vmatprep.subr.mxu0 0.0
    %2622 = vmatpush1.msra.mxu0 0.0
    %2623 = vmatprep.subr.mxu0 0.0
    %2624 = vmatpush1.msra.mxu0 0.0
    %2625 = vmatprep.subr.mxu0 0.0
    %2626 = vmatpush1.msra.mxu0 0.0
    %2627 = vmatprep.subr.mxu0 0.0
    %2628 = vmatpush1.msra.mxu0 0.0
    %2629 = vmatprep.subr.mxu0 0.0
    %2630 = vmatpush1.msra.mxu0 0.0
    %2631 = vmatprep.subr.mxu0 0.0
    %2632 = vmatpush1.msra.mxu0 0.0
    %2633 = vmatprep.subr.mxu0 0.0
    %2634 = vmatpush1.msra.mxu0 0.0
    %2635 = vmatprep.subr.mxu0 0.0
    %2636 = vmatpush1.msra.mxu0 0.0
    %2637 = vmatprep.subr.mxu0 0.0
    %2638 = vmatpush1.msra.mxu0 0.0
    %2639 = vmatprep.subr.mxu0 0.0
    %2640 = vmatpush1.msra.mxu0 0.0
    %2641 = vmatprep.subr.mxu0 0.0
    %2642 = vmatpush1.msra.mxu0 0.0
    %2643 = vmatprep.subr.mxu0 0.0
    %2644 = vmatpush1.msra.mxu0 0.0
    %2645 = vmatprep.subr.mxu0 0.0
    %2646 = vmatpush1.msra.mxu0 0.0
    %2647 = vmatprep.subr.mxu0 0.0
    %2648 = vmatpush1.msra.mxu0 0.0
    %2649 = vmatprep.subr.mxu0 0.0
    %2650 = vmatpush1.msra.mxu0 0.0
    %2651 = vmatprep.subr.mxu0 0.0
    %2652 = vmatpush1.msra.mxu0 0.0
    %2653 = vmatprep.subr.mxu0 0.0
    %2654 = vmatpush1.msra.mxu0 0.0
    %2655 = vmatprep.subr.mxu0 0.0
    %2656 = vmatpush1.msra.mxu0 0.0
    %2657 = vmatprep.subr.mxu0 0.0
    %2658 = vmatpush1.msra.mxu0 0.0
    %2659 = vmatprep.subr.mxu0 0.0
    %2660 = vmatpush1.msra.mxu0 0.0
    %2661 = vmatprep.subr.mxu0 0.0
    %2662 = vmatpush1.msra.mxu0 0.0
    %2663 = vmatprep.subr.mxu0 0.0
    %2664 = vmatpush1.msra.mxu0 0.0
    %2665 = vmatprep.mubr.f32.mxu0 0.0
    %2666 = vmatmul.mubr.f32.gmra.mrb[0].mxu0 %v2596
    %v2667 = vpop.f32.mrb[0].mxu0
    %v2668 = vadd.f32 %v2593, %v2667
    %v2669 = vpop.f32.mrb[0].mxu0
    %2670 = vmatprep.mubr.f32.mxu0 0.0
    %2671 = vmatmul.mubr.f32.gmra.mrb[0].mxu0 %v2599
    %v2672 = vpop.f32.mrb[0].mxu0
    %v2673 = vadd.f32 %v2593, %v2672
    %v2674 = vpop.f32.mrb[0].mxu0
    %2675 = vdwg.mxu0
    %v2676 = vmax.f32 %v2668, 0.0
    %v2677 = vmax.f32 %v2673, 0.0
    %s2678 = scalar_lea.vmem %s13, 128
    %v2679 = vld [vmem:[%s2678] sm:$0xff]
    %v2680 = vld [vmem:[%s2678 + $0x8] sm:$0xff]
    %v2681 = vld [vmem:[%s2678 + $0x10] sm:$0xff]
    %v2682 = vld [vmem:[%s2678 + $0x18] sm:$0xff]
    %v2683 = vld [vmem:[%s2678 + $0x20] sm:$0xff]
    %v2684 = vld [vmem:[%s2678 + $0x28] sm:$0xff]
    %v2685 = vld [vmem:[%s2678 + $0x30] sm:$0xff]
    %v2686 = vld [vmem:[%s2678 + $0x38] sm:$0xff]
    %v2687 = vld [vmem:[%s2678 + $0x40] sm:$0xff]
    %v2688 = vld [vmem:[%s2678 + $0x48] sm:$0xff]
    %v2689 = vld [vmem:[%s2678 + $0x50] sm:$0xff]
    %v2690 = vld [vmem:[%s2678 + $0x58] sm:$0xff]
    %v2691 = vld [vmem:[%s2678 + $0x60] sm:$0xff]
    %v2692 = vld [vmem:[%s2678 + $0x68] sm:$0xff]
    %v2693 = vld [vmem:[%s2678 + $0x70] sm:$0xff]
    %v2694 = vld [vmem:[%s2678 + $0x78] sm:$0xff]
    %s2695 = scalar_lea.vmem %s14, 1
    %v2696 = vld [vmem:[%s2695] sm:$0x1]
    %v2698 = vlaneseq
    %v2699 = vshrl.u32 %v2698, 7
    %v2700 = vsub.s32 0, %v2699
    %v2701 = vrot.slane %v2696, %v2700
    %2703 = vmatprep.subr.mxu0 0.0
    %2704 = vmatpush1.msra.mxu0 %v2679
    %2705 = vmatprep.subr.mxu0 0.0
    %2706 = vmatpush1.msra.mxu0 %v2680
    %2707 = vmatprep.subr.mxu0 0.0
    %2708 = vmatpush1.msra.mxu0 %v2681
    %2709 = vmatprep.subr.mxu0 0.0
    %2710 = vmatpush1.msra.mxu0 %v2682
    %2711 = vmatprep.subr.mxu0 0.0
    %2712 = vmatpush1.msra.mxu0 %v2683
    %2713 = vmatprep.subr.mxu0 0.0
    %2714 = vmatpush1.msra.mxu0 %v2684
    %2715 = vmatprep.subr.mxu0 0.0
    %2716 = vmatpush1.msra.mxu0 %v2685
    %2717 = vmatprep.subr.mxu0 0.0
    %2718 = vmatpush1.msra.mxu0 %v2686
    %2719 = vmatprep.subr.mxu0 0.0
    %2720 = vmatpush1.msra.mxu0 %v2687
    %2721 = vmatprep.subr.mxu0 0.0
    %2722 = vmatpush1.msra.mxu0 %v2688
    %2723 = vmatprep.subr.mxu0 0.0
    %2724 = vmatpush1.msra.mxu0 %v2689
    %2725 = vmatprep.subr.mxu0 0.0
    %2726 = vmatpush1.msra.mxu0 %v2690
    %2727 = vmatprep.subr.mxu0 0.0
    %2728 = vmatpush1.msra.mxu0 %v2691
    %2729 = vmatprep.subr.mxu0 0.0
    %2730 = vmatpush1.msra.mxu0 %v2692
    %2731 = vmatprep.subr.mxu0 0.0
    %2732 = vmatpush1.msra.mxu0 %v2693
    %2733 = vmatprep.subr.mxu0 0.0
    %2734 = vmatpush1.msra.mxu0 %v2694
    %2735 = vmatprep.subr.mxu0 0.0
    %2736 = vmatpush1.msra.mxu0 0.0
    %2737 = vmatprep.subr.mxu0 0.0
    %2738 = vmatpush1.msra.mxu0 0.0
    %2739 = vmatprep.subr.mxu0 0.0
    %2740 = vmatpush1.msra.mxu0 0.0
    %2741 = vmatprep.subr.mxu0 0.0
    %2742 = vmatpush1.msra.mxu0 0.0
    %2743 = vmatprep.subr.mxu0 0.0
    %2744 = vmatpush1.msra.mxu0 0.0
    %2745 = vmatprep.subr.mxu0 0.0
    %2746 = vmatpush1.msra.mxu0 0.0
    %2747 = vmatprep.subr.mxu0 0.0
    %2748 = vmatpush1.msra.mxu0 0.0
    %2749 = vmatprep.subr.mxu0 0.0
    %2750 = vmatpush1.msra.mxu0 0.0
    %2751 = vmatprep.subr.mxu0 0.0
    %2752 = vmatpush1.msra.mxu0 0.0
    %2753 = vmatprep.subr.mxu0 0.0
    %2754 = vmatpush1.msra.mxu0 0.0
    %2755 = vmatprep.subr.mxu0 0.0
    %2756 = vmatpush1.msra.mxu0 0.0
    %2757 = vmatprep.subr.mxu0 0.0
    %2758 = vmatpush1.msra.mxu0 0.0
    %2759 = vmatprep.subr.mxu0 0.0
    %2760 = vmatpush1.msra.mxu0 0.0
    %2761 = vmatprep.subr.mxu0 0.0
    %2762 = vmatpush1.msra.mxu0 0.0
    %2763 = vmatprep.subr.mxu0 0.0
    %2764 = vmatpush1.msra.mxu0 0.0
    %2765 = vmatprep.subr.mxu0 0.0
    %2766 = vmatpush1.msra.mxu0 0.0
    %2767 = vmatprep.mubr.f32.mxu0 0.0
    %2768 = vmatmul.mubr.f32.gmra.mrb[0].mxu0 %v2676
    %v2769 = vpop.f32.mrb[0].mxu0
    %v2770 = vadd.f32 %v2701, %v2769
    %v2771 = vpop.f32.mrb[0].mxu0
    %2772 = vmatprep.mubr.f32.mxu0 0.0
    %2773 = vmatmul.mubr.f32.gmra.mrb[0].mxu0 %v2677
    %v2774 = vpop.f32.mrb[0].mxu0
    %v2775 = vadd.f32 %v2701, %v2774
    %v2776 = vpop.f32.mrb[0].mxu0
    %2777 = vdwg.mxu0
    %v2778 = vadd.f32 %v2770, %v2580
    %v2779 = vadd.f32 %v2775, %v2581
    %s2780 = scalar_lea.vmem [#allocation13], 1
    %v2781 = vld [vmem:[%s2780] sm:$0x1]
    %s2782 = scalar_lea.vmem %s10, 1
    %v2783 = vld [vmem:[%s2782] sm:$0x1]
    %v2784 = vsel %vm172, %v2778, 0.0
    %2785 = vadd.xlane.f32.xlu0 %v2784
    %v2786 = vpop.xlane.xlu0 %2785
    %v2787 = vsel %vm172, %v2779, 0.0
    %2788 = vadd.xlane.f32.xlu0 %v2787
    %v2789 = vpop.xlane.xlu0 %2788
    %v2790 = vmul.f32 %v2786, %v1211
    %v2791 = vmul.f32 %v2789, %v1211
    %v2792 = vsub.f32 %v2778, %v2790
    %v2793 = vsub.f32 %v2779, %v2791
    %v2794 = vmul.f32 %v2792, %v2792
    %v2795 = vmul.f32 %v2793, %v2793
    %v2796 = vsel %vm172, %v2794, 0.0
    %2797 = vadd.xlane.f32.xlu0 %v2796
    %v2798 = vpop.xlane.xlu0 %2797
    %v2799 = vsel %vm172, %v2795, 0.0
    %2800 = vadd.xlane.f32.xlu0 %v2799
    %v2801 = vpop.xlane.xlu0 %2800
    %v2802 = vmul.f32 %v2798, %v1211
    %v2803 = vmul.f32 %v2801, %v1211
    %v2804 = vadd.f32 %v2802, 1e-05
    %v2805 = vadd.f32 %v2803, 1e-05
    %v2806 = vrsqrt.pop %v2804
    %v2807 = vrsqrt.pop %v2805
    %v2808 = vmul.f32 %v2792, %v2806
    %v2809 = vmul.f32 %v2793, %v2807
    %v2811 = vlaneseq
    %v2812 = vshrl.u32 %v2811, 7
    %v2813 = vsub.s32 0, %v2812
    %v2814 = vrot.slane %v2781, %v2813
    %v2816 = vmul.f32 %v2808, %v2814
    %v2817 = vmul.f32 %v2809, %v2814
    %v2819 = vlaneseq
    %v2820 = vshrl.u32 %v2819, 7
    %v2821 = vsub.s32 0, %v2820
    %v2822 = vrot.slane %v2783, %v2821
    %v2824 = vadd.f32 %v2816, %v2822
    %v2825 = vadd.f32 %v2817, %v2822
    %v2826 = vld [vmem:[%s15] sm:$0xff]
    %v2827 = vld [vmem:[%s15 + $0x8] sm:$0xff]
    %v2828 = vld [vmem:[%s15 + $0x10] sm:$0xff]
    %v2829 = vld [vmem:[%s15 + $0x18] sm:$0xff]
    %v2830 = vld [vmem:[%s16] sm:$0x1]
    %v2832 = vlaneseq
    %v2833 = vshrl.u32 %v2832, 7
    %v2834 = vsub.s32 0, %v2833
    %v2835 = vrot.slane %v2830, %v2834
    %v2838 = vsel %vm172, %v2824, 0
    %v2841 = vsel %vm172, %v2825, 0
    %2843 = vmatprep.subr.mxu0 0.0
    %2844 = vmatpush1.msra.mxu0 %v2826
    %2845 = vmatprep.subr.mxu0 0.0
    %2846 = vmatpush1.msra.mxu0 %v2827
    %2847 = vmatprep.subr.mxu0 0.0
    %2848 = vmatpush1.msra.mxu0 %v2828
    %2849 = vmatprep.subr.mxu0 0.0
    %2850 = vmatpush1.msra.mxu0 %v2829
    %2851 = vmatprep.subr.mxu0 0.0
    %2852 = vmatpush1.msra.mxu0 0.0
    %2853 = vmatprep.subr.mxu0 0.0
    %2854 = vmatpush1.msra.mxu0 0.0
    %2855 = vmatprep.subr.mxu0 0.0
    %2856 = vmatpush1.msra.mxu0 0.0
    %2857 = vmatprep.subr.mxu0 0.0
    %2858 = vmatpush1.msra.mxu0 0.0
    %2859 = vmatprep.subr.mxu0 0.0
    %2860 = vmatpush1.msra.mxu0 0.0
    %2861 = vmatprep.subr.mxu0 0.0
    %2862 = vmatpush1.msra.mxu0 0.0
    %2863 = vmatprep.subr.mxu0 0.0
    %2864 = vmatpush1.msra.mxu0 0.0
    %2865 = vmatprep.subr.mxu0 0.0
    %2866 = vmatpush1.msra.mxu0 0.0
    %2867 = vmatprep.subr.mxu0 0.0
    %2868 = vmatpush1.msra.mxu0 0.0
    %2869 = vmatprep.subr.mxu0 0.0
    %2870 = vmatpush1.msra.mxu0 0.0
    %2871 = vmatprep.subr.mxu0 0.0
    %2872 = vmatpush1.msra.mxu0 0.0
    %2873 = vmatprep.subr.mxu0 0.0
    %2874 = vmatpush1.msra.mxu0 0.0
    %2875 = vmatprep.subr.mxu0 0.0
    %2876 = vmatpush1.msra.mxu0 0.0
    %2877 = vmatprep.subr.mxu0 0.0
    %2878 = vmatpush1.msra.mxu0 0.0
    %2879 = vmatprep.subr.mxu0 0.0
    %2880 = vmatpush1.msra.mxu0 0.0
    %2881 = vmatprep.subr.mxu0 0.0
    %2882 = vmatpush1.msra.mxu0 0.0
    %2883 = vmatprep.subr.mxu0 0.0
    %2884 = vmatpush1.msra.mxu0 0.0
    %2885 = vmatprep.subr.mxu0 0.0
    %2886 = vmatpush1.msra.mxu0 0.0
    %2887 = vmatprep.subr.mxu0 0.0
    %2888 = vmatpush1.msra.mxu0 0.0
    %2889 = vmatprep.subr.mxu0 0.0
    %2890 = vmatpush1.msra.mxu0 0.0
    %2891 = vmatprep.subr.mxu0 0.0
    %2892 = vmatpush1.msra.mxu0 0.0
    %2893 = vmatprep.subr.mxu0 0.0
    %2894 = vmatpush1.msra.mxu0 0.0
    %2895 = vmatprep.subr.mxu0 0.0
    %2896 = vmatpush1.msra.mxu0 0.0
    %2897 = vmatprep.subr.mxu0 0.0
    %2898 = vmatpush1.msra.mxu0 0.0
    %2899 = vmatprep.subr.mxu0 0.0
    %2900 = vmatpush1.msra.mxu0 0.0
    %2901 = vmatprep.subr.mxu0 0.0
    %2902 = vmatpush1.msra.mxu0 0.0
    %2903 = vmatprep.subr.mxu0 0.0
    %2904 = vmatpush1.msra.mxu0 0.0
    %2905 = vmatprep.subr.mxu0 0.0
    %2906 = vmatpush1.msra.mxu0 0.0
    %2907 = vmatprep.mubr.f32.mxu0 0.0
    %2908 = vmatmul.mubr.f32.gmra.mrb[0].mxu0 %v2838
    %v2909 = vpop.f32.mrb[0].mxu0
    %v2910 = vadd.f32 %v2835, %v2909
    %v2911 = vpop.f32.mrb[0].mxu0
    %2912 = vmatprep.mubr.f32.mxu0 0.0
    %2913 = vmatmul.mubr.f32.gmra.mrb[0].mxu0 %v2841
    %v2914 = vpop.f32.mrb[0].mxu0
    %v2915 = vadd.f32 %v2835, %v2914
    %v2916 = vpop.f32.mrb[0].mxu0
    %2917 = vdwg.mxu0
    %2918 = vst [vmem:[#allocation14] sm:$0xff] %v2910
    %2919 = vst [vmem:[#allocation14 + $0x8] sm:$0xff] %v2915
    // Predicated region
    $region98: #{tpu_custom_call.1} parent=1 // pred_check
      _
    $region99: #{tpu_custom_call.1} parent=1 // pred_check_branch
      %2921 = sbr.rel (0) target = $region101
    $region100: #{tpu_custom_call.1} parent=1 // pred_region
      %s2923 = ssub.s32 256, 256
      %2924 = vsyncadd [#allocation4], %s2923
      %s2925 = sshll.u32 [#allocation14], 4
      %s2926 = int_to_ptr.vmem [resolvable:$true] %s2925
      %2931 = dma.vmem_to_hbm [thread:$0]  %s2926, 256, %s17, [#allocation4], 128, 128, 8
    $region101: #{tpu_custom_call.1} parent=1 // pred_fallthru
      _
    // Predicated region
    $region102: #{tpu_custom_call.1} parent=1 // pred_check
      _
    $region103: #{tpu_custom_call.1} parent=1 // pred_check_branch
      %2933 = sbr.rel (0) target = $region105
    $region104: #{tpu_custom_call.1} parent=1 // pred_region
      %2934 = dma.done [#allocation4], 256
    $region105: #{tpu_custom_call.1} parent=1 // pred_fallthru
      _
    %2935 = vsyncpa [#allocation3], 1
    %2936 = vsyncpa [#allocation6], 1
    %2937 = vsyncpa [#allocation9], 1
    %2938 = vsyncpa [#allocation12], 1
    %2939 = vsyncpa [#allocation4], 1

</llo_original>
